<compile_context>
chip_gen: v6e
topology: v6e:2x2x1
jax: 0.10.0
libtpu: 0.0.40
codegen_flags: <defaults>
</compile_context>

<pallas_src>
import functools

import jax
import jax.numpy as jnp
from jax.experimental import pallas as pl
from jax.experimental.pallas import tpu as pltpu


# ----------------------------------------------------------------------------
# helpers
# ----------------------------------------------------------------------------
def _round_up(x, m):
    return (x + m - 1) // m * m


def _k_tiling(k, tk_max=1024):
    """Pick (Kp, tk) with Kp % tk == 0 and tk a multiple of 128 (single tile if small)."""
    kp = _round_up(k, 128)
    if kp <= tk_max:
        return kp, kp
    nk = -(-kp // tk_max)                       # cdiv
    tk = _round_up(-(-kp // nk), 128)
    return tk * nk, tk


# ----------------------------------------------------------------------------
# Pallas kernel 1: tiled  out = maybe_relu(A @ B + bias)   (A, B bf16; acc f32)
# ----------------------------------------------------------------------------
def _matmul_bias_kernel(a_ref, b_ref, bias_ref, o_ref, acc_ref, *, apply_relu):
    k = pl.program_id(2)

    @pl.when(k == 0)
    def _():
        acc_ref[...] = jnp.zeros_like(acc_ref)

    acc_ref[...] += jnp.dot(a_ref[...], b_ref[...],
                            preferred_element_type=jnp.float32)

    @pl.when(k == pl.num_programs(2) - 1)
    def _():
        out = acc_ref[...] + bias_ref[...]          # (tm, tn) + (1, tn)
        if apply_relu:
            out = jnp.maximum(out, 0.0)
        o_ref[...] = out.astype(o_ref.dtype)


def matmul_bias_act(a, b_packed, bias_packed, *, apply_relu, out_dtype, tk, tn=128):
    """a: (M, K) float; b_packed: (Kp, Np) bf16 pre-padded; bias_packed: (1, Np) f32.
    Returns the padded (Mp, Np) result; caller slices the valid region."""
    m, k = a.shape
    kp, np_ = b_packed.shape
    assert kp % tk == 0 and np_ % tn == 0
    tm = 128 if m >= 128 else _round_up(m, 8)
    mp = _round_up(m, tm)

    a_p = a.astype(jnp.bfloat16)
    if (mp, kp) != (m, k):
        a_p = jnp.pad(a_p, ((0, mp - m), (0, kp - k)))

    grid = (mp // tm, np_ // tn, kp // tk)
    kernel = functools.partial(_matmul_bias_kernel, apply_relu=apply_relu)

    return pl.pallas_call(
        kernel,
        out_shape=jax.ShapeDtypeStruct((mp, np_), out_dtype),
        grid_spec=pltpu.PrefetchScalarGridSpec(
            num_scalar_prefetch=0,
            grid=grid,
            in_specs=[
                pl.BlockSpec((tm, tk), lambda i, j, kk: (i, kk)),
                pl.BlockSpec((tk, tn), lambda i, j, kk: (kk, j)),
                pl.BlockSpec((1, tn), lambda i, j, kk: (0, j)),
            ],
            out_specs=pl.BlockSpec((tm, tn), lambda i, j, kk: (i, j)),
            scratch_shapes=[pltpu.VMEM((tm, tn), jnp.float32)],
        ),
        compiler_params=pltpu.CompilerParams(
            dimension_semantics=("parallel", "parallel", "arbitrary")),
    )(a_p, b_packed, bias_packed)


# ----------------------------------------------------------------------------
# Pallas kernel 2: fused  out = relu(x @ W1 + b1) @ W2 + b2
# (hidden activation lives only in the VMEM f32 scratch accumulator)
# ----------------------------------------------------------------------------
def _fused_dense_kernel(x_ref, w1_ref, b1_ref, w2_ref, b2_ref, o_ref, acc_ref):
    k = pl.program_id(0)

    @pl.when(k == 0)
    def _():
        acc_ref[...] = jnp.zeros_like(acc_ref)

    acc_ref[...] += jnp.dot(x_ref[...], w1_ref[...],
                            preferred_element_type=jnp.float32)

    @pl.when(k == pl.num_programs(0) - 1)
    def _():
        h = jnp.maximum(acc_ref[...] + b1_ref[...], 0.0)
        out = jnp.dot(h.astype(w2_ref.dtype), w2_ref[...],
                      preferred_element_type=jnp.float32)
        o_ref[...] = (out + b2_ref[...]).astype(o_ref.dtype)


def fused_dense(x, w1_p, b1_p, w2_p, b2_p, *, tk):
    """x: (M, K1); w1_p: (K1p, H) bf16; b1_p: (1, H) f32; w2_p: (H, N2p) bf16;
    b2_p: (1, N2p) f32.  Returns (Mp, N2p) f32."""
    m, k1 = x.shape
    k1p, h = w1_p.shape
    h2, n2p = w2_p.shape
    assert h == h2 and k1p % tk == 0
    mp = _round_up(max(m, 8), 8)

    x_p = x.astype(jnp.bfloat16)
    if (mp, k1p) != (m, k1):
        x_p = jnp.pad(x_p, ((0, mp - m), (0, k1p - k1)))

    nk = k1p // tk
    return pl.pallas_call(
        _fused_dense_kernel,
        out_shape=jax.ShapeDtypeStruct((mp, n2p), jnp.float32),
        grid_spec=pltpu.PrefetchScalarGridSpec(
            num_scalar_prefetch=0,
            grid=(nk,),
            in_specs=[
                pl.BlockSpec((mp, tk), lambda kk: (0, kk)),
                pl.BlockSpec((tk, h), lambda kk: (kk, 0)),
                pl.BlockSpec((1, h), lambda kk: (0, 0)),
                pl.BlockSpec((h, n2p), lambda kk: (0, 0)),
                pl.BlockSpec((1, n2p), lambda kk: (0, 0)),
            ],
            out_specs=pl.BlockSpec((mp, n2p), lambda kk: (0, 0)),
            scratch_shapes=[pltpu.VMEM((mp, h), jnp.float32)],
        ),
        compiler_params=pltpu.CompilerParams(
            dimension_semantics=("arbitrary",)),
    )(x_p, w1_p, b1_p, w2_p, b2_p)


# ----------------------------------------------------------------------------
# Conv-as-GEMM glue (patch extraction is one XLA op; GEMM is the Pallas kernel)
# ----------------------------------------------------------------------------
def _extract_patches(x, ksize, stride):
    # x: (N, S0, S1, C) channels-last.  Output feature dim is channel-major
    # (c, i0, i1) which matches w.reshape(Cout, Cin*k*k).
    patches = jax.lax.conv_general_dilated_patches(
        x,
        filter_shape=(ksize, ksize),
        window_strides=(stride, stride),
        padding="VALID",
        dimension_numbers=("NHWC", "OIHW", "NHWC"),
    )
    n, ho, wo, kdim = patches.shape
    return patches.reshape(n * ho * wo, kdim), ho, wo


def conv2d_relu(x, w_packed, b_packed, *, ksize, stride, cout, tk):
    n = x.shape[0]
    cols, ho, wo = _extract_patches(x, ksize, stride)
    out = matmul_bias_act(cols, w_packed, b_packed, apply_relu=True,
                          out_dtype=jnp.bfloat16, tk=tk)
    return out[:cols.shape[0], :cout].reshape(n, ho, wo, cout)


# ----------------------------------------------------------------------------
# One-time weight packing (run OUTSIDE the jitted forward)
# ----------------------------------------------------------------------------
_CONV_STRIDES = {"conv1": 4, "conv2": 2, "conv3": 1}


def pack_params(params):
    packed, meta = {}, {}

    def _pack(name, w_kn, bias):
        k, n = w_kn.shape
        kp, tk = _k_tiling(k)
        np_ = _round_up(n, 128)
        packed[name + "_w"] = (jnp.zeros((kp, np_), jnp.bfloat16)
                               .at[:k, :n].set(w_kn.astype(jnp.bfloat16)))
        packed[name + "_b"] = (jnp.zeros((1, np_), jnp.float32)
                               .at[0, :n].set(bias.astype(jnp.float32)))
        return tk

    for name, stride in _CONV_STRIDES.items():
        w = params[name + "_w"]                      # (Cout, Cin, kh, kw) PyTorch layout
        cout, cin, kh, kw = w.shape
        w_mat = w.reshape(cout, cin * kh * kw).T     # K ordered (cin, kh, kw)
        tk = _pack(name, w_mat, params[name + "_b"])
        meta[name] = dict(ksize=kh, stride=stride, cout=cout, tk=tk)

    tk1 = _pack("dense1", params["dense1_w"].T, params["dense1_b"])
    _pack("dense2", params["dense2_w"].T, params["dense2_b"])
    meta["dense"] = dict(act_n=params["dense2_w"].shape[0], tk=tk1)
    return packed, meta


# ----------------------------------------------------------------------------
# Full Net forward (jitted; `meta` holds static Python ints only)
# ----------------------------------------------------------------------------
def net_forward(packed, x_uint8, *, meta):
    if x_uint8.ndim == 3:                            # mirror `x[np.newaxis, :]`
        x_uint8 = x_uint8[None]
    n = x_uint8.shape[0]
    x = x_uint8.astype(jnp.float32) * (1.0 / 256.0)  # x / 256 (exact, also in bf16)
    # permute(0, 3, 2, 1): NHWC -> (N, C, W, H); channels-last equivalent (N, W, H, C)
    x = jnp.transpose(x, (0, 2, 1, 3)).astype(jnp.bfloat16)
    for name in ("conv1", "conv2", "conv3"):
        m = meta[name]
        x = conv2d_relu(x, packed[name + "_w"], packed[name + "_b"],
                        ksize=m["ksize"], stride=m["stride"],
                        cout=m["cout"], tk=m["tk"])
    # flatten in PyTorch NCHW order: (N, C, W', H') -> (N, C*W'*H')
    x = jnp.transpose(x, (0, 3, 1, 2)).reshape(n, -1)
    out = fused_dense(x, packed["dense1_w"], packed["dense1_b"],
                      packed["dense2_w"], packed["dense2_b"],
                      tk=meta["dense"]["tk"])
    return out[:n, :meta["dense"]["act_n"]]


# ----------------------------------------------------------------------------
# Pure-XLA f32 reference (mirrors the PyTorch module exactly) + params
# ----------------------------------------------------------------------------
def reference_forward(params, x_uint8):
    if x_uint8.ndim == 3:
        x_uint8 = x_uint8[None]
    x = x_uint8.astype(jnp.float32) / 256.0
    x = jnp.transpose(x, (0, 3, 2, 1))               # (N, C, W, H)

    def conv(y, w, b, s):
        y = jax.lax.conv_general_dilated(
            y, w, window_strides=(s, s), padding="VALID",
            dimension_numbers=("NCHW", "OIHW", "NCHW"))
        return jax.nn.relu(y + b[None, :, None, None])

    x = conv(x, params["conv1_w"], params["conv1_b"], 4)
    x = conv(x, params["conv2_w"], params["conv2_b"], 2)
    x = conv(x, params["conv3_w"], params["conv3_b"], 1)
    x = x.reshape(x.shape[0], -1)
    x = jax.nn.relu(x @ params["dense1_w"].T + params["dense1_b"])
    return x @ params["dense2_w"].T + params["dense2_b"]


def init_params(key, in_c, flat_dim, act_n):
    ks = jax.random.split(key, 10)
    r = lambda k, shape, s: jax.random.normal(k, shape, jnp.float32) * s
    return {
        "conv1_w": r(ks[0], (32, in_c, 8, 8), 0.05),
        "conv1_b": r(ks[1], (32,), 0.05),
        "conv2_w": r(ks[2], (64, 32, 4, 4), 0.05),
        "conv2_b": r(ks[3], (64,), 0.05),
        "conv3_w": r(ks[4], (64, 64, 3, 3), 0.05),
        "conv3_b": r(ks[5], (64,), 0.05),
        "dense1_w": r(ks[6], (512, flat_dim), 0.02),   # PyTorch Linear: (out, in)
        "dense1_b": r(ks[7], (512,), 0.02),
        "dense2_w": r(ks[8], (act_n, 512), 0.02),
        "dense2_b": r(ks[9], (act_n,), 0.02),
    }


if __name__ == "__main__":
    # Small "Atari-like" env: observation (H, W, C) = (60, 52, 3), 6 actions -> act_n = 5.
    H, W, C = 60, 52, 3
    N_BATCH = 2
    ACT_N = 5

    co = lambda s, k, st: (s - k) // st + 1
    w1, h1 = co(W, 8, 4), co(H, 8, 4)
    w2, h2 = co(w1, 4, 2), co(h1, 4, 2)
    w3, h3 = co(w2, 3, 1), co(h2, 3, 1)
    flat_dim = 64 * w3 * h3                       # analogue of 22528 at full Atari size

    key = jax.random.PRNGKey(0)
    kx, kp = jax.random.split(key)
    x = jax.random.randint(kx, (N_BATCH, H, W, C), 0, 256, dtype=jnp.int32).astype(jnp.uint8)
    params = init_params(kp, C, flat_dim, ACT_N)

    packed, meta = pack_params(params)            # one-time bf16 weight packing
    fwd = jax.jit(functools.partial(net_forward, meta=meta))
    out = fwd(packed, x)
    jax.block_until_ready(out)
    assert out.shape == (N_BATCH, ACT_N) and out.dtype == jnp.float32

    ref = jax.jit(reference_forward)(params, x)
    err = float(jnp.max(jnp.abs(out - ref)) / (jnp.max(jnp.abs(ref)) + 1e-8))
    assert err < 0.1, f"mismatch vs f32 reference: normalized max err {err}"
    print("KERNEL_OK")
</pallas_src>

<mosaic_0001>
module attributes {stable_mosaic.version = 11 : i64} {
  func.func @_matmul_bias_kernel(%arg0: i32, %arg1: i32, %arg2: i32, %arg3: memref<128x256xbf16, #tpu.memory_space<vmem>>, %arg4: memref<256x128xbf16, #tpu.memory_space<vmem>>, %arg5: memref<1x128xf32, #tpu.memory_space<vmem>>, %arg6: memref<128x128xbf16, #tpu.memory_space<vmem>>, %arg7: memref<128x128xf32, #tpu.memory_space<vmem>>) attributes {dimension_semantics = [#tpu.dimension_semantics<parallel>, #tpu.dimension_semantics<parallel>, #tpu.dimension_semantics<arbitrary>], iteration_bounds = array<i64: 3, 1, 1>, scalar_prefetch = 0 : i64, scratch_operands = 1 : i64, tpu.core_type = #tpu.core_type<tc>, window_params = [{transform_indices = @transform_0, window_bounds = array<i64: 128, 256>}, {transform_indices = @transform_1, window_bounds = array<i64: 256, 128>}, {transform_indices = @transform_2, window_bounds = array<i64: 1, 128>}, {transform_indices = @transform_3, window_bounds = array<i64: 128, 128>}]} {
    %c0_i32 = arith.constant 0 : i32
    %0 = arith.cmpi eq, %arg2, %c0_i32 : i32
    %1 = arith.extui %0 : i1 to i32
    %c0_i32_0 = arith.constant 0 : i32
    %2 = arith.cmpi ne, %1, %c0_i32_0 : i32
    scf.if %2 {
      %cst_10 = arith.constant 0.000000e+00 : f32
      %12 = vector.broadcast %cst_10 : f32 to vector<128x128xf32>
      %c0_11 = arith.constant 0 : index
      %c0_12 = arith.constant 0 : index
      %13 = vector.load %arg7[%c0_11, %c0_12] : memref<128x128xf32, #tpu.memory_space<vmem>>, vector<128x128xf32>
      tpu.vector_store %arg7[%c0_11, %c0_12], %12 {strides = array<i32>} : memref<128x128xf32, #tpu.memory_space<vmem>>, vector<128x128xf32>,
    } else {
    }
    %c0 = arith.constant 0 : index
    %c0_1 = arith.constant 0 : index
    %3 = vector.load %arg7[%c0, %c0_1] : memref<128x128xf32, #tpu.memory_space<vmem>>, vector<128x128xf32>
    %c0_2 = arith.constant 0 : index
    %c0_3 = arith.constant 0 : index
    %4 = vector.load %arg3[%c0_2, %c0_3] : memref<128x256xbf16, #tpu.memory_space<vmem>>, vector<128x256xbf16>
    %c0_4 = arith.constant 0 : index
    %c0_5 = arith.constant 0 : index
    %5 = vector.load %arg4[%c0_4, %c0_5] : memref<256x128xbf16, #tpu.memory_space<vmem>>, vector<256x128xbf16>
    %cst = arith.constant dense<0.000000e+00> : vector<128x128xf32>
    %6 = tpu.matmul %4, %5, %cst {dimension_numbers = #tpu.dot_dimension_numbers<[1], [0], [0], [1], [0, 0, 1, 1], [], []>} : vector<128x256xbf16>, vector<256x128xbf16>, vector<128x128xf32> -> vector<128x128xf32>
    %7 = arith.addf %3, %6 : vector<128x128xf32>
    %c0_6 = arith.constant 0 : index
    %c0_7 = arith.constant 0 : index
    %8 = vector.load %arg7[%c0_6, %c0_7] : memref<128x128xf32, #tpu.memory_space<vmem>>, vector<128x128xf32>
    tpu.vector_store %arg7[%c0_6, %c0_7], %7 {strides = array<i32>} : memref<128x128xf32, #tpu.memory_space<vmem>>, vector<128x128xf32>,
    %c0_i32_8 = arith.constant 0 : i32
    %9 = arith.cmpi eq, %arg2, %c0_i32_8 : i32
    %10 = arith.extui %9 : i1 to i32
    %c0_i32_9 = arith.constant 0 : i32
    %11 = arith.cmpi ne, %10, %c0_i32_9 : i32
    scf.if %11 {
      %c0_10 = arith.constant 0 : index
      %c0_11 = arith.constant 0 : index
      %12 = vector.load %arg7[%c0_10, %c0_11] : memref<128x128xf32, #tpu.memory_space<vmem>>, vector<128x128xf32>
      %c0_12 = arith.constant 0 : index
      %c0_13 = arith.constant 0 : index
      %13 = vector.load %arg5[%c0_12, %c0_13] : memref<1x128xf32, #tpu.memory_space<vmem>>, vector<1x128xf32>
      %14 = vector.broadcast %13 : vector<1x128xf32> to vector<128x128xf32>
      %15 = arith.addf %12, %14 : vector<128x128xf32>
      %cst_14 = arith.constant 0.000000e+00 : f32
      %16 = vector.broadcast %cst_14 : f32 to vector<128x128xf32>
      %17 = arith.maximumf %15, %16 : vector<128x128xf32>
      %18 = arith.truncf %17 : vector<128x128xf32> to vector<128x128xbf16>
      %c0_15 = arith.constant 0 : index
      %c0_16 = arith.constant 0 : index
      %19 = vector.load %arg6[%c0_15, %c0_16] : memref<128x128xbf16, #tpu.memory_space<vmem>>, vector<128x128xbf16>
      tpu.vector_store %arg6[%c0_15, %c0_16], %18 {strides = array<i32>} : memref<128x128xbf16, #tpu.memory_space<vmem>>, vector<128x128xbf16>,
    } else {
    }
    return
  }
  func.func @transform_0(%arg0: i32, %arg1: i32, %arg2: i32) -> (i32, i32) {
    %c0_i32 = arith.constant 0 : i32
    return %arg0, %arg2 : i32, i32
  }
  func.func @transform_1(%arg0: i32, %arg1: i32, %arg2: i32) -> (i32, i32) {
    %c0_i32 = arith.constant 0 : i32
    return %arg2, %arg1 : i32, i32
  }
  func.func @transform_2(%arg0: i32, %arg1: i32, %arg2: i32) -> (i32, i32) {
    %c0_i32 = arith.constant 0 : i32
    %c0_i32_0 = arith.constant 0 : i32
    return %c0_i32, %arg1 : i32, i32
  }
  func.func @transform_3(%arg0: i32, %arg1: i32, %arg2: i32) -> (i32, i32) {
    %c0_i32 = arith.constant 0 : i32
    return %arg0, %arg1 : i32, i32
  }
}

module attributes {stable_mosaic.version = 11 : i64} {
  func.func @_matmul_bias_kernel(%arg0: i32, %arg1: i32, %arg2: i32, %arg3: memref<64x512xbf16, #tpu.memory_space<vmem>>, %arg4: memref<512x128xbf16, #tpu.memory_space<vmem>>, %arg5: memref<1x128xf32, #tpu.memory_space<vmem>>, %arg6: memref<64x128xbf16, #tpu.memory_space<vmem>>, %arg7: memref<64x128xf32, #tpu.memory_space<vmem>>) attributes {dimension_semantics = [#tpu.dimension_semantics<parallel>, #tpu.dimension_semantics<parallel>, #tpu.dimension_semantics<arbitrary>], iteration_bounds = array<i64: 1, 1, 1>, scalar_prefetch = 0 : i64, scratch_operands = 1 : i64, tpu.core_type = #tpu.core_type<tc>, window_params = [{transform_indices = @transform_0, window_bounds = array<i64: 64, 512>}, {transform_indices = @transform_1, window_bounds = array<i64: 512, 128>}, {transform_indices = @transform_2, window_bounds = array<i64: 1, 128>}, {transform_indices = @transform_3, window_bounds = array<i64: 64, 128>}]} {
    %c0_i32 = arith.constant 0 : i32
    %0 = arith.cmpi eq, %arg2, %c0_i32 : i32
    %1 = arith.extui %0 : i1 to i32
    %c0_i32_0 = arith.constant 0 : i32
    %2 = arith.cmpi ne, %1, %c0_i32_0 : i32
    scf.if %2 {
      %cst_10 = arith.constant 0.000000e+00 : f32
      %12 = vector.broadcast %cst_10 : f32 to vector<64x128xf32>
      %c0_11 = arith.constant 0 : index
      %c0_12 = arith.constant 0 : index
      %13 = vector.load %arg7[%c0_11, %c0_12] : memref<64x128xf32, #tpu.memory_space<vmem>>, vector<64x128xf32>
      tpu.vector_store %arg7[%c0_11, %c0_12], %12 {strides = array<i32>} : memref<64x128xf32, #tpu.memory_space<vmem>>, vector<64x128xf32>,
    } else {
    }
    %c0 = arith.constant 0 : index
    %c0_1 = arith.constant 0 : index
    %3 = vector.load %arg7[%c0, %c0_1] : memref<64x128xf32, #tpu.memory_space<vmem>>, vector<64x128xf32>
    %c0_2 = arith.constant 0 : index
    %c0_3 = arith.constant 0 : index
    %4 = vector.load %arg3[%c0_2, %c0_3] : memref<64x512xbf16, #tpu.memory_space<vmem>>, vector<64x512xbf16>
    %c0_4 = arith.constant 0 : index
    %c0_5 = arith.constant 0 : index
    %5 = vector.load %arg4[%c0_4, %c0_5] : memref<512x128xbf16, #tpu.memory_space<vmem>>, vector<512x128xbf16>
    %cst = arith.constant dense<0.000000e+00> : vector<64x128xf32>
    %6 = tpu.matmul %4, %5, %cst {dimension_numbers = #tpu.dot_dimension_numbers<[1], [0], [0], [1], [0, 0, 1, 1], [], []>} : vector<64x512xbf16>, vector<512x128xbf16>, vector<64x128xf32> -> vector<64x128xf32>
    %7 = arith.addf %3, %6 : vector<64x128xf32>
    %c0_6 = arith.constant 0 : index
    %c0_7 = arith.constant 0 : index
    %8 = vector.load %arg7[%c0_6, %c0_7] : memref<64x128xf32, #tpu.memory_space<vmem>>, vector<64x128xf32>
    tpu.vector_store %arg7[%c0_6, %c0_7], %7 {strides = array<i32>} : memref<64x128xf32, #tpu.memory_space<vmem>>, vector<64x128xf32>,
    %c0_i32_8 = arith.constant 0 : i32
    %9 = arith.cmpi eq, %arg2, %c0_i32_8 : i32
    %10 = arith.extui %9 : i1 to i32
    %c0_i32_9 = arith.constant 0 : i32
    %11 = arith.cmpi ne, %10, %c0_i32_9 : i32
    scf.if %11 {
      %c0_10 = arith.constant 0 : index
      %c0_11 = arith.constant 0 : index
      %12 = vector.load %arg7[%c0_10, %c0_11] : memref<64x128xf32, #tpu.memory_space<vmem>>, vector<64x128xf32>
      %c0_12 = arith.constant 0 : index
      %c0_13 = arith.constant 0 : index
      %13 = vector.load %arg5[%c0_12, %c0_13] : memref<1x128xf32, #tpu.memory_space<vmem>>, vector<1x128xf32>
      %14 = vector.broadcast %13 : vector<1x128xf32> to vector<64x128xf32>
      %15 = arith.addf %12, %14 : vector<64x128xf32>
      %cst_14 = arith.constant 0.000000e+00 : f32
      %16 = vector.broadcast %cst_14 : f32 to vector<64x128xf32>
      %17 = arith.maximumf %15, %16 : vector<64x128xf32>
      %18 = arith.truncf %17 : vector<64x128xf32> to vector<64x128xbf16>
      %c0_15 = arith.constant 0 : index
      %c0_16 = arith.constant 0 : index
      %19 = vector.load %arg6[%c0_15, %c0_16] : memref<64x128xbf16, #tpu.memory_space<vmem>>, vector<64x128xbf16>
      tpu.vector_store %arg6[%c0_15, %c0_16], %18 {strides = array<i32>} : memref<64x128xbf16, #tpu.memory_space<vmem>>, vector<64x128xbf16>,
    } else {
    }
    return
  }
  func.func @transform_0(%arg0: i32, %arg1: i32, %arg2: i32) -> (i32, i32) {
    %c0_i32 = arith.constant 0 : i32
    return %arg0, %arg2 : i32, i32
  }
  func.func @transform_1(%arg0: i32, %arg1: i32, %arg2: i32) -> (i32, i32) {
    %c0_i32 = arith.constant 0 : i32
    return %arg2, %arg1 : i32, i32
  }
  func.func @transform_2(%arg0: i32, %arg1: i32, %arg2: i32) -> (i32, i32) {
    %c0_i32 = arith.constant 0 : i32
    %c0_i32_0 = arith.constant 0 : i32
    return %c0_i32, %arg1 : i32, i32
  }
  func.func @transform_3(%arg0: i32, %arg1: i32, %arg2: i32) -> (i32, i32) {
    %c0_i32 = arith.constant 0 : i32
    return %arg0, %arg1 : i32, i32
  }
}

module attributes {stable_mosaic.version = 11 : i64} {
  func.func @_matmul_bias_kernel(%arg0: i32, %arg1: i32, %arg2: i32, %arg3: memref<24x640xbf16, #tpu.memory_space<vmem>>, %arg4: memref<640x128xbf16, #tpu.memory_space<vmem>>, %arg5: memref<1x128xf32, #tpu.memory_space<vmem>>, %arg6: memref<24x128xbf16, #tpu.memory_space<vmem>>, %arg7: memref<24x128xf32, #tpu.memory_space<vmem>>) attributes {dimension_semantics = [#tpu.dimension_semantics<parallel>, #tpu.dimension_semantics<parallel>, #tpu.dimension_semantics<arbitrary>], iteration_bounds = array<i64: 1, 1, 1>, scalar_prefetch = 0 : i64, scratch_operands = 1 : i64, tpu.core_type = #tpu.core_type<tc>, window_params = [{transform_indices = @transform_0, window_bounds = array<i64: 24, 640>}, {transform_indices = @transform_1, window_bounds = array<i64: 640, 128>}, {transform_indices = @transform_2, window_bounds = array<i64: 1, 128>}, {transform_indices = @transform_3, window_bounds = array<i64: 24, 128>}]} {
    %c0_i32 = arith.constant 0 : i32
    %0 = arith.cmpi eq, %arg2, %c0_i32 : i32
    %1 = arith.extui %0 : i1 to i32
    %c0_i32_0 = arith.constant 0 : i32
    %2 = arith.cmpi ne, %1, %c0_i32_0 : i32
    scf.if %2 {
      %cst_10 = arith.constant 0.000000e+00 : f32
      %12 = vector.broadcast %cst_10 : f32 to vector<24x128xf32>
      %c0_11 = arith.constant 0 : index
      %c0_12 = arith.constant 0 : index
      %13 = vector.load %arg7[%c0_11, %c0_12] : memref<24x128xf32, #tpu.memory_space<vmem>>, vector<24x128xf32>
      tpu.vector_store %arg7[%c0_11, %c0_12], %12 {strides = array<i32>} : memref<24x128xf32, #tpu.memory_space<vmem>>, vector<24x128xf32>,
    } else {
    }
    %c0 = arith.constant 0 : index
    %c0_1 = arith.constant 0 : index
    %3 = vector.load %arg7[%c0, %c0_1] : memref<24x128xf32, #tpu.memory_space<vmem>>, vector<24x128xf32>
    %c0_2 = arith.constant 0 : index
    %c0_3 = arith.constant 0 : index
    %4 = vector.load %arg3[%c0_2, %c0_3] : memref<24x640xbf16, #tpu.memory_space<vmem>>, vector<24x640xbf16>
    %c0_4 = arith.constant 0 : index
    %c0_5 = arith.constant 0 : index
    %5 = vector.load %arg4[%c0_4, %c0_5] : memref<640x128xbf16, #tpu.memory_space<vmem>>, vector<640x128xbf16>
    %cst = arith.constant dense<0.000000e+00> : vector<24x128xf32>
    %6 = tpu.matmul %4, %5, %cst {dimension_numbers = #tpu.dot_dimension_numbers<[1], [0], [0], [1], [0, 0, 1, 1], [], []>} : vector<24x640xbf16>, vector<640x128xbf16>, vector<24x128xf32> -> vector<24x128xf32>
    %7 = arith.addf %3, %6 : vector<24x128xf32>
    %c0_6 = arith.constant 0 : index
    %c0_7 = arith.constant 0 : index
    %8 = vector.load %arg7[%c0_6, %c0_7] : memref<24x128xf32, #tpu.memory_space<vmem>>, vector<24x128xf32>
    tpu.vector_store %arg7[%c0_6, %c0_7], %7 {strides = array<i32>} : memref<24x128xf32, #tpu.memory_space<vmem>>, vector<24x128xf32>,
    %c0_i32_8 = arith.constant 0 : i32
    %9 = arith.cmpi eq, %arg2, %c0_i32_8 : i32
    %10 = arith.extui %9 : i1 to i32
    %c0_i32_9 = arith.constant 0 : i32
    %11 = arith.cmpi ne, %10, %c0_i32_9 : i32
    scf.if %11 {
      %c0_10 = arith.constant 0 : index
      %c0_11 = arith.constant 0 : index
      %12 = vector.load %arg7[%c0_10, %c0_11] : memref<24x128xf32, #tpu.memory_space<vmem>>, vector<24x128xf32>
      %c0_12 = arith.constant 0 : index
      %c0_13 = arith.constant 0 : index
      %13 = vector.load %arg5[%c0_12, %c0_13] : memref<1x128xf32, #tpu.memory_space<vmem>>, vector<1x128xf32>
      %14 = vector.broadcast %13 : vector<1x128xf32> to vector<24x128xf32>
      %15 = arith.addf %12, %14 : vector<24x128xf32>
      %cst_14 = arith.constant 0.000000e+00 : f32
      %16 = vector.broadcast %cst_14 : f32 to vector<24x128xf32>
      %17 = arith.maximumf %15, %16 : vector<24x128xf32>
      %18 = arith.truncf %17 : vector<24x128xf32> to vector<24x128xbf16>
      %c0_15 = arith.constant 0 : index
      %c0_16 = arith.constant 0 : index
      %19 = vector.load %arg6[%c0_15, %c0_16] : memref<24x128xbf16, #tpu.memory_space<vmem>>, vector<24x128xbf16>
      tpu.vector_store %arg6[%c0_15, %c0_16], %18 {strides = array<i32>} : memref<24x128xbf16, #tpu.memory_space<vmem>>, vector<24x128xbf16>,
    } else {
    }
    return
  }
  func.func @transform_0(%arg0: i32, %arg1: i32, %arg2: i32) -> (i32, i32) {
    %c0_i32 = arith.constant 0 : i32
    return %arg0, %arg2 : i32, i32
  }
  func.func @transform_1(%arg0: i32, %arg1: i32, %arg2: i32) -> (i32, i32) {
    %c0_i32 = arith.constant 0 : i32
    return %arg2, %arg1 : i32, i32
  }
  func.func @transform_2(%arg0: i32, %arg1: i32, %arg2: i32) -> (i32, i32) {
    %c0_i32 = arith.constant 0 : i32
    %c0_i32_0 = arith.constant 0 : i32
    return %c0_i32, %arg1 : i32, i32
  }
  func.func @transform_3(%arg0: i32, %arg1: i32, %arg2: i32) -> (i32, i32) {
    %c0_i32 = arith.constant 0 : i32
    return %arg0, %arg1 : i32, i32
  }
}

module attributes {stable_mosaic.version = 11 : i64} {
  func.func @_fused_dense_kernel(%arg0: i32, %arg1: memref<8x768xbf16, #tpu.memory_space<vmem>>, %arg2: memref<768x512xbf16, #tpu.memory_space<vmem>>, %arg3: memref<1x512xf32, #tpu.memory_space<vmem>>, %arg4: memref<512x128xbf16, #tpu.memory_space<vmem>>, %arg5: memref<1x128xf32, #tpu.memory_space<vmem>>, %arg6: memref<8x128xf32, #tpu.memory_space<vmem>>, %arg7: memref<8x512xf32, #tpu.memory_space<vmem>>) attributes {dimension_semantics = [#tpu.dimension_semantics<arbitrary>], iteration_bounds = array<i64: 1>, scalar_prefetch = 0 : i64, scratch_operands = 1 : i64, tpu.core_type = #tpu.core_type<tc>, window_params = [{transform_indices = @transform_0, window_bounds = array<i64: 8, 768>}, {transform_indices = @transform_1, window_bounds = array<i64: 768, 512>}, {pipeline_mode = #tpu.pipeline_mode<synchronous>, transform_indices = @transform_2, window_bounds = array<i64: 1, 512>}, {pipeline_mode = #tpu.pipeline_mode<synchronous>, transform_indices = @transform_3, window_bounds = array<i64: 512, 128>}, {pipeline_mode = #tpu.pipeline_mode<synchronous>, transform_indices = @transform_4, window_bounds = array<i64: 1, 128>}, {pipeline_mode = #tpu.pipeline_mode<synchronous>, transform_indices = @transform_5, window_bounds = array<i64: 8, 128>}]} {
    %c0_i32 = arith.constant 0 : i32
    %0 = arith.cmpi eq, %arg0, %c0_i32 : i32
    %1 = arith.extui %0 : i1 to i32
    %c0_i32_0 = arith.constant 0 : i32
    %2 = arith.cmpi ne, %1, %c0_i32_0 : i32
    scf.if %2 {
      %cst_10 = arith.constant 0.000000e+00 : f32
      %12 = vector.broadcast %cst_10 : f32 to vector<8x512xf32>
      %c0_11 = arith.constant 0 : index
      %c0_12 = arith.constant 0 : index
      %13 = vector.load %arg7[%c0_11, %c0_12] : memref<8x512xf32, #tpu.memory_space<vmem>>, vector<8x512xf32>
      tpu.vector_store %arg7[%c0_11, %c0_12], %12 {strides = array<i32>} : memref<8x512xf32, #tpu.memory_space<vmem>>, vector<8x512xf32>,
    } else {
    }
    %c0 = arith.constant 0 : index
    %c0_1 = arith.constant 0 : index
    %3 = vector.load %arg7[%c0, %c0_1] : memref<8x512xf32, #tpu.memory_space<vmem>>, vector<8x512xf32>
    %c0_2 = arith.constant 0 : index
    %c0_3 = arith.constant 0 : index
    %4 = vector.load %arg1[%c0_2, %c0_3] : memref<8x768xbf16, #tpu.memory_space<vmem>>, vector<8x768xbf16>
    %c0_4 = arith.constant 0 : index
    %c0_5 = arith.constant 0 : index
    %5 = vector.load %arg2[%c0_4, %c0_5] : memref<768x512xbf16, #tpu.memory_space<vmem>>, vector<768x512xbf16>
    %cst = arith.constant dense<0.000000e+00> : vector<8x512xf32>
    %6 = tpu.matmul %4, %5, %cst {dimension_numbers = #tpu.dot_dimension_numbers<[1], [0], [0], [1], [0, 0, 1, 1], [], []>} : vector<8x768xbf16>, vector<768x512xbf16>, vector<8x512xf32> -> vector<8x512xf32>
    %7 = arith.addf %3, %6 : vector<8x512xf32>
    %c0_6 = arith.constant 0 : index
    %c0_7 = arith.constant 0 : index
    %8 = vector.load %arg7[%c0_6, %c0_7] : memref<8x512xf32, #tpu.memory_space<vmem>>, vector<8x512xf32>
    tpu.vector_store %arg7[%c0_6, %c0_7], %7 {strides = array<i32>} : memref<8x512xf32, #tpu.memory_space<vmem>>, vector<8x512xf32>,
    %c0_i32_8 = arith.constant 0 : i32
    %9 = arith.cmpi eq, %arg0, %c0_i32_8 : i32
    %10 = arith.extui %9 : i1 to i32
    %c0_i32_9 = arith.constant 0 : i32
    %11 = arith.cmpi ne, %10, %c0_i32_9 : i32
    scf.if %11 {
      %c0_10 = arith.constant 0 : index
      %c0_11 = arith.constant 0 : index
      %12 = vector.load %arg7[%c0_10, %c0_11] : memref<8x512xf32, #tpu.memory_space<vmem>>, vector<8x512xf32>
      %c0_12 = arith.constant 0 : index
      %c0_13 = arith.constant 0 : index
      %13 = vector.load %arg3[%c0_12, %c0_13] : memref<1x512xf32, #tpu.memory_space<vmem>>, vector<1x512xf32>
      %14 = vector.broadcast %13 : vector<1x512xf32> to vector<8x512xf32>
      %15 = arith.addf %12, %14 : vector<8x512xf32>
      %cst_14 = arith.constant 0.000000e+00 : f32
      %16 = vector.broadcast %cst_14 : f32 to vector<8x512xf32>
      %17 = arith.maximumf %15, %16 : vector<8x512xf32>
      %18 = arith.truncf %17 : vector<8x512xf32> to vector<8x512xbf16>
      %c0_15 = arith.constant 0 : index
      %c0_16 = arith.constant 0 : index
      %19 = vector.load %arg4[%c0_15, %c0_16] : memref<512x128xbf16, #tpu.memory_space<vmem>>, vector<512x128xbf16>
      %cst_17 = arith.constant dense<0.000000e+00> : vector<8x128xf32>
      %20 = tpu.matmul %18, %19, %cst_17 {dimension_numbers = #tpu.dot_dimension_numbers<[1], [0], [0], [1], [0, 0, 1, 1], [], []>} : vector<8x512xbf16>, vector<512x128xbf16>, vector<8x128xf32> -> vector<8x128xf32>
      %c0_18 = arith.constant 0 : index
      %c0_19 = arith.constant 0 : index
      %21 = vector.load %arg5[%c0_18, %c0_19] : memref<1x128xf32, #tpu.memory_space<vmem>>, vector<1x128xf32>
      %22 = vector.broadcast %21 : vector<1x128xf32> to vector<8x128xf32>
      %23 = arith.addf %20, %22 : vector<8x128xf32>
      %c0_20 = arith.constant 0 : index
      %c0_21 = arith.constant 0 : index
      %24 = vector.load %arg6[%c0_20, %c0_21] : memref<8x128xf32, #tpu.memory_space<vmem>>, vector<8x128xf32>
      tpu.vector_store %arg6[%c0_20, %c0_21], %23 {strides = array<i32>} : memref<8x128xf32, #tpu.memory_space<vmem>>, vector<8x128xf32>,
    } else {
    }
    return
  }
  func.func @transform_0(%arg0: i32) -> (i32, i32) {
    %c0_i32 = arith.constant 0 : i32
    %c0_i32_0 = arith.constant 0 : i32
    return %c0_i32, %arg0 : i32, i32
  }
  func.func @transform_1(%arg0: i32) -> (i32, i32) {
    %c0_i32 = arith.constant 0 : i32
    %c0_i32_0 = arith.constant 0 : i32
    return %arg0, %c0_i32 : i32, i32
  }
  func.func @transform_2(%arg0: i32) -> (i32, i32) {
    %c0_i32 = arith.constant 0 : i32
    %c0_i32_0 = arith.constant 0 : i32
    %c0_i32_1 = arith.constant 0 : i32
    return %c0_i32, %c0_i32_0 : i32, i32
  }
  func.func @transform_3(%arg0: i32) -> (i32, i32) {
    %c0_i32 = arith.constant 0 : i32
    %c0_i32_0 = arith.constant 0 : i32
    %c0_i32_1 = arith.constant 0 : i32
    return %c0_i32, %c0_i32_0 : i32, i32
  }
  func.func @transform_4(%arg0: i32) -> (i32, i32) {
    %c0_i32 = arith.constant 0 : i32
    %c0_i32_0 = arith.constant 0 : i32
    %c0_i32_1 = arith.constant 0 : i32
    return %c0_i32, %c0_i32_0 : i32, i32
  }
  func.func @transform_5(%arg0: i32) -> (i32, i32) {
    %c0_i32 = arith.constant 0 : i32
    %c0_i32_0 = arith.constant 0 : i32
    %c0_i32_1 = arith.constant 0 : i32
    return %c0_i32, %c0_i32_0 : i32, i32
  }
}

</mosaic_0001>

<llo_original>
// kernel: net_forward.4
$region0: #{net_forward.4}
  #allocation0 [shape = 'u32[]', space=smem, size = 0x4, offset = 0x4, fixed_abs, tag = 'smem constant byte address 0x4 - core index']
  #allocation1 [shape = 'u32[144,128]{1,0:T(1,128)}', space=vmem, size = 0x12000, scoped, tag = 'internal scratch']
  #allocation2 [shape = 'f32[128,128]{1,0:T(8,128)}', space=vmem, size = 0x10000, scoped, tag = 'scratch operand']
  %s0 = inlined_call_operand.vmem [shape: bf16[384,256], index: 0, kind: input, shape index: {}]
  %s1 = inlined_call_operand.vmem [shape: bf16[256,128], index: 1, kind: input, shape index: {}]
  %s2 = inlined_call_operand.vmem [shape: f32[1,128], index: 2, kind: input, shape index: {}]
  %s3 = inlined_call_operand.vmem [shape: bf16[384,128], index: 3, kind: output, shape index: {}]
  %s4 = sld [smem:[#allocation0]]
  $region53: #{net_forward.4} parent=0
    _
  %s6 = ssub.s32 1, %s4
  %s7 = scalar_select 0, %s6, %s4
  loop: start=0, step=1, limit=5
  $region2: #{net_forward.4} parent=0 // loop_pre_header
    _
  $region3: #{net_forward.4} parent=0 // loop_header
    %s9 = sphi 0, %s13
    %p10 = scmp.ge.s32.totalorder %s9, 5
    %s16 = sphi 0, %s35
    %s17 = sphi 0, %s31
    %s18 = sphi 0, %s27
    %s19 = sphi 0, %s16
    %s20 = sphi 0, %s17
    %s21 = sphi 0, %s18
    %s22 = sphi 0, %s19
    %s23 = sphi 0, %s20
    %s24 = sphi 0, %s21
    %s40 = sphi 0, %s42
    %s43 = sphi 0, %s40
    %s44 = sphi 0, %s43
    %s60 = sphi 0, %s44
    %s68 = sphi 0, %s70
    %s71 = sphi 0, %s68
    %s72 = sphi 0, %s71
    %s88 = sphi 0, %s72
    %s94 = sphi 0, %s96
    %s97 = sphi 0, %s94
    %s98 = sphi 0, %s97
    %s114 = sphi 0, %s98
    %s122 = sphi 0, %s124
    %s125 = sphi 0, %s122
    %s126 = sphi 0, %s125
    %s142 = sphi 0, %s126
  $region4: #{net_forward.4} parent=0 // loop_header_branch
    %12 = sbr.rel (%p10) target = $region8
  $region5: #{net_forward.4} parent=0 // loop_body
    %s14 = ssub.s32 %s9, 1
    %s15 = ssub.s32 %s9, 2
    %s25 = sadd.s32 1, %s18
    %p26 = scmp.ge.s32.totalorder %s25, 1
    %s27 = scalar_select %p26, 0, %s25
    %s28 = sadd.s32 1, %s17
    %s29 = scalar_select %p26, %s28, %s17
    %p30 = scmp.ge.s32.totalorder %s29, 1
    %s31 = scalar_select %p30, 0, %s29
    %s32 = sadd.s32 1, %s16
    %s33 = scalar_select %p30, %s32, %s16
    %p34 = scmp.ge.s32.totalorder %s33, 3
    %s35 = scalar_select %p34, 0, %s33
    %s36 = ssub.s32 %s16, %s35
    %s37 = ssub.s32 %s18, %s27
    %s38 = sor.u32 %s36, %s37
    %p39 = scmp.eq.s32.totalorder %s38, 0
    %s41 = sadd.s32 %s40, 1
    %s42 = scalar_select %p39, %s40, %s41
    %p45 = pneg %p39
    %p46 = scmp.eq.s32.totalorder %s9, 2
    %p47 = por %p45, %p46
    %p48 = scmp.ne.s32.totalorder %s40, %s43
    %p49 = scmp.eq.s32.totalorder %s9, 0
    %p50 = por %p48, %p49
    %p51 = scmp.ne.s32.totalorder %s40, %s43
    %p52 = scmp.eq.s32.totalorder %s14, 2
    %p53 = por %p51, %p52
    %p54 = scmp.ne.s32.totalorder %s43, %s44
    %p55 = scmp.eq.s32.totalorder %s14, 0
    %p56 = por %p54, %p55
    %p57 = scmp.ne.s32.totalorder %s43, %s44
    %p58 = scmp.eq.s32.totalorder %s15, 2
    %p59 = por %p57, %p58
    %p61 = scmp.ne.s32.totalorder %s44, %s60
    %p62 = scmp.eq.s32.totalorder %s15, 0
    %p63 = por %p61, %p62
    %s64 = ssub.s32 %s18, %s27
    %s65 = ssub.s32 %s17, %s31
    %s66 = sor.u32 %s64, %s65
    %p67 = scmp.eq.s32.totalorder %s66, 0
    %s69 = sadd.s32 %s68, 1
    %s70 = scalar_select %p67, %s68, %s69
    %p73 = pneg %p67
    %p74 = scmp.eq.s32.totalorder %s9, 2
    %p75 = por %p73, %p74
    %p76 = scmp.ne.s32.totalorder %s68, %s71
    %p77 = scmp.eq.s32.totalorder %s9, 0
    %p78 = por %p76, %p77
    %p79 = scmp.ne.s32.totalorder %s68, %s71
    %p80 = scmp.eq.s32.totalorder %s14, 2
    %p81 = por %p79, %p80
    %p82 = scmp.ne.s32.totalorder %s71, %s72
    %p83 = scmp.eq.s32.totalorder %s14, 0
    %p84 = por %p82, %p83
    %p85 = scmp.ne.s32.totalorder %s71, %s72
    %p86 = scmp.eq.s32.totalorder %s15, 2
    %p87 = por %p85, %p86
    %p89 = scmp.ne.s32.totalorder %s72, %s88
    %p90 = scmp.eq.s32.totalorder %s15, 0
    %p91 = por %p89, %p90
    %s92 = ssub.s32 %s17, %s31
    %p93 = scmp.eq.s32.totalorder %s92, 0
    %s95 = sadd.s32 %s94, 1
    %s96 = scalar_select %p93, %s94, %s95
    %p99 = pneg %p93
    %p100 = scmp.eq.s32.totalorder %s9, 2
    %p101 = por %p99, %p100
    %p102 = scmp.ne.s32.totalorder %s94, %s97
    %p103 = scmp.eq.s32.totalorder %s9, 0
    %p104 = por %p102, %p103
    %p105 = scmp.ne.s32.totalorder %s94, %s97
    %p106 = scmp.eq.s32.totalorder %s14, 2
    %p107 = por %p105, %p106
    %p108 = scmp.ne.s32.totalorder %s97, %s98
    %p109 = scmp.eq.s32.totalorder %s14, 0
    %p110 = por %p108, %p109
    %p111 = scmp.ne.s32.totalorder %s97, %s98
    %p112 = scmp.eq.s32.totalorder %s15, 2
    %p113 = por %p111, %p112
    %p115 = scmp.ne.s32.totalorder %s98, %s114
    %p116 = scmp.eq.s32.totalorder %s15, 0
    %p117 = por %p115, %p116
    %s118 = ssub.s32 %s16, %s35
    %s119 = ssub.s32 %s17, %s31
    %s120 = sor.u32 %s118, %s119
    %p121 = scmp.eq.s32.totalorder %s120, 0
    %s123 = sadd.s32 %s122, 1
    %s124 = scalar_select %p121, %s122, %s123
    %p127 = pneg %p121
    %p128 = scmp.eq.s32.totalorder %s9, 2
    %p129 = por %p127, %p128
    %p130 = scmp.ne.s32.totalorder %s122, %s125
    %p131 = scmp.eq.s32.totalorder %s9, 0
    %p132 = por %p130, %p131
    %p133 = scmp.ne.s32.totalorder %s122, %s125
    %p134 = scmp.eq.s32.totalorder %s14, 2
    %p135 = por %p133, %p134
    %p136 = scmp.ne.s32.totalorder %s125, %s126
    %p137 = scmp.eq.s32.totalorder %s14, 0
    %p138 = por %p136, %p137
    %p139 = scmp.ne.s32.totalorder %s125, %s126
    %p140 = scmp.eq.s32.totalorder %s15, 2
    %p141 = por %p139, %p140
    %p143 = scmp.ne.s32.totalorder %s126, %s142
    %p144 = scmp.eq.s32.totalorder %s15, 0
    %p145 = por %p143, %p144
    %p146 = scmp.le.s32.totalorder 1, %s9
    %p147 = scmp.lt.s32.totalorder %s9, 4
    %p148 = pnand %p146, %p147
    %p149 = pneg %p148
    // Predicated region
    $region9: #{net_forward.4} parent=5 // pred_check
      _
    $region10: #{net_forward.4} parent=5 // pred_check_branch
      %151 = sbr.rel (%p148) target = $region12
    $region11: #{net_forward.4} parent=5 // pred_region
      %s152 = ssub.s32 %s9, 1
      // Predicated region
      $region13: #{net_forward.4} parent=11 // pred_check
        %p153 = pneg %p84
      $region14: #{net_forward.4} parent=11 // pred_check_branch
        %155 = sbr.rel (%p153) target = $region16
      $region15: #{net_forward.4} parent=11 // pred_region
        %s156 = smul.u32 32, %s21
        %p157 = scmp.lt.s32.totalorder %s156, 31
        %s158 = scalar_select %p157, %s156, 31
        %p159 = scmp.lt.s32.totalorder %s20, 0
        %s160 = scalar_select %p159, %s20, 0
        %s161 = sadd.s32 %s160, %s158
        %s162 = smul.addr %s161, 4
        %s163 = scalar_lea.vmem %s1, %s162
        %s164 = smul.u32 32, %s21
      $region16: #{net_forward.4} parent=11 // pred_fallthru
        _
      // Predicated region
      $region17: #{net_forward.4} parent=11 // pred_check
        %p165 = pneg %p110
      $region18: #{net_forward.4} parent=11 // pred_check_branch
        %167 = sbr.rel (%p165) target = $region20
      $region19: #{net_forward.4} parent=11 // pred_region
        %p168 = scmp.lt.s32.totalorder %s20, 0
        %s169 = scalar_select %p168, %s20, 0
        %s170 = scalar_lea.vmem %s2, %s169
      $region20: #{net_forward.4} parent=11 // pred_fallthru
        _
    $region12: #{net_forward.4} parent=5 // pred_fallthru
      _
    %p171 = scmp.lt.s32.totalorder %s9, 3
    // Predicated region
    $region21: #{net_forward.4} parent=5 // pred_check
      %p172 = pneg %p171
    $region22: #{net_forward.4} parent=5 // pred_check_branch
      %174 = sbr.rel (%p172) target = $region24
    $region23: #{net_forward.4} parent=5 // pred_region
      // Predicated region
      $region25: #{net_forward.4} parent=23 // pred_check
        %p175 = pneg %p50
      $region26: #{net_forward.4} parent=23 // pred_check_branch
        %177 = sbr.rel (%p175) target = $region28
      $region27: #{net_forward.4} parent=23 // pred_region
        %s178 = smul.u32 16, %s16
        %s179 = smul.u32 2, %s18
        %p180 = scmp.lt.s32.totalorder %s178, 47
        %s181 = scalar_select %p180, %s178, 47
        %p182 = scmp.lt.s32.totalorder %s179, 1
        %s183 = scalar_select %p182, %s179, 1
        %s184 = smul.addr %s181, 2
        %s185 = sadd.s32 %s183, %s184
        %s186 = smul.addr %s185, 4
        %s187 = scalar_lea.vmem %s0, %s186
        %s188 = smul.u32 16, %s16
        %s189 = smul.u32 2, %s18
      $region28: #{net_forward.4} parent=23 // pred_fallthru
        _
    $region24: #{net_forward.4} parent=5 // pred_fallthru
      _
    %p190 = scmp.le.s32.totalorder 1, %s9
    %p191 = scmp.lt.s32.totalorder %s9, 4
    %p192 = pnand %p190, %p191
    %p193 = pneg %p192
    // Predicated region
    $region29: #{net_forward.4} parent=5 // pred_check
      _
    $region30: #{net_forward.4} parent=5 // pred_check_branch
      %195 = sbr.rel (%p192) target = $region32
    $region31: #{net_forward.4} parent=5 // pred_region
      %s196 = ssub.s32 %s9, 1
      %s197 = smul.u32 16, %s19
      %s198 = smul.u32 2, %s21
      %p199 = scmp.lt.s32.totalorder %s197, 47
      %s200 = scalar_select %p199, %s197, 47
      %p201 = scmp.lt.s32.totalorder %s198, 1
      %s202 = scalar_select %p201, %s198, 1
      %s203 = smul.addr %s200, 2
      %s204 = sadd.s32 %s202, %s203
      %s205 = smul.addr %s204, 4
      %s206 = scalar_lea.vmem %s0, %s205
      %p207 = pneg %p56
      %p208 = pneg %p53
      %s209 = smul.u32 32, %s21
      %p210 = scmp.lt.s32.totalorder %s209, 31
      %s211 = scalar_select %p210, %s209, 31
      %p212 = scmp.lt.s32.totalorder %s20, 0
      %s213 = scalar_select %p212, %s20, 0
      %s214 = sadd.s32 %s213, %s211
      %s215 = smul.addr %s214, 4
      %s216 = scalar_lea.vmem %s1, %s215
      %p217 = pneg %p84
      %p218 = pneg %p81
      %p219 = scmp.lt.s32.totalorder %s20, 0
      %s220 = scalar_select %p219, %s20, 0
      %s221 = scalar_lea.vmem %s2, %s220
      %p222 = pneg %p110
      %p223 = pneg %p107
      %p224 = pneg %p138
      %p225 = pneg %p135
      %s226 = smul.u32 16, %s19
      %p227 = scmp.lt.s32.totalorder %s226, 47
      %s228 = scalar_select %p227, %s226, 47
      %p229 = scmp.lt.s32.totalorder %s20, 0
      %s230 = scalar_select %p229, %s20, 0
      %s231 = sadd.s32 %s230, %s228
      %s232 = smul.addr %s231, 4
      %s233 = scalar_lea.vmem %s3, %s232
      %s234 = smul.u32 16, %s19
      %s235 = smul.u32 2, %s21
      %p236 = scmp.lt.s32.totalorder %s234, 47
      %s237 = scalar_select %p236, %s234, 47
      %p238 = scmp.lt.s32.totalorder %s235, 1
      %s239 = scalar_select %p238, %s235, 1
      %s240 = smul.addr %s237, 2
      %s241 = sadd.s32 %s239, %s240
      %s242 = smul.addr %s241, 4
      %s243 = scalar_lea.vmem %s0, %s242
      %s244 = smul.u32 16, %s19
      %s245 = smul.u32 2, %s21
      %s246 = smul.u32 32, %s21
      %p247 = scmp.lt.s32.totalorder %s246, 31
      %s248 = scalar_select %p247, %s246, 31
      %p249 = scmp.lt.s32.totalorder %s20, 0
      %s250 = scalar_select %p249, %s20, 0
      %s251 = sadd.s32 %s250, %s248
      %s252 = smul.addr %s251, 4
      %s253 = scalar_lea.vmem %s1, %s252
      %s254 = smul.u32 32, %s21
      %p255 = scmp.lt.s32.totalorder %s20, 0
      %s256 = scalar_select %p255, %s20, 0
      %s257 = scalar_lea.vmem %s2, %s256
      %s258 = smul.u32 16, %s19
      %p259 = scmp.lt.s32.totalorder %s258, 47
      %s260 = scalar_select %p259, %s258, 47
      %p261 = scmp.lt.s32.totalorder %s20, 0
      %s262 = scalar_select %p261, %s20, 0
      %s263 = sadd.s32 %s262, %s260
      %s264 = smul.addr %s263, 4
      %s265 = scalar_lea.vmem %s3, %s264
      %s266 = smul.u32 16, %s19
      %p268 = scmp.eq.s32.totalorder %s21, 0
      // Predicated region
      $region33: #{net_forward.4} parent=31 // pred_check
        %p269 = pneg %p268
      $region34: #{net_forward.4} parent=31 // pred_check_branch
        %271 = sbr.rel (%p269) target = $region36
      $region35: #{net_forward.4} parent=31 // pred_region
        %272 = vst [vmem:[#allocation2] sm:$0xff] 0.0
        %273 = vst [vmem:[#allocation2 + $0x8] sm:$0xff] 0.0
        %274 = vst [vmem:[#allocation2 + $0x10] sm:$0xff] 0.0
        %275 = vst [vmem:[#allocation2 + $0x18] sm:$0xff] 0.0
        %276 = vst [vmem:[#allocation2 + $0x20] sm:$0xff] 0.0
        %277 = vst [vmem:[#allocation2 + $0x28] sm:$0xff] 0.0
        %278 = vst [vmem:[#allocation2 + $0x30] sm:$0xff] 0.0
        %279 = vst [vmem:[#allocation2 + $0x38] sm:$0xff] 0.0
        %280 = vst [vmem:[#allocation2 + $0x40] sm:$0xff] 0.0
        %281 = vst [vmem:[#allocation2 + $0x48] sm:$0xff] 0.0
        %282 = vst [vmem:[#allocation2 + $0x50] sm:$0xff] 0.0
        %283 = vst [vmem:[#allocation2 + $0x58] sm:$0xff] 0.0
        %284 = vst [vmem:[#allocation2 + $0x60] sm:$0xff] 0.0
        %285 = vst [vmem:[#allocation2 + $0x68] sm:$0xff] 0.0
        %286 = vst [vmem:[#allocation2 + $0x70] sm:$0xff] 0.0
        %287 = vst [vmem:[#allocation2 + $0x78] sm:$0xff] 0.0
      $region36: #{net_forward.4} parent=31 // pred_fallthru
        _
      %v288 = vld [vmem:[#allocation2] sm:$0xff]
      %v289 = vld [vmem:[#allocation2 + $0x8] sm:$0xff]
      %v290 = vld [vmem:[#allocation2 + $0x10] sm:$0xff]
      %v291 = vld [vmem:[#allocation2 + $0x18] sm:$0xff]
      %v292 = vld [vmem:[#allocation2 + $0x20] sm:$0xff]
      %v293 = vld [vmem:[#allocation2 + $0x28] sm:$0xff]
      %v294 = vld [vmem:[#allocation2 + $0x30] sm:$0xff]
      %v295 = vld [vmem:[#allocation2 + $0x38] sm:$0xff]
      %v296 = vld [vmem:[#allocation2 + $0x40] sm:$0xff]
      %v297 = vld [vmem:[#allocation2 + $0x48] sm:$0xff]
      %v298 = vld [vmem:[#allocation2 + $0x50] sm:$0xff]
      %v299 = vld [vmem:[#allocation2 + $0x58] sm:$0xff]
      %v300 = vld [vmem:[#allocation2 + $0x60] sm:$0xff]
      %v301 = vld [vmem:[#allocation2 + $0x68] sm:$0xff]
      %v302 = vld [vmem:[#allocation2 + $0x70] sm:$0xff]
      %v303 = vld [vmem:[#allocation2 + $0x78] sm:$0xff]
      %v304 = vld [vmem:[%s243] sm:$0xff]
      %v305 = vld [vmem:[%s243 + $0x8] sm:$0xff]
      %v306 = vld [vmem:[%s243 + $0x10] sm:$0xff]
      %v307 = vld [vmem:[%s243 + $0x18] sm:$0xff]
      %v308 = vld [vmem:[%s243 + $0x20] sm:$0xff]
      %v309 = vld [vmem:[%s243 + $0x28] sm:$0xff]
      %v310 = vld [vmem:[%s243 + $0x30] sm:$0xff]
      %v311 = vld [vmem:[%s243 + $0x38] sm:$0xff]
      %v312 = vld [vmem:[%s243 + $0x40] sm:$0xff]
      %v313 = vld [vmem:[%s243 + $0x48] sm:$0xff]
      %v314 = vld [vmem:[%s243 + $0x50] sm:$0xff]
      %v315 = vld [vmem:[%s243 + $0x58] sm:$0xff]
      %v316 = vld [vmem:[%s243 + $0x60] sm:$0xff]
      %v317 = vld [vmem:[%s243 + $0x68] sm:$0xff]
      %v318 = vld [vmem:[%s243 + $0x70] sm:$0xff]
      %v319 = vld [vmem:[%s243 + $0x78] sm:$0xff]
      %v320 = vld [vmem:[%s253] sm:$0xf]
      %v321 = vld [vmem:[%s253 + $0x4] sm:$0xf]
      %v322 = vld [vmem:[%s253 + $0x8] sm:$0xf]
      %v323 = vld [vmem:[%s253 + $0xc] sm:$0xf]
      %v324 = vld [vmem:[%s253 + $0x10] sm:$0xf]
      %v325 = vld [vmem:[%s253 + $0x14] sm:$0xf]
      %v326 = vld [vmem:[%s253 + $0x18] sm:$0xf]
      %v327 = vld [vmem:[%s253 + $0x1c] sm:$0xf]
      %v328 = vld [vmem:[%s253 + $0x20] sm:$0xf]
      %v329 = vld [vmem:[%s253 + $0x24] sm:$0xf]
      %v330 = vld [vmem:[%s253 + $0x28] sm:$0xf]
      %v331 = vld [vmem:[%s253 + $0x2c] sm:$0xf]
      %v332 = vld [vmem:[%s253 + $0x30] sm:$0xf]
      %v333 = vld [vmem:[%s253 + $0x34] sm:$0xf]
      %v334 = vld [vmem:[%s253 + $0x38] sm:$0xf]
      %v335 = vld [vmem:[%s253 + $0x3c] sm:$0xf]
      %v336 = vld [vmem:[%s253 + $0x40] sm:$0xf]
      %v337 = vld [vmem:[%s253 + $0x44] sm:$0xf]
      %v338 = vld [vmem:[%s253 + $0x48] sm:$0xf]
      %v339 = vld [vmem:[%s253 + $0x4c] sm:$0xf]
      %v340 = vld [vmem:[%s253 + $0x50] sm:$0xf]
      %v341 = vld [vmem:[%s253 + $0x54] sm:$0xf]
      %v342 = vld [vmem:[%s253 + $0x58] sm:$0xf]
      %v343 = vld [vmem:[%s253 + $0x5c] sm:$0xf]
      %v344 = vld [vmem:[%s253 + $0x60] sm:$0xf]
      %v345 = vld [vmem:[%s253 + $0x64] sm:$0xf]
      %v346 = vld [vmem:[%s253 + $0x68] sm:$0xf]
      %v347 = vld [vmem:[%s253 + $0x6c] sm:$0xf]
      %v348 = vld [vmem:[%s253 + $0x70] sm:$0xf]
      %v349 = vld [vmem:[%s253 + $0x74] sm:$0xf]
      %v350 = vld [vmem:[%s253 + $0x78] sm:$0xf]
      %v351 = vld [vmem:[%s253 + $0x7c] sm:$0xf]
      %v368 = vunpack.c.l.b16 %v304
      %v369 = vunpack.c.h.b16 %v304
      %v370 = vunpack.c.l.b16 %v305
      %v371 = vunpack.c.h.b16 %v305
      %v372 = vunpack.c.l.b16 %v306
      %v373 = vunpack.c.h.b16 %v306
      %v374 = vunpack.c.l.b16 %v307
      %v375 = vunpack.c.h.b16 %v307
      %v376 = vunpack.c.l.b16 %v308
      %v377 = vunpack.c.h.b16 %v308
      %v378 = vunpack.c.l.b16 %v309
      %v379 = vunpack.c.h.b16 %v309
      %v380 = vunpack.c.l.b16 %v310
      %v381 = vunpack.c.h.b16 %v310
      %v382 = vunpack.c.l.b16 %v311
      %v383 = vunpack.c.h.b16 %v311
      %v384 = vunpack.c.l.b16 %v312
      %v385 = vunpack.c.h.b16 %v312
      %v386 = vunpack.c.l.b16 %v313
      %v387 = vunpack.c.h.b16 %v313
      %v388 = vunpack.c.l.b16 %v314
      %v389 = vunpack.c.h.b16 %v314
      %v390 = vunpack.c.l.b16 %v315
      %v391 = vunpack.c.h.b16 %v315
      %v392 = vunpack.c.l.b16 %v316
      %v393 = vunpack.c.h.b16 %v316
      %v394 = vunpack.c.l.b16 %v317
      %v395 = vunpack.c.h.b16 %v317
      %v396 = vunpack.c.l.b16 %v318
      %v397 = vunpack.c.h.b16 %v318
      %v398 = vunpack.c.l.b16 %v319
      %v399 = vunpack.c.h.b16 %v319
      %v400 = vpack.c.b16 %v370, %v368
      %v401 = vpack.c.b16 %v371, %v369
      %v402 = vpack.c.b16 %v374, %v372
      %v403 = vpack.c.b16 %v375, %v373
      %v404 = vpack.c.b16 %v378, %v376
      %v405 = vpack.c.b16 %v379, %v377
      %v406 = vpack.c.b16 %v382, %v380
      %v407 = vpack.c.b16 %v383, %v381
      %v408 = vpack.c.b16 %v386, %v384
      %v409 = vpack.c.b16 %v387, %v385
      %v410 = vpack.c.b16 %v390, %v388
      %v411 = vpack.c.b16 %v391, %v389
      %v412 = vpack.c.b16 %v394, %v392
      %v413 = vpack.c.b16 %v395, %v393
      %v414 = vpack.c.b16 %v398, %v396
      %v415 = vpack.c.b16 %v399, %v397
      %v464 = vunpack.c.l.b16 %v320
      %v465 = vunpack.c.l.b16 %v321
      %v466 = vunpack.c.l.b16 %v322
      %v467 = vunpack.c.l.b16 %v323
      %v468 = vunpack.c.l.b16 %v324
      %v469 = vunpack.c.l.b16 %v325
      %v470 = vunpack.c.l.b16 %v326
      %v471 = vunpack.c.l.b16 %v327
      %v472 = vunpack.c.l.b16 %v328
      %v473 = vunpack.c.l.b16 %v329
      %v474 = vunpack.c.l.b16 %v330
      %v475 = vunpack.c.l.b16 %v331
      %v476 = vunpack.c.l.b16 %v332
      %v477 = vunpack.c.l.b16 %v333
      %v478 = vunpack.c.l.b16 %v334
      %v479 = vunpack.c.l.b16 %v335
      %v480 = vunpack.c.l.b16 %v336
      %v481 = vunpack.c.l.b16 %v337
      %v482 = vunpack.c.l.b16 %v338
      %v483 = vunpack.c.l.b16 %v339
      %v484 = vunpack.c.l.b16 %v340
      %v485 = vunpack.c.l.b16 %v341
      %v486 = vunpack.c.l.b16 %v342
      %v487 = vunpack.c.l.b16 %v343
      %v488 = vunpack.c.l.b16 %v344
      %v489 = vunpack.c.l.b16 %v345
      %v490 = vunpack.c.l.b16 %v346
      %v491 = vunpack.c.l.b16 %v347
      %v492 = vunpack.c.l.b16 %v348
      %v493 = vunpack.c.l.b16 %v349
      %v494 = vunpack.c.l.b16 %v350
      %v495 = vunpack.c.l.b16 %v351
      %v496 = vpack.c.b16 %v465, %v464
      %v497 = vpack.c.b16 %v467, %v466
      %v498 = vpack.c.b16 %v469, %v468
      %v499 = vpack.c.b16 %v471, %v470
      %v500 = vpack.c.b16 %v473, %v472
      %v501 = vpack.c.b16 %v475, %v474
      %v502 = vpack.c.b16 %v477, %v476
      %v503 = vpack.c.b16 %v479, %v478
      %v504 = vpack.c.b16 %v481, %v480
      %v505 = vpack.c.b16 %v483, %v482
      %v506 = vpack.c.b16 %v485, %v484
      %v507 = vpack.c.b16 %v487, %v486
      %v508 = vpack.c.b16 %v489, %v488
      %v509 = vpack.c.b16 %v491, %v490
      %v510 = vpack.c.b16 %v493, %v492
      %v511 = vpack.c.b16 %v495, %v494
      %528 = vmatprep.subr.bf16.mxu0 0
      %529 = vmatpush1.bf16.msra.mxu0 %v503
      %530 = vmatprep.subr.bf16.mxu0 0
      %531 = vmatpush1.bf16.msra.mxu0 %v502
      %532 = vmatprep.subr.bf16.mxu0 0
      %533 = vmatpush1.bf16.msra.mxu0 %v501
      %534 = vmatprep.subr.bf16.mxu0 0
      %535 = vmatpush1.bf16.msra.mxu0 %v500
      %536 = vmatprep.subr.bf16.mxu0 0
      %537 = vmatpush1.bf16.msra.mxu0 %v499
      %538 = vmatprep.subr.bf16.mxu0 0
      %539 = vmatpush1.bf16.msra.mxu0 %v498
      %540 = vmatprep.subr.bf16.mxu0 0
      %541 = vmatpush1.bf16.msra.mxu0 %v497
      %542 = vmatprep.subr.bf16.mxu0 0
      %543 = vmatpush1.bf16.msra.mxu0 %v496
      %544 = vmatprep.subr.bf16.mxu0 0
      %545 = vmatpush2.bf16.msra.mxu0 %v511
      %546 = vmatprep.subr.bf16.mxu0 0
      %547 = vmatpush2.bf16.msra.mxu0 %v510
      %548 = vmatprep.subr.bf16.mxu0 0
      %549 = vmatpush2.bf16.msra.mxu0 %v509
      %550 = vmatprep.subr.bf16.mxu0 0
      %551 = vmatpush2.bf16.msra.mxu0 %v508
      %552 = vmatprep.subr.bf16.mxu0 0
      %553 = vmatpush2.bf16.msra.mxu0 %v507
      %554 = vmatprep.subr.bf16.mxu0 0
      %555 = vmatpush2.bf16.msra.mxu0 %v506
      %556 = vmatprep.subr.bf16.mxu0 0
      %557 = vmatpush2.bf16.msra.mxu0 %v505
      %558 = vmatprep.subr.bf16.mxu0 0
      %559 = vmatpush2.bf16.msra.mxu0 %v504
      %560 = vmatprep.mubr.bf16.mxu0 %v401
      %561 = vmatmul.mubr.bf16.gmra.mxu0 %v400
      %v562 = vpop.f32.mrf.mxu0
      %v563 = vadd.f32 0.0, %v562
      %v564 = vpop.f32.mrf.mxu0
      %v565 = vpop.f32.mrf.mxu0
      %v566 = vadd.f32 0.0, %v565
      %v567 = vpop.f32.mrf.mxu0
      %568 = vmatprep.mubr.bf16.mxu0 %v403
      %569 = vmatmul.mubr.bf16.gmra.mxu0 %v402
      %v570 = vpop.f32.mrf.mxu0
      %v571 = vadd.f32 0.0, %v570
      %v572 = vpop.f32.mrf.mxu0
      %v573 = vpop.f32.mrf.mxu0
      %v574 = vadd.f32 0.0, %v573
      %v575 = vpop.f32.mrf.mxu0
      %576 = vmatprep.mubr.bf16.mxu0 %v405
      %577 = vmatmul.mubr.bf16.gmra.mxu0 %v404
      %v578 = vpop.f32.mrf.mxu0
      %v579 = vadd.f32 0.0, %v578
      %v580 = vpop.f32.mrf.mxu0
      %v581 = vpop.f32.mrf.mxu0
      %v582 = vadd.f32 0.0, %v581
      %v583 = vpop.f32.mrf.mxu0
      %584 = vmatprep.mubr.bf16.mxu0 %v407
      %585 = vmatmul.mubr.bf16.gmra.mxu0 %v406
      %v586 = vpop.f32.mrf.mxu0
      %v587 = vadd.f32 0.0, %v586
      %v588 = vpop.f32.mrf.mxu0
      %v589 = vpop.f32.mrf.mxu0
      %v590 = vadd.f32 0.0, %v589
      %v591 = vpop.f32.mrf.mxu0
      %592 = vmatprep.mubr.bf16.mxu0 %v409
      %593 = vmatmul.mubr.bf16.gmra.mxu0 %v408
      %v594 = vpop.f32.mrf.mxu0
      %v595 = vadd.f32 0.0, %v594
      %v596 = vpop.f32.mrf.mxu0
      %v597 = vpop.f32.mrf.mxu0
      %v598 = vadd.f32 0.0, %v597
      %v599 = vpop.f32.mrf.mxu0
      %600 = vmatprep.mubr.bf16.mxu0 %v411
      %601 = vmatmul.mubr.bf16.gmra.mxu0 %v410
      %v602 = vpop.f32.mrf.mxu0
      %v603 = vadd.f32 0.0, %v602
      %v604 = vpop.f32.mrf.mxu0
      %v605 = vpop.f32.mrf.mxu0
      %v606 = vadd.f32 0.0, %v605
      %v607 = vpop.f32.mrf.mxu0
      %608 = vmatprep.mubr.bf16.mxu0 %v413
      %609 = vmatmul.mubr.bf16.gmra.mxu0 %v412
      %v610 = vpop.f32.mrf.mxu0
      %v611 = vadd.f32 0.0, %v610
      %v612 = vpop.f32.mrf.mxu0
      %v613 = vpop.f32.mrf.mxu0
      %v614 = vadd.f32 0.0, %v613
      %v615 = vpop.f32.mrf.mxu0
      %616 = vmatprep.mubr.bf16.mxu0 %v415
      %617 = vmatmul.mubr.bf16.gmra.mxu0 %v414
      %v618 = vpop.f32.mrf.mxu0
      %v619 = vadd.f32 0.0, %v618
      %v620 = vpop.f32.mrf.mxu0
      %v621 = vpop.f32.mrf.mxu0
      %v622 = vadd.f32 0.0, %v621
      %v623 = vpop.f32.mrf.mxu0
      %624 = vdwg.mxu0
      %v625 = vadd.f32 %v288, %v563
      %v626 = vadd.f32 %v289, %v566
      %v627 = vadd.f32 %v290, %v571
      %v628 = vadd.f32 %v291, %v574
      %v629 = vadd.f32 %v292, %v579
      %v630 = vadd.f32 %v293, %v582
      %v631 = vadd.f32 %v294, %v587
      %v632 = vadd.f32 %v295, %v590
      %v633 = vadd.f32 %v296, %v595
      %v634 = vadd.f32 %v297, %v598
      %v635 = vadd.f32 %v298, %v603
      %v636 = vadd.f32 %v299, %v606
      %v637 = vadd.f32 %v300, %v611
      %v638 = vadd.f32 %v301, %v614
      %v639 = vadd.f32 %v302, %v619
      %v640 = vadd.f32 %v303, %v622
      %641 = vst [vmem:[#allocation2] sm:$0xff] %v625
      %642 = vst [vmem:[#allocation2 + $0x8] sm:$0xff] %v626
      %643 = vst [vmem:[#allocation2 + $0x10] sm:$0xff] %v627
      %644 = vst [vmem:[#allocation2 + $0x18] sm:$0xff] %v628
      %645 = vst [vmem:[#allocation2 + $0x20] sm:$0xff] %v629
      %646 = vst [vmem:[#allocation2 + $0x28] sm:$0xff] %v630
      %647 = vst [vmem:[#allocation2 + $0x30] sm:$0xff] %v631
      %648 = vst [vmem:[#allocation2 + $0x38] sm:$0xff] %v632
      %649 = vst [vmem:[#allocation2 + $0x40] sm:$0xff] %v633
      %650 = vst [vmem:[#allocation2 + $0x48] sm:$0xff] %v634
      %651 = vst [vmem:[#allocation2 + $0x50] sm:$0xff] %v635
      %652 = vst [vmem:[#allocation2 + $0x58] sm:$0xff] %v636
      %653 = vst [vmem:[#allocation2 + $0x60] sm:$0xff] %v637
      %654 = vst [vmem:[#allocation2 + $0x68] sm:$0xff] %v638
      %655 = vst [vmem:[#allocation2 + $0x70] sm:$0xff] %v639
      %656 = vst [vmem:[#allocation2 + $0x78] sm:$0xff] %v640
      // Predicated region
      $region37: #{net_forward.4} parent=31 // pred_check
        %p657 = pneg %p268
      $region38: #{net_forward.4} parent=31 // pred_check_branch
        %659 = sbr.rel (%p657) target = $region40
      $region39: #{net_forward.4} parent=31 // pred_region
        %v660 = vld [vmem:[#allocation2] sm:$0xff]
        %v661 = vld [vmem:[#allocation2 + $0x8] sm:$0xff]
        %v662 = vld [vmem:[#allocation2 + $0x10] sm:$0xff]
        %v663 = vld [vmem:[#allocation2 + $0x18] sm:$0xff]
        %v664 = vld [vmem:[#allocation2 + $0x20] sm:$0xff]
        %v665 = vld [vmem:[#allocation2 + $0x28] sm:$0xff]
        %v666 = vld [vmem:[#allocation2 + $0x30] sm:$0xff]
        %v667 = vld [vmem:[#allocation2 + $0x38] sm:$0xff]
        %v668 = vld [vmem:[#allocation2 + $0x40] sm:$0xff]
        %v669 = vld [vmem:[#allocation2 + $0x48] sm:$0xff]
        %v670 = vld [vmem:[#allocation2 + $0x50] sm:$0xff]
        %v671 = vld [vmem:[#allocation2 + $0x58] sm:$0xff]
        %v672 = vld [vmem:[#allocation2 + $0x60] sm:$0xff]
        %v673 = vld [vmem:[#allocation2 + $0x68] sm:$0xff]
        %v674 = vld [vmem:[#allocation2 + $0x70] sm:$0xff]
        %v675 = vld [vmem:[#allocation2 + $0x78] sm:$0xff]
        %v676 = vld [vmem:[%s257] sm:$0x1]
        %v678 = vlaneseq
        %v679 = vshrl.u32 %v678, 7
        %v680 = vsub.s32 0, %v679
        %v681 = vrot.slane %v676, %v680
        %v683 = vadd.f32 %v660, %v681
        %v684 = vadd.f32 %v661, %v681
        %v685 = vadd.f32 %v662, %v681
        %v686 = vadd.f32 %v663, %v681
        %v687 = vadd.f32 %v664, %v681
        %v688 = vadd.f32 %v665, %v681
        %v689 = vadd.f32 %v666, %v681
        %v690 = vadd.f32 %v667, %v681
        %v691 = vadd.f32 %v668, %v681
        %v692 = vadd.f32 %v669, %v681
        %v693 = vadd.f32 %v670, %v681
        %v694 = vadd.f32 %v671, %v681
        %v695 = vadd.f32 %v672, %v681
        %v696 = vadd.f32 %v673, %v681
        %v697 = vadd.f32 %v674, %v681
        %v698 = vadd.f32 %v675, %v681
        %v699 = vmax.f32 %v683, 0.0
        %v700 = vmax.f32 %v684, 0.0
        %v701 = vmax.f32 %v685, 0.0
        %v702 = vmax.f32 %v686, 0.0
        %v703 = vmax.f32 %v687, 0.0
        %v704 = vmax.f32 %v688, 0.0
        %v705 = vmax.f32 %v689, 0.0
        %v706 = vmax.f32 %v690, 0.0
        %v707 = vmax.f32 %v691, 0.0
        %v708 = vmax.f32 %v692, 0.0
        %v709 = vmax.f32 %v693, 0.0
        %v710 = vmax.f32 %v694, 0.0
        %v711 = vmax.f32 %v695, 0.0
        %v712 = vmax.f32 %v696, 0.0
        %v713 = vmax.f32 %v697, 0.0
        %v714 = vmax.f32 %v698, 0.0
        %v715 = vpack.c.bf16 %v700, %v699
        %v716 = vpack.c.bf16 %v702, %v701
        %v717 = vpack.c.bf16 %v704, %v703
        %v718 = vpack.c.bf16 %v706, %v705
        %v719 = vpack.c.bf16 %v708, %v707
        %v720 = vpack.c.bf16 %v710, %v709
        %v721 = vpack.c.bf16 %v712, %v711
        %v722 = vpack.c.bf16 %v714, %v713
        %v731 = vunpack.c.l.b16 %v715
        %v732 = vunpack.c.h.b16 %v715
        %v733 = vunpack.c.l.b16 %v716
        %v734 = vunpack.c.h.b16 %v716
        %v735 = vunpack.c.l.b16 %v717
        %v736 = vunpack.c.h.b16 %v717
        %v737 = vunpack.c.l.b16 %v718
        %v738 = vunpack.c.h.b16 %v718
        %v739 = vunpack.c.l.b16 %v719
        %v740 = vunpack.c.h.b16 %v719
        %v741 = vunpack.c.l.b16 %v720
        %v742 = vunpack.c.h.b16 %v720
        %v743 = vunpack.c.l.b16 %v721
        %v744 = vunpack.c.h.b16 %v721
        %v745 = vunpack.c.l.b16 %v722
        %v746 = vunpack.c.h.b16 %v722
        %v747 = vpack.c.b16 %v731, %v731
        %v748 = vpack.c.b16 %v732, %v732
        %v749 = vpack.c.b16 %v733, %v733
        %v750 = vpack.c.b16 %v734, %v734
        %v751 = vpack.c.b16 %v735, %v735
        %v752 = vpack.c.b16 %v736, %v736
        %v753 = vpack.c.b16 %v737, %v737
        %v754 = vpack.c.b16 %v738, %v738
        %v755 = vpack.c.b16 %v739, %v739
        %v756 = vpack.c.b16 %v740, %v740
        %v757 = vpack.c.b16 %v741, %v741
        %v758 = vpack.c.b16 %v742, %v742
        %v759 = vpack.c.b16 %v743, %v743
        %v760 = vpack.c.b16 %v744, %v744
        %v761 = vpack.c.b16 %v745, %v745
        %v762 = vpack.c.b16 %v746, %v746
        %779 = vst [vmem:[%s265] sm:$0xf] %v747
        %780 = vst [vmem:[%s265 + $0x4] sm:$0xf] %v748
        %781 = vst [vmem:[%s265 + $0x8] sm:$0xf] %v749
        %782 = vst [vmem:[%s265 + $0xc] sm:$0xf] %v750
        %783 = vst [vmem:[%s265 + $0x10] sm:$0xf] %v751
        %784 = vst [vmem:[%s265 + $0x14] sm:$0xf] %v752
        %785 = vst [vmem:[%s265 + $0x18] sm:$0xf] %v753
        %786 = vst [vmem:[%s265 + $0x1c] sm:$0xf] %v754
        %787 = vst [vmem:[%s265 + $0x20] sm:$0xf] %v755
        %788 = vst [vmem:[%s265 + $0x24] sm:$0xf] %v756
        %789 = vst [vmem:[%s265 + $0x28] sm:$0xf] %v757
        %790 = vst [vmem:[%s265 + $0x2c] sm:$0xf] %v758
        %791 = vst [vmem:[%s265 + $0x30] sm:$0xf] %v759
        %792 = vst [vmem:[%s265 + $0x34] sm:$0xf] %v760
        %793 = vst [vmem:[%s265 + $0x38] sm:$0xf] %v761
        %794 = vst [vmem:[%s265 + $0x3c] sm:$0xf] %v762
      $region40: #{net_forward.4} parent=31 // pred_fallthru
        _
      %s795 = smul.u32 16, %s19
      %p796 = scmp.lt.s32.totalorder %s795, 47
      %s797 = scalar_select %p796, %s795, 47
      %p798 = scmp.lt.s32.totalorder %s20, 0
      %s799 = scalar_select %p798, %s20, 0
      %s800 = sadd.s32 %s799, %s797
      %s801 = smul.addr %s800, 4
      %s802 = scalar_lea.vmem %s3, %s801
      // Predicated region
      $region41: #{net_forward.4} parent=31 // pred_check
        %p803 = pneg %p135
      $region42: #{net_forward.4} parent=31 // pred_check_branch
        %805 = sbr.rel (%p803) target = $region44
      $region43: #{net_forward.4} parent=31 // pred_region
        %s806 = smul.u32 16, %s19
      $region44: #{net_forward.4} parent=31 // pred_fallthru
        _
    $region32: #{net_forward.4} parent=5 // pred_fallthru
      _
    %p807 = scmp.le.s32.totalorder 2, %s9
    // Predicated region
    $region45: #{net_forward.4} parent=5 // pred_check
      %p808 = pneg %p807
    $region46: #{net_forward.4} parent=5 // pred_check_branch
      %810 = sbr.rel (%p808) target = $region48
    $region47: #{net_forward.4} parent=5 // pred_region
      %s811 = ssub.s32 %s9, 2
      // Predicated region
      $region49: #{net_forward.4} parent=47 // pred_check
        %p812 = pneg %p141
      $region50: #{net_forward.4} parent=47 // pred_check_branch
        %814 = sbr.rel (%p812) target = $region52
      $region51: #{net_forward.4} parent=47 // pred_region
        %s815 = smul.u32 16, %s22
        %p816 = scmp.lt.s32.totalorder %s815, 47
        %s817 = scalar_select %p816, %s815, 47
        %p818 = scmp.lt.s32.totalorder %s23, 0
        %s819 = scalar_select %p818, %s23, 0
        %s820 = sadd.s32 %s819, %s817
        %s821 = smul.addr %s820, 4
        %s822 = scalar_lea.vmem %s3, %s821
      $region52: #{net_forward.4} parent=47 // pred_fallthru
        _
    $region48: #{net_forward.4} parent=5 // pred_fallthru
      _
  $region6: #{net_forward.4} parent=0 // loop_footer
    %s13 = sadd.s32 1, %s9
  $region7: #{net_forward.4} parent=0 // loop_footer_branch
    %8 = sbr.rel target = $region3
  $region8: #{net_forward.4} parent=0 // loop_exit
    _

// kernel: net_forward.5
$region0: #{net_forward.5}
  #allocation0 [shape = 'u32[]', space=smem, size = 0x4, offset = 0x4, fixed_abs, tag = 'smem constant byte address 0x4 - core index']
  #allocation1 [shape = 'u32[144,128]{1,0:T(1,128)}', space=vmem, size = 0x12000, scoped, tag = 'internal scratch']
  #allocation2 [shape = 'f32[64,128]{1,0:T(8,128)}', space=vmem, size = 0x8000, scoped, tag = 'scratch operand']
  %s0 = inlined_call_operand.vmem [shape: bf16[64,512], index: 0, kind: input, shape index: {}]
  %s1 = inlined_call_operand.vmem [shape: bf16[512,128], index: 1, kind: input, shape index: {}]
  %s2 = inlined_call_operand.vmem [shape: f32[1,128], index: 2, kind: input, shape index: {}]
  %s3 = inlined_call_operand.vmem [shape: bf16[64,128], index: 3, kind: output, shape index: {}]
  %s4 = sld [smem:[#allocation0]]
  $region30: #{net_forward.5} parent=0
    _
  %s6 = ssub.s32 1, %s4
  %s7 = scalar_select 0, %s6, %s4
  // Predicated region
  $region2: #{net_forward.5} parent=0 // pred_check
    _
  $region3: #{net_forward.5} parent=0 // pred_check_branch
    %9 = sbr.rel (0) target = $region5
  $region4: #{net_forward.5} parent=0 // pred_region
    _
  $region5: #{net_forward.5} parent=0 // pred_fallthru
    _
  // Predicated region
  $region6: #{net_forward.5} parent=0 // pred_check
    _
  $region7: #{net_forward.5} parent=0 // pred_check_branch
    %11 = sbr.rel (0) target = $region9
  $region8: #{net_forward.5} parent=0 // pred_region
    _
  $region9: #{net_forward.5} parent=0 // pred_fallthru
    _
  // Predicated region
  $region10: #{net_forward.5} parent=0 // pred_check
    _
  $region11: #{net_forward.5} parent=0 // pred_check_branch
    %13 = sbr.rel (0) target = $region13
  $region12: #{net_forward.5} parent=0 // pred_region
    _
  $region13: #{net_forward.5} parent=0 // pred_fallthru
    _
  %p15 = scmp.eq.s32.totalorder 0, 0
  // Predicated region
  $region14: #{net_forward.5} parent=0 // pred_check
    %p16 = pneg %p15
  $region15: #{net_forward.5} parent=0 // pred_check_branch
    %18 = sbr.rel (%p16) target = $region17
  $region16: #{net_forward.5} parent=0 // pred_region
    %19 = vst [vmem:[#allocation2] sm:$0xff] 0.0
    %20 = vst [vmem:[#allocation2 + $0x8] sm:$0xff] 0.0
    %21 = vst [vmem:[#allocation2 + $0x10] sm:$0xff] 0.0
    %22 = vst [vmem:[#allocation2 + $0x18] sm:$0xff] 0.0
    %23 = vst [vmem:[#allocation2 + $0x20] sm:$0xff] 0.0
    %24 = vst [vmem:[#allocation2 + $0x28] sm:$0xff] 0.0
    %25 = vst [vmem:[#allocation2 + $0x30] sm:$0xff] 0.0
    %26 = vst [vmem:[#allocation2 + $0x38] sm:$0xff] 0.0
  $region17: #{net_forward.5} parent=0 // pred_fallthru
    _
  %v27 = vld [vmem:[#allocation2] sm:$0xff]
  %v28 = vld [vmem:[#allocation2 + $0x8] sm:$0xff]
  %v29 = vld [vmem:[#allocation2 + $0x10] sm:$0xff]
  %v30 = vld [vmem:[#allocation2 + $0x18] sm:$0xff]
  %v31 = vld [vmem:[#allocation2 + $0x20] sm:$0xff]
  %v32 = vld [vmem:[#allocation2 + $0x28] sm:$0xff]
  %v33 = vld [vmem:[#allocation2 + $0x30] sm:$0xff]
  %v34 = vld [vmem:[#allocation2 + $0x38] sm:$0xff]
  %v35 = vld [vmem:[%s0] sm:$0xff]
  %v36 = vld [vmem:[%s0 + $0x8] sm:$0xff]
  %v37 = vld [vmem:[%s0 + $0x10] sm:$0xff]
  %v38 = vld [vmem:[%s0 + $0x18] sm:$0xff]
  %v39 = vld [vmem:[%s0 + $0x20] sm:$0xff]
  %v40 = vld [vmem:[%s0 + $0x28] sm:$0xff]
  %v41 = vld [vmem:[%s0 + $0x30] sm:$0xff]
  %v42 = vld [vmem:[%s0 + $0x38] sm:$0xff]
  %v43 = vld [vmem:[%s0 + $0x40] sm:$0xff]
  %v44 = vld [vmem:[%s0 + $0x48] sm:$0xff]
  %v45 = vld [vmem:[%s0 + $0x50] sm:$0xff]
  %v46 = vld [vmem:[%s0 + $0x58] sm:$0xff]
  %v47 = vld [vmem:[%s0 + $0x60] sm:$0xff]
  %v48 = vld [vmem:[%s0 + $0x68] sm:$0xff]
  %v49 = vld [vmem:[%s0 + $0x70] sm:$0xff]
  %v50 = vld [vmem:[%s0 + $0x78] sm:$0xff]
  %v51 = vld [vmem:[%s1] sm:$0xf]
  %v52 = vld [vmem:[%s1 + $0x4] sm:$0xf]
  %v53 = vld [vmem:[%s1 + $0x8] sm:$0xf]
  %v54 = vld [vmem:[%s1 + $0xc] sm:$0xf]
  %v55 = vld [vmem:[%s1 + $0x10] sm:$0xf]
  %v56 = vld [vmem:[%s1 + $0x14] sm:$0xf]
  %v57 = vld [vmem:[%s1 + $0x18] sm:$0xf]
  %v58 = vld [vmem:[%s1 + $0x1c] sm:$0xf]
  %v59 = vld [vmem:[%s1 + $0x20] sm:$0xf]
  %v60 = vld [vmem:[%s1 + $0x24] sm:$0xf]
  %v61 = vld [vmem:[%s1 + $0x28] sm:$0xf]
  %v62 = vld [vmem:[%s1 + $0x2c] sm:$0xf]
  %v63 = vld [vmem:[%s1 + $0x30] sm:$0xf]
  %v64 = vld [vmem:[%s1 + $0x34] sm:$0xf]
  %v65 = vld [vmem:[%s1 + $0x38] sm:$0xf]
  %v66 = vld [vmem:[%s1 + $0x3c] sm:$0xf]
  %v67 = vld [vmem:[%s1 + $0x40] sm:$0xf]
  %v68 = vld [vmem:[%s1 + $0x44] sm:$0xf]
  %v69 = vld [vmem:[%s1 + $0x48] sm:$0xf]
  %v70 = vld [vmem:[%s1 + $0x4c] sm:$0xf]
  %v71 = vld [vmem:[%s1 + $0x50] sm:$0xf]
  %v72 = vld [vmem:[%s1 + $0x54] sm:$0xf]
  %v73 = vld [vmem:[%s1 + $0x58] sm:$0xf]
  %v74 = vld [vmem:[%s1 + $0x5c] sm:$0xf]
  %v75 = vld [vmem:[%s1 + $0x60] sm:$0xf]
  %v76 = vld [vmem:[%s1 + $0x64] sm:$0xf]
  %v77 = vld [vmem:[%s1 + $0x68] sm:$0xf]
  %v78 = vld [vmem:[%s1 + $0x6c] sm:$0xf]
  %v79 = vld [vmem:[%s1 + $0x70] sm:$0xf]
  %v80 = vld [vmem:[%s1 + $0x74] sm:$0xf]
  %v81 = vld [vmem:[%s1 + $0x78] sm:$0xf]
  %v82 = vld [vmem:[%s1 + $0x7c] sm:$0xf]
  %v83 = vld [vmem:[%s1 + $0x80] sm:$0xf]
  %v84 = vld [vmem:[%s1 + $0x84] sm:$0xf]
  %v85 = vld [vmem:[%s1 + $0x88] sm:$0xf]
  %v86 = vld [vmem:[%s1 + $0x8c] sm:$0xf]
  %v87 = vld [vmem:[%s1 + $0x90] sm:$0xf]
  %v88 = vld [vmem:[%s1 + $0x94] sm:$0xf]
  %v89 = vld [vmem:[%s1 + $0x98] sm:$0xf]
  %v90 = vld [vmem:[%s1 + $0x9c] sm:$0xf]
  %v91 = vld [vmem:[%s1 + $0xa0] sm:$0xf]
  %v92 = vld [vmem:[%s1 + $0xa4] sm:$0xf]
  %v93 = vld [vmem:[%s1 + $0xa8] sm:$0xf]
  %v94 = vld [vmem:[%s1 + $0xac] sm:$0xf]
  %v95 = vld [vmem:[%s1 + $0xb0] sm:$0xf]
  %v96 = vld [vmem:[%s1 + $0xb4] sm:$0xf]
  %v97 = vld [vmem:[%s1 + $0xb8] sm:$0xf]
  %v98 = vld [vmem:[%s1 + $0xbc] sm:$0xf]
  %v99 = vld [vmem:[%s1 + $0xc0] sm:$0xf]
  %v100 = vld [vmem:[%s1 + $0xc4] sm:$0xf]
  %v101 = vld [vmem:[%s1 + $0xc8] sm:$0xf]
  %v102 = vld [vmem:[%s1 + $0xcc] sm:$0xf]
  %v103 = vld [vmem:[%s1 + $0xd0] sm:$0xf]
  %v104 = vld [vmem:[%s1 + $0xd4] sm:$0xf]
  %v105 = vld [vmem:[%s1 + $0xd8] sm:$0xf]
  %v106 = vld [vmem:[%s1 + $0xdc] sm:$0xf]
  %v107 = vld [vmem:[%s1 + $0xe0] sm:$0xf]
  %v108 = vld [vmem:[%s1 + $0xe4] sm:$0xf]
  %v109 = vld [vmem:[%s1 + $0xe8] sm:$0xf]
  %v110 = vld [vmem:[%s1 + $0xec] sm:$0xf]
  %v111 = vld [vmem:[%s1 + $0xf0] sm:$0xf]
  %v112 = vld [vmem:[%s1 + $0xf4] sm:$0xf]
  %v113 = vld [vmem:[%s1 + $0xf8] sm:$0xf]
  %v114 = vld [vmem:[%s1 + $0xfc] sm:$0xf]
  %v131 = vunpack.c.l.b16 %v35
  %v132 = vunpack.c.h.b16 %v35
  %v133 = vunpack.c.l.b16 %v36
  %v134 = vunpack.c.h.b16 %v36
  %v135 = vunpack.c.l.b16 %v37
  %v136 = vunpack.c.h.b16 %v37
  %v137 = vunpack.c.l.b16 %v38
  %v138 = vunpack.c.h.b16 %v38
  %v139 = vunpack.c.l.b16 %v39
  %v140 = vunpack.c.h.b16 %v39
  %v141 = vunpack.c.l.b16 %v40
  %v142 = vunpack.c.h.b16 %v40
  %v143 = vunpack.c.l.b16 %v41
  %v144 = vunpack.c.h.b16 %v41
  %v145 = vunpack.c.l.b16 %v42
  %v146 = vunpack.c.h.b16 %v42
  %v147 = vunpack.c.l.b16 %v43
  %v148 = vunpack.c.h.b16 %v43
  %v149 = vunpack.c.l.b16 %v44
  %v150 = vunpack.c.h.b16 %v44
  %v151 = vunpack.c.l.b16 %v45
  %v152 = vunpack.c.h.b16 %v45
  %v153 = vunpack.c.l.b16 %v46
  %v154 = vunpack.c.h.b16 %v46
  %v155 = vunpack.c.l.b16 %v47
  %v156 = vunpack.c.h.b16 %v47
  %v157 = vunpack.c.l.b16 %v48
  %v158 = vunpack.c.h.b16 %v48
  %v159 = vunpack.c.l.b16 %v49
  %v160 = vunpack.c.h.b16 %v49
  %v161 = vunpack.c.l.b16 %v50
  %v162 = vunpack.c.h.b16 %v50
  %v163 = vpack.c.b16 %v135, %v131
  %v164 = vpack.c.b16 %v136, %v132
  %v165 = vpack.c.b16 %v137, %v133
  %v166 = vpack.c.b16 %v138, %v134
  %v167 = vpack.c.b16 %v143, %v139
  %v168 = vpack.c.b16 %v144, %v140
  %v169 = vpack.c.b16 %v145, %v141
  %v170 = vpack.c.b16 %v146, %v142
  %v171 = vpack.c.b16 %v151, %v147
  %v172 = vpack.c.b16 %v152, %v148
  %v173 = vpack.c.b16 %v153, %v149
  %v174 = vpack.c.b16 %v154, %v150
  %v175 = vpack.c.b16 %v159, %v155
  %v176 = vpack.c.b16 %v160, %v156
  %v177 = vpack.c.b16 %v161, %v157
  %v178 = vpack.c.b16 %v162, %v158
  %v259 = vunpack.c.l.b16 %v51
  %v260 = vunpack.c.l.b16 %v52
  %v261 = vunpack.c.l.b16 %v53
  %v262 = vunpack.c.l.b16 %v54
  %v263 = vunpack.c.l.b16 %v55
  %v264 = vunpack.c.l.b16 %v56
  %v265 = vunpack.c.l.b16 %v57
  %v266 = vunpack.c.l.b16 %v58
  %v267 = vunpack.c.l.b16 %v59
  %v268 = vunpack.c.l.b16 %v60
  %v269 = vunpack.c.l.b16 %v61
  %v270 = vunpack.c.l.b16 %v62
  %v271 = vunpack.c.l.b16 %v63
  %v272 = vunpack.c.l.b16 %v64
  %v273 = vunpack.c.l.b16 %v65
  %v274 = vunpack.c.l.b16 %v66
  %v275 = vunpack.c.l.b16 %v67
  %v276 = vunpack.c.l.b16 %v68
  %v277 = vunpack.c.l.b16 %v69
  %v278 = vunpack.c.l.b16 %v70
  %v279 = vunpack.c.l.b16 %v71
  %v280 = vunpack.c.l.b16 %v72
  %v281 = vunpack.c.l.b16 %v73
  %v282 = vunpack.c.l.b16 %v74
  %v283 = vunpack.c.l.b16 %v75
  %v284 = vunpack.c.l.b16 %v76
  %v285 = vunpack.c.l.b16 %v77
  %v286 = vunpack.c.l.b16 %v78
  %v287 = vunpack.c.l.b16 %v79
  %v288 = vunpack.c.l.b16 %v80
  %v289 = vunpack.c.l.b16 %v81
  %v290 = vunpack.c.l.b16 %v82
  %v291 = vunpack.c.l.b16 %v83
  %v292 = vunpack.c.l.b16 %v84
  %v293 = vunpack.c.l.b16 %v85
  %v294 = vunpack.c.l.b16 %v86
  %v295 = vunpack.c.l.b16 %v87
  %v296 = vunpack.c.l.b16 %v88
  %v297 = vunpack.c.l.b16 %v89
  %v298 = vunpack.c.l.b16 %v90
  %v299 = vunpack.c.l.b16 %v91
  %v300 = vunpack.c.l.b16 %v92
  %v301 = vunpack.c.l.b16 %v93
  %v302 = vunpack.c.l.b16 %v94
  %v303 = vunpack.c.l.b16 %v95
  %v304 = vunpack.c.l.b16 %v96
  %v305 = vunpack.c.l.b16 %v97
  %v306 = vunpack.c.l.b16 %v98
  %v307 = vunpack.c.l.b16 %v99
  %v308 = vunpack.c.l.b16 %v100
  %v309 = vunpack.c.l.b16 %v101
  %v310 = vunpack.c.l.b16 %v102
  %v311 = vunpack.c.l.b16 %v103
  %v312 = vunpack.c.l.b16 %v104
  %v313 = vunpack.c.l.b16 %v105
  %v314 = vunpack.c.l.b16 %v106
  %v315 = vunpack.c.l.b16 %v107
  %v316 = vunpack.c.l.b16 %v108
  %v317 = vunpack.c.l.b16 %v109
  %v318 = vunpack.c.l.b16 %v110
  %v319 = vunpack.c.l.b16 %v111
  %v320 = vunpack.c.l.b16 %v112
  %v321 = vunpack.c.l.b16 %v113
  %v322 = vunpack.c.l.b16 %v114
  %v323 = vpack.c.b16 %v260, %v259
  %v324 = vpack.c.b16 %v262, %v261
  %v325 = vpack.c.b16 %v264, %v263
  %v326 = vpack.c.b16 %v266, %v265
  %v327 = vpack.c.b16 %v268, %v267
  %v328 = vpack.c.b16 %v270, %v269
  %v329 = vpack.c.b16 %v272, %v271
  %v330 = vpack.c.b16 %v274, %v273
  %v331 = vpack.c.b16 %v276, %v275
  %v332 = vpack.c.b16 %v278, %v277
  %v333 = vpack.c.b16 %v280, %v279
  %v334 = vpack.c.b16 %v282, %v281
  %v335 = vpack.c.b16 %v284, %v283
  %v336 = vpack.c.b16 %v286, %v285
  %v337 = vpack.c.b16 %v288, %v287
  %v338 = vpack.c.b16 %v290, %v289
  %v339 = vpack.c.b16 %v292, %v291
  %v340 = vpack.c.b16 %v294, %v293
  %v341 = vpack.c.b16 %v296, %v295
  %v342 = vpack.c.b16 %v298, %v297
  %v343 = vpack.c.b16 %v300, %v299
  %v344 = vpack.c.b16 %v302, %v301
  %v345 = vpack.c.b16 %v304, %v303
  %v346 = vpack.c.b16 %v306, %v305
  %v347 = vpack.c.b16 %v308, %v307
  %v348 = vpack.c.b16 %v310, %v309
  %v349 = vpack.c.b16 %v312, %v311
  %v350 = vpack.c.b16 %v314, %v313
  %v351 = vpack.c.b16 %v316, %v315
  %v352 = vpack.c.b16 %v318, %v317
  %v353 = vpack.c.b16 %v320, %v319
  %v354 = vpack.c.b16 %v322, %v321
  %387 = vmatprep.subr.bf16.mxu0 0
  %388 = vmatpush1.bf16.msra.mxu0 %v330
  %389 = vmatprep.subr.bf16.mxu0 0
  %390 = vmatpush1.bf16.msra.mxu0 %v329
  %391 = vmatprep.subr.bf16.mxu0 0
  %392 = vmatpush1.bf16.msra.mxu0 %v328
  %393 = vmatprep.subr.bf16.mxu0 0
  %394 = vmatpush1.bf16.msra.mxu0 %v327
  %395 = vmatprep.subr.bf16.mxu0 0
  %396 = vmatpush1.bf16.msra.mxu0 %v326
  %397 = vmatprep.subr.bf16.mxu0 0
  %398 = vmatpush1.bf16.msra.mxu0 %v325
  %399 = vmatprep.subr.bf16.mxu0 0
  %400 = vmatpush1.bf16.msra.mxu0 %v324
  %401 = vmatprep.subr.bf16.mxu0 0
  %402 = vmatpush1.bf16.msra.mxu0 %v323
  %403 = vmatprep.subr.bf16.mxu0 0
  %404 = vmatpush2.bf16.msra.mxu0 %v338
  %405 = vmatprep.subr.bf16.mxu0 0
  %406 = vmatpush2.bf16.msra.mxu0 %v337
  %407 = vmatprep.subr.bf16.mxu0 0
  %408 = vmatpush2.bf16.msra.mxu0 %v336
  %409 = vmatprep.subr.bf16.mxu0 0
  %410 = vmatpush2.bf16.msra.mxu0 %v335
  %411 = vmatprep.subr.bf16.mxu0 0
  %412 = vmatpush2.bf16.msra.mxu0 %v334
  %413 = vmatprep.subr.bf16.mxu0 0
  %414 = vmatpush2.bf16.msra.mxu0 %v333
  %415 = vmatprep.subr.bf16.mxu0 0
  %416 = vmatpush2.bf16.msra.mxu0 %v332
  %417 = vmatprep.subr.bf16.mxu0 0
  %418 = vmatpush2.bf16.msra.mxu0 %v331
  %419 = vmatprep.mubr.bf16.mxu0 %v164
  %420 = vmatmul.mubr.bf16.gmra.mxu0 %v163
  %v421 = vpop.f32.mrf.mxu0
  %v422 = vadd.f32 0.0, %v421
  %v423 = vpop.f32.mrf.mxu0
  %v424 = vpop.f32.mrf.mxu0
  %v425 = vadd.f32 0.0, %v424
  %v426 = vpop.f32.mrf.mxu0
  %427 = vmatprep.mubr.bf16.mxu0 %v168
  %428 = vmatmul.mubr.bf16.gmra.mxu0 %v167
  %v429 = vpop.f32.mrf.mxu0
  %v430 = vadd.f32 0.0, %v429
  %v431 = vpop.f32.mrf.mxu0
  %v432 = vpop.f32.mrf.mxu0
  %v433 = vadd.f32 0.0, %v432
  %v434 = vpop.f32.mrf.mxu0
  %435 = vmatprep.mubr.bf16.mxu0 %v172
  %436 = vmatmul.mubr.bf16.gmra.mxu0 %v171
  %v437 = vpop.f32.mrf.mxu0
  %v438 = vadd.f32 0.0, %v437
  %v439 = vpop.f32.mrf.mxu0
  %v440 = vpop.f32.mrf.mxu0
  %v441 = vadd.f32 0.0, %v440
  %v442 = vpop.f32.mrf.mxu0
  %443 = vmatprep.mubr.bf16.mxu0 %v176
  %444 = vmatmul.mubr.bf16.gmra.mxu0 %v175
  %v445 = vpop.f32.mrf.mxu0
  %v446 = vadd.f32 0.0, %v445
  %v447 = vpop.f32.mrf.mxu0
  %v448 = vpop.f32.mrf.mxu0
  %v449 = vadd.f32 0.0, %v448
  %v450 = vpop.f32.mrf.mxu0
  %451 = vdwg.mxu0
  %452 = vmatprep.subr.bf16.mxu0 0
  %453 = vmatpush1.bf16.msra.mxu0 %v346
  %454 = vmatprep.subr.bf16.mxu0 0
  %455 = vmatpush1.bf16.msra.mxu0 %v345
  %456 = vmatprep.subr.bf16.mxu0 0
  %457 = vmatpush1.bf16.msra.mxu0 %v344
  %458 = vmatprep.subr.bf16.mxu0 0
  %459 = vmatpush1.bf16.msra.mxu0 %v343
  %460 = vmatprep.subr.bf16.mxu0 0
  %461 = vmatpush1.bf16.msra.mxu0 %v342
  %462 = vmatprep.subr.bf16.mxu0 0
  %463 = vmatpush1.bf16.msra.mxu0 %v341
  %464 = vmatprep.subr.bf16.mxu0 0
  %465 = vmatpush1.bf16.msra.mxu0 %v340
  %466 = vmatprep.subr.bf16.mxu0 0
  %467 = vmatpush1.bf16.msra.mxu0 %v339
  %468 = vmatprep.subr.bf16.mxu0 0
  %469 = vmatpush2.bf16.msra.mxu0 %v354
  %470 = vmatprep.subr.bf16.mxu0 0
  %471 = vmatpush2.bf16.msra.mxu0 %v353
  %472 = vmatprep.subr.bf16.mxu0 0
  %473 = vmatpush2.bf16.msra.mxu0 %v352
  %474 = vmatprep.subr.bf16.mxu0 0
  %475 = vmatpush2.bf16.msra.mxu0 %v351
  %476 = vmatprep.subr.bf16.mxu0 0
  %477 = vmatpush2.bf16.msra.mxu0 %v350
  %478 = vmatprep.subr.bf16.mxu0 0
  %479 = vmatpush2.bf16.msra.mxu0 %v349
  %480 = vmatprep.subr.bf16.mxu0 0
  %481 = vmatpush2.bf16.msra.mxu0 %v348
  %482 = vmatprep.subr.bf16.mxu0 0
  %483 = vmatpush2.bf16.msra.mxu0 %v347
  %484 = vmatprep.mubr.bf16.mxu0 %v166
  %485 = vmatmul.mubr.bf16.gmra.mxu0 %v165
  %v486 = vpop.f32.mrf.mxu0
  %v487 = vadd.f32 %v422, %v486
  %v488 = vpop.f32.mrf.mxu0
  %v489 = vpop.f32.mrf.mxu0
  %v490 = vadd.f32 %v425, %v489
  %v491 = vpop.f32.mrf.mxu0
  %492 = vmatprep.mubr.bf16.mxu0 %v170
  %493 = vmatmul.mubr.bf16.gmra.mxu0 %v169
  %v494 = vpop.f32.mrf.mxu0
  %v495 = vadd.f32 %v430, %v494
  %v496 = vpop.f32.mrf.mxu0
  %v497 = vpop.f32.mrf.mxu0
  %v498 = vadd.f32 %v433, %v497
  %v499 = vpop.f32.mrf.mxu0
  %500 = vmatprep.mubr.bf16.mxu0 %v174
  %501 = vmatmul.mubr.bf16.gmra.mxu0 %v173
  %v502 = vpop.f32.mrf.mxu0
  %v503 = vadd.f32 %v438, %v502
  %v504 = vpop.f32.mrf.mxu0
  %v505 = vpop.f32.mrf.mxu0
  %v506 = vadd.f32 %v441, %v505
  %v507 = vpop.f32.mrf.mxu0
  %508 = vmatprep.mubr.bf16.mxu0 %v178
  %509 = vmatmul.mubr.bf16.gmra.mxu0 %v177
  %v510 = vpop.f32.mrf.mxu0
  %v511 = vadd.f32 %v446, %v510
  %v512 = vpop.f32.mrf.mxu0
  %v513 = vpop.f32.mrf.mxu0
  %v514 = vadd.f32 %v449, %v513
  %v515 = vpop.f32.mrf.mxu0
  %516 = vdwg.mxu0
  %v517 = vadd.f32 %v27, %v487
  %v518 = vadd.f32 %v28, %v490
  %v519 = vadd.f32 %v29, %v495
  %v520 = vadd.f32 %v30, %v498
  %v521 = vadd.f32 %v31, %v503
  %v522 = vadd.f32 %v32, %v506
  %v523 = vadd.f32 %v33, %v511
  %v524 = vadd.f32 %v34, %v514
  %525 = vst [vmem:[#allocation2] sm:$0xff] %v517
  %526 = vst [vmem:[#allocation2 + $0x8] sm:$0xff] %v518
  %527 = vst [vmem:[#allocation2 + $0x10] sm:$0xff] %v519
  %528 = vst [vmem:[#allocation2 + $0x18] sm:$0xff] %v520
  %529 = vst [vmem:[#allocation2 + $0x20] sm:$0xff] %v521
  %530 = vst [vmem:[#allocation2 + $0x28] sm:$0xff] %v522
  %531 = vst [vmem:[#allocation2 + $0x30] sm:$0xff] %v523
  %532 = vst [vmem:[#allocation2 + $0x38] sm:$0xff] %v524
  // Predicated region
  $region18: #{net_forward.5} parent=0 // pred_check
    %p533 = pneg %p15
  $region19: #{net_forward.5} parent=0 // pred_check_branch
    %535 = sbr.rel (%p533) target = $region21
  $region20: #{net_forward.5} parent=0 // pred_region
    %v536 = vld [vmem:[#allocation2] sm:$0xff]
    %v537 = vld [vmem:[#allocation2 + $0x8] sm:$0xff]
    %v538 = vld [vmem:[#allocation2 + $0x10] sm:$0xff]
    %v539 = vld [vmem:[#allocation2 + $0x18] sm:$0xff]
    %v540 = vld [vmem:[#allocation2 + $0x20] sm:$0xff]
    %v541 = vld [vmem:[#allocation2 + $0x28] sm:$0xff]
    %v542 = vld [vmem:[#allocation2 + $0x30] sm:$0xff]
    %v543 = vld [vmem:[#allocation2 + $0x38] sm:$0xff]
    %v544 = vld [vmem:[%s2] sm:$0x1]
    %v546 = vlaneseq
    %v547 = vshrl.u32 %v546, 7
    %v548 = vsub.s32 0, %v547
    %v549 = vrot.slane %v544, %v548
    %v551 = vadd.f32 %v536, %v549
    %v552 = vadd.f32 %v537, %v549
    %v553 = vadd.f32 %v538, %v549
    %v554 = vadd.f32 %v539, %v549
    %v555 = vadd.f32 %v540, %v549
    %v556 = vadd.f32 %v541, %v549
    %v557 = vadd.f32 %v542, %v549
    %v558 = vadd.f32 %v543, %v549
    %v559 = vmax.f32 %v551, 0.0
    %v560 = vmax.f32 %v552, 0.0
    %v561 = vmax.f32 %v553, 0.0
    %v562 = vmax.f32 %v554, 0.0
    %v563 = vmax.f32 %v555, 0.0
    %v564 = vmax.f32 %v556, 0.0
    %v565 = vmax.f32 %v557, 0.0
    %v566 = vmax.f32 %v558, 0.0
    %v567 = vpack.c.bf16 %v560, %v559
    %v568 = vpack.c.bf16 %v562, %v561
    %v569 = vpack.c.bf16 %v564, %v563
    %v570 = vpack.c.bf16 %v566, %v565
    %v575 = vunpack.c.l.b16 %v567
    %v576 = vunpack.c.h.b16 %v567
    %v577 = vunpack.c.l.b16 %v568
    %v578 = vunpack.c.h.b16 %v568
    %v579 = vunpack.c.l.b16 %v569
    %v580 = vunpack.c.h.b16 %v569
    %v581 = vunpack.c.l.b16 %v570
    %v582 = vunpack.c.h.b16 %v570
    %v583 = vpack.c.b16 %v575, %v575
    %v584 = vpack.c.b16 %v576, %v576
    %v585 = vpack.c.b16 %v577, %v577
    %v586 = vpack.c.b16 %v578, %v578
    %v587 = vpack.c.b16 %v579, %v579
    %v588 = vpack.c.b16 %v580, %v580
    %v589 = vpack.c.b16 %v581, %v581
    %v590 = vpack.c.b16 %v582, %v582
    %599 = vst [vmem:[%s3] sm:$0xf] %v583
    %600 = vst [vmem:[%s3 + $0x4] sm:$0xf] %v584
    %601 = vst [vmem:[%s3 + $0x8] sm:$0xf] %v585
    %602 = vst [vmem:[%s3 + $0xc] sm:$0xf] %v586
    %603 = vst [vmem:[%s3 + $0x10] sm:$0xf] %v587
    %604 = vst [vmem:[%s3 + $0x14] sm:$0xf] %v588
    %605 = vst [vmem:[%s3 + $0x18] sm:$0xf] %v589
    %606 = vst [vmem:[%s3 + $0x1c] sm:$0xf] %v590
  $region21: #{net_forward.5} parent=0 // pred_fallthru
    _
  // Predicated region
  $region22: #{net_forward.5} parent=0 // pred_check
    _
  $region23: #{net_forward.5} parent=0 // pred_check_branch
    %608 = sbr.rel (0) target = $region25
  $region24: #{net_forward.5} parent=0 // pred_region
    _
  $region25: #{net_forward.5} parent=0 // pred_fallthru
    _
  // Predicated region
  $region26: #{net_forward.5} parent=0 // pred_check
    _
  $region27: #{net_forward.5} parent=0 // pred_check_branch
    %610 = sbr.rel (0) target = $region29
  $region28: #{net_forward.5} parent=0 // pred_region
    _
  $region29: #{net_forward.5} parent=0 // pred_fallthru
    _

// kernel: net_forward.6
$region0: #{net_forward.6}
  #allocation0 [shape = 'u32[]', space=smem, size = 0x4, offset = 0x4, fixed_abs, tag = 'smem constant byte address 0x4 - core index']
  #allocation1 [shape = 'u32[144,128]{1,0:T(1,128)}', space=vmem, size = 0x12000, scoped, tag = 'internal scratch']
  #allocation2 [shape = 'f32[24,128]{1,0:T(8,128)}', space=vmem, size = 0x3000, scoped, tag = 'scratch operand']
  %s0 = inlined_call_operand.vmem [shape: bf16[24,640], index: 0, kind: input, shape index: {}]
  %s1 = inlined_call_operand.vmem [shape: bf16[640,128], index: 1, kind: input, shape index: {}]
  %s2 = inlined_call_operand.vmem [shape: f32[1,128], index: 2, kind: input, shape index: {}]
  %s3 = inlined_call_operand.vmem [shape: bf16[24,128], index: 3, kind: output, shape index: {}]
  %s4 = sld [smem:[#allocation0]]
  $region30: #{net_forward.6} parent=0
    _
  %s6 = ssub.s32 1, %s4
  %s7 = scalar_select 0, %s6, %s4
  // Predicated region
  $region2: #{net_forward.6} parent=0 // pred_check
    _
  $region3: #{net_forward.6} parent=0 // pred_check_branch
    %9 = sbr.rel (0) target = $region5
  $region4: #{net_forward.6} parent=0 // pred_region
    _
  $region5: #{net_forward.6} parent=0 // pred_fallthru
    _
  // Predicated region
  $region6: #{net_forward.6} parent=0 // pred_check
    _
  $region7: #{net_forward.6} parent=0 // pred_check_branch
    %11 = sbr.rel (0) target = $region9
  $region8: #{net_forward.6} parent=0 // pred_region
    _
  $region9: #{net_forward.6} parent=0 // pred_fallthru
    _
  // Predicated region
  $region10: #{net_forward.6} parent=0 // pred_check
    _
  $region11: #{net_forward.6} parent=0 // pred_check_branch
    %13 = sbr.rel (0) target = $region13
  $region12: #{net_forward.6} parent=0 // pred_region
    _
  $region13: #{net_forward.6} parent=0 // pred_fallthru
    _
  %p15 = scmp.eq.s32.totalorder 0, 0
  // Predicated region
  $region14: #{net_forward.6} parent=0 // pred_check
    %p16 = pneg %p15
  $region15: #{net_forward.6} parent=0 // pred_check_branch
    %18 = sbr.rel (%p16) target = $region17
  $region16: #{net_forward.6} parent=0 // pred_region
    %19 = vst [vmem:[#allocation2] sm:$0xff] 0.0
    %20 = vst [vmem:[#allocation2 + $0x8] sm:$0xff] 0.0
    %21 = vst [vmem:[#allocation2 + $0x10] sm:$0xff] 0.0
  $region17: #{net_forward.6} parent=0 // pred_fallthru
    _
  %v22 = vld [vmem:[#allocation2] sm:$0xff]
  %v23 = vld [vmem:[#allocation2 + $0x8] sm:$0xff]
  %v24 = vld [vmem:[#allocation2 + $0x10] sm:$0xff]
  %v25 = vld [vmem:[%s0] sm:$0xff]
  %v26 = vld [vmem:[%s0 + $0x8] sm:$0xff]
  %v27 = vld [vmem:[%s0 + $0x10] sm:$0xf]
  %v28 = vld [vmem:[%s0 + $0x14] sm:$0xff]
  %v29 = vld [vmem:[%s0 + $0x1c] sm:$0xff]
  %v30 = vld [vmem:[%s0 + $0x24] sm:$0xf]
  %v31 = vld [vmem:[%s0 + $0x28] sm:$0xff]
  %v32 = vld [vmem:[%s0 + $0x30] sm:$0xff]
  %v33 = vld [vmem:[%s0 + $0x38] sm:$0xf]
  %v34 = vld [vmem:[%s1] sm:$0xf]
  %v35 = vld [vmem:[%s1 + $0x4] sm:$0xf]
  %v36 = vld [vmem:[%s1 + $0x8] sm:$0xf]
  %v37 = vld [vmem:[%s1 + $0xc] sm:$0xf]
  %v38 = vld [vmem:[%s1 + $0x10] sm:$0xf]
  %v39 = vld [vmem:[%s1 + $0x14] sm:$0xf]
  %v40 = vld [vmem:[%s1 + $0x18] sm:$0xf]
  %v41 = vld [vmem:[%s1 + $0x1c] sm:$0xf]
  %v42 = vld [vmem:[%s1 + $0x20] sm:$0xf]
  %v43 = vld [vmem:[%s1 + $0x24] sm:$0xf]
  %v44 = vld [vmem:[%s1 + $0x28] sm:$0xf]
  %v45 = vld [vmem:[%s1 + $0x2c] sm:$0xf]
  %v46 = vld [vmem:[%s1 + $0x30] sm:$0xf]
  %v47 = vld [vmem:[%s1 + $0x34] sm:$0xf]
  %v48 = vld [vmem:[%s1 + $0x38] sm:$0xf]
  %v49 = vld [vmem:[%s1 + $0x3c] sm:$0xf]
  %v50 = vld [vmem:[%s1 + $0x40] sm:$0xf]
  %v51 = vld [vmem:[%s1 + $0x44] sm:$0xf]
  %v52 = vld [vmem:[%s1 + $0x48] sm:$0xf]
  %v53 = vld [vmem:[%s1 + $0x4c] sm:$0xf]
  %v54 = vld [vmem:[%s1 + $0x50] sm:$0xf]
  %v55 = vld [vmem:[%s1 + $0x54] sm:$0xf]
  %v56 = vld [vmem:[%s1 + $0x58] sm:$0xf]
  %v57 = vld [vmem:[%s1 + $0x5c] sm:$0xf]
  %v58 = vld [vmem:[%s1 + $0x60] sm:$0xf]
  %v59 = vld [vmem:[%s1 + $0x64] sm:$0xf]
  %v60 = vld [vmem:[%s1 + $0x68] sm:$0xf]
  %v61 = vld [vmem:[%s1 + $0x6c] sm:$0xf]
  %v62 = vld [vmem:[%s1 + $0x70] sm:$0xf]
  %v63 = vld [vmem:[%s1 + $0x74] sm:$0xf]
  %v64 = vld [vmem:[%s1 + $0x78] sm:$0xf]
  %v65 = vld [vmem:[%s1 + $0x7c] sm:$0xf]
  %v66 = vld [vmem:[%s1 + $0x80] sm:$0xf]
  %v67 = vld [vmem:[%s1 + $0x84] sm:$0xf]
  %v68 = vld [vmem:[%s1 + $0x88] sm:$0xf]
  %v69 = vld [vmem:[%s1 + $0x8c] sm:$0xf]
  %v70 = vld [vmem:[%s1 + $0x90] sm:$0xf]
  %v71 = vld [vmem:[%s1 + $0x94] sm:$0xf]
  %v72 = vld [vmem:[%s1 + $0x98] sm:$0xf]
  %v73 = vld [vmem:[%s1 + $0x9c] sm:$0xf]
  %v74 = vld [vmem:[%s1 + $0xa0] sm:$0xf]
  %v75 = vld [vmem:[%s1 + $0xa4] sm:$0xf]
  %v76 = vld [vmem:[%s1 + $0xa8] sm:$0xf]
  %v77 = vld [vmem:[%s1 + $0xac] sm:$0xf]
  %v78 = vld [vmem:[%s1 + $0xb0] sm:$0xf]
  %v79 = vld [vmem:[%s1 + $0xb4] sm:$0xf]
  %v80 = vld [vmem:[%s1 + $0xb8] sm:$0xf]
  %v81 = vld [vmem:[%s1 + $0xbc] sm:$0xf]
  %v82 = vld [vmem:[%s1 + $0xc0] sm:$0xf]
  %v83 = vld [vmem:[%s1 + $0xc4] sm:$0xf]
  %v84 = vld [vmem:[%s1 + $0xc8] sm:$0xf]
  %v85 = vld [vmem:[%s1 + $0xcc] sm:$0xf]
  %v86 = vld [vmem:[%s1 + $0xd0] sm:$0xf]
  %v87 = vld [vmem:[%s1 + $0xd4] sm:$0xf]
  %v88 = vld [vmem:[%s1 + $0xd8] sm:$0xf]
  %v89 = vld [vmem:[%s1 + $0xdc] sm:$0xf]
  %v90 = vld [vmem:[%s1 + $0xe0] sm:$0xf]
  %v91 = vld [vmem:[%s1 + $0xe4] sm:$0xf]
  %v92 = vld [vmem:[%s1 + $0xe8] sm:$0xf]
  %v93 = vld [vmem:[%s1 + $0xec] sm:$0xf]
  %v94 = vld [vmem:[%s1 + $0xf0] sm:$0xf]
  %v95 = vld [vmem:[%s1 + $0xf4] sm:$0xf]
  %v96 = vld [vmem:[%s1 + $0xf8] sm:$0xf]
  %v97 = vld [vmem:[%s1 + $0xfc] sm:$0xf]
  %v98 = vld [vmem:[%s1 + $0x100] sm:$0xf]
  %v99 = vld [vmem:[%s1 + $0x104] sm:$0xf]
  %v100 = vld [vmem:[%s1 + $0x108] sm:$0xf]
  %v101 = vld [vmem:[%s1 + $0x10c] sm:$0xf]
  %v102 = vld [vmem:[%s1 + $0x110] sm:$0xf]
  %v103 = vld [vmem:[%s1 + $0x114] sm:$0xf]
  %v104 = vld [vmem:[%s1 + $0x118] sm:$0xf]
  %v105 = vld [vmem:[%s1 + $0x11c] sm:$0xf]
  %v106 = vld [vmem:[%s1 + $0x120] sm:$0xf]
  %v107 = vld [vmem:[%s1 + $0x124] sm:$0xf]
  %v108 = vld [vmem:[%s1 + $0x128] sm:$0xf]
  %v109 = vld [vmem:[%s1 + $0x12c] sm:$0xf]
  %v110 = vld [vmem:[%s1 + $0x130] sm:$0xf]
  %v111 = vld [vmem:[%s1 + $0x134] sm:$0xf]
  %v112 = vld [vmem:[%s1 + $0x138] sm:$0xf]
  %v113 = vld [vmem:[%s1 + $0x13c] sm:$0xf]
  %v123 = vunpack.c.l.b16 %v25
  %v124 = vunpack.c.h.b16 %v25
  %v125 = vunpack.c.l.b16 %v26
  %v126 = vunpack.c.h.b16 %v26
  %v127 = vunpack.c.l.b16 %v27
  %v128 = vunpack.c.l.b16 %v28
  %v129 = vunpack.c.h.b16 %v28
  %v130 = vunpack.c.l.b16 %v29
  %v131 = vunpack.c.h.b16 %v29
  %v132 = vunpack.c.l.b16 %v30
  %v133 = vunpack.c.l.b16 %v31
  %v134 = vunpack.c.h.b16 %v31
  %v135 = vunpack.c.l.b16 %v32
  %v136 = vunpack.c.h.b16 %v32
  %v137 = vunpack.c.l.b16 %v33
  %v138 = vpack.c.b16 %v128, %v123
  %v139 = vpack.c.b16 %v129, %v124
  %v140 = vpack.c.b16 %v130, %v125
  %v141 = vpack.c.b16 %v131, %v126
  %v142 = vpack.c.b16 %v132, %v127
  %v143 = vpack.c.b16 %v133, %v133
  %v144 = vpack.c.b16 %v134, %v134
  %v145 = vpack.c.b16 %v135, %v135
  %v146 = vpack.c.b16 %v136, %v136
  %v147 = vpack.c.b16 %v137, %v137
  %v238 = vunpack.c.l.b16 %v34
  %v239 = vunpack.c.l.b16 %v35
  %v240 = vunpack.c.l.b16 %v36
  %v241 = vunpack.c.l.b16 %v37
  %v242 = vunpack.c.l.b16 %v38
  %v243 = vunpack.c.l.b16 %v39
  %v244 = vunpack.c.l.b16 %v40
  %v245 = vunpack.c.l.b16 %v41
  %v246 = vunpack.c.l.b16 %v42
  %v247 = vunpack.c.l.b16 %v43
  %v248 = vunpack.c.l.b16 %v44
  %v249 = vunpack.c.l.b16 %v45
  %v250 = vunpack.c.l.b16 %v46
  %v251 = vunpack.c.l.b16 %v47
  %v252 = vunpack.c.l.b16 %v48
  %v253 = vunpack.c.l.b16 %v49
  %v254 = vunpack.c.l.b16 %v50
  %v255 = vunpack.c.l.b16 %v51
  %v256 = vunpack.c.l.b16 %v52
  %v257 = vunpack.c.l.b16 %v53
  %v258 = vunpack.c.l.b16 %v54
  %v259 = vunpack.c.l.b16 %v55
  %v260 = vunpack.c.l.b16 %v56
  %v261 = vunpack.c.l.b16 %v57
  %v262 = vunpack.c.l.b16 %v58
  %v263 = vunpack.c.l.b16 %v59
  %v264 = vunpack.c.l.b16 %v60
  %v265 = vunpack.c.l.b16 %v61
  %v266 = vunpack.c.l.b16 %v62
  %v267 = vunpack.c.l.b16 %v63
  %v268 = vunpack.c.l.b16 %v64
  %v269 = vunpack.c.l.b16 %v65
  %v270 = vunpack.c.l.b16 %v66
  %v271 = vunpack.c.l.b16 %v67
  %v272 = vunpack.c.l.b16 %v68
  %v273 = vunpack.c.l.b16 %v69
  %v274 = vunpack.c.l.b16 %v70
  %v275 = vunpack.c.l.b16 %v71
  %v276 = vunpack.c.l.b16 %v72
  %v277 = vunpack.c.l.b16 %v73
  %v278 = vunpack.c.l.b16 %v74
  %v279 = vunpack.c.l.b16 %v75
  %v280 = vunpack.c.l.b16 %v76
  %v281 = vunpack.c.l.b16 %v77
  %v282 = vunpack.c.l.b16 %v78
  %v283 = vunpack.c.l.b16 %v79
  %v284 = vunpack.c.l.b16 %v80
  %v285 = vunpack.c.l.b16 %v81
  %v286 = vunpack.c.l.b16 %v82
  %v287 = vunpack.c.l.b16 %v83
  %v288 = vunpack.c.l.b16 %v84
  %v289 = vunpack.c.l.b16 %v85
  %v290 = vunpack.c.l.b16 %v86
  %v291 = vunpack.c.l.b16 %v87
  %v292 = vunpack.c.l.b16 %v88
  %v293 = vunpack.c.l.b16 %v89
  %v294 = vunpack.c.l.b16 %v90
  %v295 = vunpack.c.l.b16 %v91
  %v296 = vunpack.c.l.b16 %v92
  %v297 = vunpack.c.l.b16 %v93
  %v298 = vunpack.c.l.b16 %v94
  %v299 = vunpack.c.l.b16 %v95
  %v300 = vunpack.c.l.b16 %v96
  %v301 = vunpack.c.l.b16 %v97
  %v302 = vunpack.c.l.b16 %v98
  %v303 = vunpack.c.l.b16 %v99
  %v304 = vunpack.c.l.b16 %v100
  %v305 = vunpack.c.l.b16 %v101
  %v306 = vunpack.c.l.b16 %v102
  %v307 = vunpack.c.l.b16 %v103
  %v308 = vunpack.c.l.b16 %v104
  %v309 = vunpack.c.l.b16 %v105
  %v310 = vunpack.c.l.b16 %v106
  %v311 = vunpack.c.l.b16 %v107
  %v312 = vunpack.c.l.b16 %v108
  %v313 = vunpack.c.l.b16 %v109
  %v314 = vunpack.c.l.b16 %v110
  %v315 = vunpack.c.l.b16 %v111
  %v316 = vunpack.c.l.b16 %v112
  %v317 = vunpack.c.l.b16 %v113
  %v318 = vpack.c.b16 %v239, %v238
  %v319 = vpack.c.b16 %v241, %v240
  %v320 = vpack.c.b16 %v243, %v242
  %v321 = vpack.c.b16 %v245, %v244
  %v322 = vpack.c.b16 %v247, %v246
  %v323 = vpack.c.b16 %v249, %v248
  %v324 = vpack.c.b16 %v251, %v250
  %v325 = vpack.c.b16 %v253, %v252
  %v326 = vpack.c.b16 %v255, %v254
  %v327 = vpack.c.b16 %v257, %v256
  %v328 = vpack.c.b16 %v259, %v258
  %v329 = vpack.c.b16 %v261, %v260
  %v330 = vpack.c.b16 %v263, %v262
  %v331 = vpack.c.b16 %v265, %v264
  %v332 = vpack.c.b16 %v267, %v266
  %v333 = vpack.c.b16 %v269, %v268
  %v334 = vpack.c.b16 %v271, %v270
  %v335 = vpack.c.b16 %v273, %v272
  %v336 = vpack.c.b16 %v275, %v274
  %v337 = vpack.c.b16 %v277, %v276
  %v338 = vpack.c.b16 %v279, %v278
  %v339 = vpack.c.b16 %v281, %v280
  %v340 = vpack.c.b16 %v283, %v282
  %v341 = vpack.c.b16 %v285, %v284
  %v342 = vpack.c.b16 %v287, %v286
  %v343 = vpack.c.b16 %v289, %v288
  %v344 = vpack.c.b16 %v291, %v290
  %v345 = vpack.c.b16 %v293, %v292
  %v346 = vpack.c.b16 %v295, %v294
  %v347 = vpack.c.b16 %v297, %v296
  %v348 = vpack.c.b16 %v299, %v298
  %v349 = vpack.c.b16 %v301, %v300
  %v350 = vpack.c.b16 %v303, %v302
  %v351 = vpack.c.b16 %v305, %v304
  %v352 = vpack.c.b16 %v307, %v306
  %v353 = vpack.c.b16 %v309, %v308
  %v354 = vpack.c.b16 %v311, %v310
  %v355 = vpack.c.b16 %v313, %v312
  %v356 = vpack.c.b16 %v315, %v314
  %v357 = vpack.c.b16 %v317, %v316
  %398 = vmatprep.subr.bf16.mxu0 0
  %399 = vmatpush1.bf16.msra.mxu0 %v325
  %400 = vmatprep.subr.bf16.mxu0 0
  %401 = vmatpush1.bf16.msra.mxu0 %v324
  %402 = vmatprep.subr.bf16.mxu0 0
  %403 = vmatpush1.bf16.msra.mxu0 %v323
  %404 = vmatprep.subr.bf16.mxu0 0
  %405 = vmatpush1.bf16.msra.mxu0 %v322
  %406 = vmatprep.subr.bf16.mxu0 0
  %407 = vmatpush1.bf16.msra.mxu0 %v321
  %408 = vmatprep.subr.bf16.mxu0 0
  %409 = vmatpush1.bf16.msra.mxu0 %v320
  %410 = vmatprep.subr.bf16.mxu0 0
  %411 = vmatpush1.bf16.msra.mxu0 %v319
  %412 = vmatprep.subr.bf16.mxu0 0
  %413 = vmatpush1.bf16.msra.mxu0 %v318
  %414 = vmatprep.subr.bf16.mxu0 0
  %415 = vmatpush2.bf16.msra.mxu0 %v333
  %416 = vmatprep.subr.bf16.mxu0 0
  %417 = vmatpush2.bf16.msra.mxu0 %v332
  %418 = vmatprep.subr.bf16.mxu0 0
  %419 = vmatpush2.bf16.msra.mxu0 %v331
  %420 = vmatprep.subr.bf16.mxu0 0
  %421 = vmatpush2.bf16.msra.mxu0 %v330
  %422 = vmatprep.subr.bf16.mxu0 0
  %423 = vmatpush2.bf16.msra.mxu0 %v329
  %424 = vmatprep.subr.bf16.mxu0 0
  %425 = vmatpush2.bf16.msra.mxu0 %v328
  %426 = vmatprep.subr.bf16.mxu0 0
  %427 = vmatpush2.bf16.msra.mxu0 %v327
  %428 = vmatprep.subr.bf16.mxu0 0
  %429 = vmatpush2.bf16.msra.mxu0 %v326
  %430 = vmatprep.mubr.bf16.mxu0 %v139
  %431 = vmatmul.mubr.bf16.gmra.mxu0 %v138
  %v432 = vpop.f32.mrf.mxu0
  %v433 = vadd.f32 0.0, %v432
  %v434 = vpop.f32.mrf.mxu0
  %v435 = vpop.f32.mrf.mxu0
  %v436 = vadd.f32 0.0, %v435
  %v437 = vpop.f32.mrf.mxu0
  %438 = vmatprep.mubr.bf16.mxu0 %v144
  %439 = vmatmul.mubr.bf16.gmra.mxu0 %v143
  %v440 = vpop.f32.mrf.mxu0
  %v441 = vadd.f32 0.0, %v440
  %v442 = vpop.f32.mrf.mxu0
  %v443 = vpop.f32.mrf.mxu0
  %v444 = vpop.f32.mrf.mxu0
  %445 = vdwg.mxu0
  %446 = vmatprep.subr.bf16.mxu0 0
  %447 = vmatpush1.bf16.msra.mxu0 %v341
  %448 = vmatprep.subr.bf16.mxu0 0
  %449 = vmatpush1.bf16.msra.mxu0 %v340
  %450 = vmatprep.subr.bf16.mxu0 0
  %451 = vmatpush1.bf16.msra.mxu0 %v339
  %452 = vmatprep.subr.bf16.mxu0 0
  %453 = vmatpush1.bf16.msra.mxu0 %v338
  %454 = vmatprep.subr.bf16.mxu0 0
  %455 = vmatpush1.bf16.msra.mxu0 %v337
  %456 = vmatprep.subr.bf16.mxu0 0
  %457 = vmatpush1.bf16.msra.mxu0 %v336
  %458 = vmatprep.subr.bf16.mxu0 0
  %459 = vmatpush1.bf16.msra.mxu0 %v335
  %460 = vmatprep.subr.bf16.mxu0 0
  %461 = vmatpush1.bf16.msra.mxu0 %v334
  %462 = vmatprep.subr.bf16.mxu0 0
  %463 = vmatpush2.bf16.msra.mxu0 %v349
  %464 = vmatprep.subr.bf16.mxu0 0
  %465 = vmatpush2.bf16.msra.mxu0 %v348
  %466 = vmatprep.subr.bf16.mxu0 0
  %467 = vmatpush2.bf16.msra.mxu0 %v347
  %468 = vmatprep.subr.bf16.mxu0 0
  %469 = vmatpush2.bf16.msra.mxu0 %v346
  %470 = vmatprep.subr.bf16.mxu0 0
  %471 = vmatpush2.bf16.msra.mxu0 %v345
  %472 = vmatprep.subr.bf16.mxu0 0
  %473 = vmatpush2.bf16.msra.mxu0 %v344
  %474 = vmatprep.subr.bf16.mxu0 0
  %475 = vmatpush2.bf16.msra.mxu0 %v343
  %476 = vmatprep.subr.bf16.mxu0 0
  %477 = vmatpush2.bf16.msra.mxu0 %v342
  %478 = vmatprep.mubr.bf16.mxu0 %v141
  %479 = vmatmul.mubr.bf16.gmra.mxu0 %v140
  %v480 = vpop.f32.mrf.mxu0
  %v481 = vadd.f32 %v433, %v480
  %v482 = vpop.f32.mrf.mxu0
  %v483 = vpop.f32.mrf.mxu0
  %v484 = vadd.f32 %v436, %v483
  %v485 = vpop.f32.mrf.mxu0
  %486 = vmatprep.mubr.bf16.mxu0 %v146
  %487 = vmatmul.mubr.bf16.gmra.mxu0 %v145
  %v488 = vpop.f32.mrf.mxu0
  %v489 = vadd.f32 %v441, %v488
  %v490 = vpop.f32.mrf.mxu0
  %v491 = vpop.f32.mrf.mxu0
  %v492 = vpop.f32.mrf.mxu0
  %493 = vdwg.mxu0
  %494 = vmatprep.subr.bf16.mxu0 0
  %495 = vmatpush1.bf16.msra.mxu0 %v357
  %496 = vmatprep.subr.bf16.mxu0 0
  %497 = vmatpush1.bf16.msra.mxu0 %v356
  %498 = vmatprep.subr.bf16.mxu0 0
  %499 = vmatpush1.bf16.msra.mxu0 %v355
  %500 = vmatprep.subr.bf16.mxu0 0
  %501 = vmatpush1.bf16.msra.mxu0 %v354
  %502 = vmatprep.subr.bf16.mxu0 0
  %503 = vmatpush1.bf16.msra.mxu0 %v353
  %504 = vmatprep.subr.bf16.mxu0 0
  %505 = vmatpush1.bf16.msra.mxu0 %v352
  %506 = vmatprep.subr.bf16.mxu0 0
  %507 = vmatpush1.bf16.msra.mxu0 %v351
  %508 = vmatprep.subr.bf16.mxu0 0
  %509 = vmatpush1.bf16.msra.mxu0 %v350
  %510 = vmatprep.subr.bf16.mxu0 0
  %511 = vmatpush2.bf16.msra.mxu0 0
  %512 = vmatprep.subr.bf16.mxu0 0
  %513 = vmatpush2.bf16.msra.mxu0 0
  %514 = vmatprep.subr.bf16.mxu0 0
  %515 = vmatpush2.bf16.msra.mxu0 0
  %516 = vmatprep.subr.bf16.mxu0 0
  %517 = vmatpush2.bf16.msra.mxu0 0
  %518 = vmatprep.subr.bf16.mxu0 0
  %519 = vmatpush2.bf16.msra.mxu0 0
  %520 = vmatprep.subr.bf16.mxu0 0
  %521 = vmatpush2.bf16.msra.mxu0 0
  %522 = vmatprep.subr.bf16.mxu0 0
  %523 = vmatpush2.bf16.msra.mxu0 0
  %524 = vmatprep.subr.bf16.mxu0 0
  %525 = vmatpush2.bf16.msra.mxu0 0
  %526 = vmatprep.mubr.bf16.mxu0 0
  %527 = vmatmul.mubr.bf16.gmra.mxu0 %v142
  %v528 = vpop.f32.mrf.mxu0
  %v529 = vadd.f32 %v481, %v528
  %v530 = vpop.f32.mrf.mxu0
  %v531 = vpop.f32.mrf.mxu0
  %v532 = vadd.f32 %v484, %v531
  %v533 = vpop.f32.mrf.mxu0
  %534 = vmatprep.mubr.bf16.mxu0 0
  %535 = vmatmul.mubr.bf16.gmra.mxu0 %v147
  %v536 = vpop.f32.mrf.mxu0
  %v537 = vadd.f32 %v489, %v536
  %v538 = vpop.f32.mrf.mxu0
  %v539 = vpop.f32.mrf.mxu0
  %v540 = vpop.f32.mrf.mxu0
  %541 = vdwg.mxu0
  %v542 = vadd.f32 %v22, %v529
  %v543 = vadd.f32 %v23, %v532
  %v544 = vadd.f32 %v24, %v537
  %545 = vst [vmem:[#allocation2] sm:$0xff] %v542
  %546 = vst [vmem:[#allocation2 + $0x8] sm:$0xff] %v543
  %547 = vst [vmem:[#allocation2 + $0x10] sm:$0xff] %v544
  // Predicated region
  $region18: #{net_forward.6} parent=0 // pred_check
    %p548 = pneg %p15
  $region19: #{net_forward.6} parent=0 // pred_check_branch
    %550 = sbr.rel (%p548) target = $region21
  $region20: #{net_forward.6} parent=0 // pred_region
    %v551 = vld [vmem:[#allocation2] sm:$0xff]
    %v552 = vld [vmem:[#allocation2 + $0x8] sm:$0xff]
    %v553 = vld [vmem:[#allocation2 + $0x10] sm:$0xff]
    %v554 = vld [vmem:[%s2] sm:$0x1]
    %v556 = vlaneseq
    %v557 = vshrl.u32 %v556, 7
    %v558 = vsub.s32 0, %v557
    %v559 = vrot.slane %v554, %v558
    %v561 = vadd.f32 %v551, %v559
    %v562 = vadd.f32 %v552, %v559
    %v563 = vadd.f32 %v553, %v559
    %v564 = vmax.f32 %v561, 0.0
    %v565 = vmax.f32 %v562, 0.0
    %v566 = vmax.f32 %v563, 0.0
    %v567 = vpack.c.bf16 %v565, %v564
    %v568 = vpack.c.bf16 %v566, %v566
    %v571 = vunpack.c.l.b16 %v567
    %v572 = vunpack.c.h.b16 %v567
    %v573 = vunpack.c.l.b16 %v568
    %v574 = vpack.c.b16 %v571, %v571
    %v575 = vpack.c.b16 %v572, %v572
    %v576 = vpack.c.b16 %v573, %v573
    %580 = vst [vmem:[%s3] sm:$0xf] %v574
    %581 = vst [vmem:[%s3 + $0x4] sm:$0xf] %v575
    %582 = vst [vmem:[%s3 + $0x8] sm:$0xf] %v576
  $region21: #{net_forward.6} parent=0 // pred_fallthru
    _
  // Predicated region
  $region22: #{net_forward.6} parent=0 // pred_check
    _
  $region23: #{net_forward.6} parent=0 // pred_check_branch
    %584 = sbr.rel (0) target = $region25
  $region24: #{net_forward.6} parent=0 // pred_region
    _
  $region25: #{net_forward.6} parent=0 // pred_fallthru
    _
  // Predicated region
  $region26: #{net_forward.6} parent=0 // pred_check
    _
  $region27: #{net_forward.6} parent=0 // pred_check_branch
    %586 = sbr.rel (0) target = $region29
  $region28: #{net_forward.6} parent=0 // pred_region
    _
  $region29: #{net_forward.6} parent=0 // pred_fallthru
    _

// kernel: net_forward.7
$region0: #{net_forward.7}
  #allocation0 [shape = 'u32[]', space=smem, size = 0x4, offset = 0x4, fixed_abs, tag = 'smem constant byte address 0x4 - core index']
  #allocation1 [shape = 'u32[144,128]{1,0:T(1,128)}', space=vmem, size = 0x12000, scoped, tag = 'internal scratch']
  #allocation2 [shape = 'f32[8,512]{1,0:T(8,128)}', space=vmem, size = 0x4000, scoped, tag = 'scratch operand']
  %s0 = inlined_call_operand.vmem [shape: bf16[8,768], index: 0, kind: input, shape index: {}]
  %s1 = inlined_call_operand.vmem [shape: bf16[768,512], index: 1, kind: input, shape index: {}]
  %s2 = inlined_call_operand.vmem [shape: f32[1,512], index: 2, kind: input, shape index: {}]
  %s3 = inlined_call_operand.vmem [shape: bf16[512,128], index: 3, kind: input, shape index: {}]
  %s4 = inlined_call_operand.vmem [shape: f32[1,128], index: 4, kind: input, shape index: {}]
  %s5 = inlined_call_operand.vmem [shape: f32[8,128], index: 5, kind: output, shape index: {}]
  %s6 = sld [smem:[#allocation0]]
  $region38: #{net_forward.7} parent=0
    _
  %s8 = ssub.s32 1, %s6
  %s9 = scalar_select 0, %s8, %s6
  // Predicated region
  $region2: #{net_forward.7} parent=0 // pred_check
    _
  $region3: #{net_forward.7} parent=0 // pred_check_branch
    %11 = sbr.rel (0) target = $region5
  $region4: #{net_forward.7} parent=0 // pred_region
    _
  $region5: #{net_forward.7} parent=0 // pred_fallthru
    _
  // Predicated region
  $region6: #{net_forward.7} parent=0 // pred_check
    _
  $region7: #{net_forward.7} parent=0 // pred_check_branch
    %13 = sbr.rel (0) target = $region9
  $region8: #{net_forward.7} parent=0 // pred_region
    _
  $region9: #{net_forward.7} parent=0 // pred_fallthru
    _
  // Predicated region
  $region10: #{net_forward.7} parent=0 // pred_check
    _
  $region11: #{net_forward.7} parent=0 // pred_check_branch
    %15 = sbr.rel (0) target = $region13
  $region12: #{net_forward.7} parent=0 // pred_region
    _
  $region13: #{net_forward.7} parent=0 // pred_fallthru
    _
  // Predicated region
  $region14: #{net_forward.7} parent=0 // pred_check
    _
  $region15: #{net_forward.7} parent=0 // pred_check_branch
    %17 = sbr.rel (0) target = $region17
  $region16: #{net_forward.7} parent=0 // pred_region
    _
  $region17: #{net_forward.7} parent=0 // pred_fallthru
    _
  // Predicated region
  $region18: #{net_forward.7} parent=0 // pred_check
    _
  $region19: #{net_forward.7} parent=0 // pred_check_branch
    %19 = sbr.rel (0) target = $region21
  $region20: #{net_forward.7} parent=0 // pred_region
    _
  $region21: #{net_forward.7} parent=0 // pred_fallthru
    _
  %p21 = scmp.eq.s32.totalorder 0, 0
  // Predicated region
  $region22: #{net_forward.7} parent=0 // pred_check
    %p22 = pneg %p21
  $region23: #{net_forward.7} parent=0 // pred_check_branch
    %24 = sbr.rel (%p22) target = $region25
  $region24: #{net_forward.7} parent=0 // pred_region
    %25 = vst [vmem:[#allocation2] sm:$0xff] 0.0
    %26 = vst [vmem:[#allocation2 + $0x8] sm:$0xff] 0.0
    %27 = vst [vmem:[#allocation2 + $0x10] sm:$0xff] 0.0
    %28 = vst [vmem:[#allocation2 + $0x18] sm:$0xff] 0.0
  $region25: #{net_forward.7} parent=0 // pred_fallthru
    _
  %v29 = vld [vmem:[#allocation2] sm:$0xff]
  %v30 = vld [vmem:[#allocation2 + $0x8] sm:$0xff]
  %v31 = vld [vmem:[#allocation2 + $0x10] sm:$0xff]
  %v32 = vld [vmem:[#allocation2 + $0x18] sm:$0xff]
  %v33 = vld [vmem:[%s0] sm:$0xff]
  %v34 = vld [vmem:[%s0 + $0x8] sm:$0xff]
  %v35 = vld [vmem:[%s0 + $0x10] sm:$0xff]
  %v36 = vld [vmem:[%s1] sm:$0xff]
  %v37 = vld [vmem:[%s1 + $0x8] sm:$0xff]
  %v38 = vld [vmem:[%s1 + $0x10] sm:$0xff]
  %v39 = vld [vmem:[%s1 + $0x18] sm:$0xff]
  %v40 = vld [vmem:[%s1 + $0x20] sm:$0xff]
  %v41 = vld [vmem:[%s1 + $0x28] sm:$0xff]
  %v42 = vld [vmem:[%s1 + $0x30] sm:$0xff]
  %v43 = vld [vmem:[%s1 + $0x38] sm:$0xff]
  %v44 = vld [vmem:[%s1 + $0x40] sm:$0xff]
  %v45 = vld [vmem:[%s1 + $0x48] sm:$0xff]
  %v46 = vld [vmem:[%s1 + $0x50] sm:$0xff]
  %v47 = vld [vmem:[%s1 + $0x58] sm:$0xff]
  %v48 = vld [vmem:[%s1 + $0x60] sm:$0xff]
  %v49 = vld [vmem:[%s1 + $0x68] sm:$0xff]
  %v50 = vld [vmem:[%s1 + $0x70] sm:$0xff]
  %v51 = vld [vmem:[%s1 + $0x78] sm:$0xff]
  %v52 = vld [vmem:[%s1 + $0x80] sm:$0xff]
  %v53 = vld [vmem:[%s1 + $0x88] sm:$0xff]
  %v54 = vld [vmem:[%s1 + $0x90] sm:$0xff]
  %v55 = vld [vmem:[%s1 + $0x98] sm:$0xff]
  %v56 = vld [vmem:[%s1 + $0xa0] sm:$0xff]
  %v57 = vld [vmem:[%s1 + $0xa8] sm:$0xff]
  %v58 = vld [vmem:[%s1 + $0xb0] sm:$0xff]
  %v59 = vld [vmem:[%s1 + $0xb8] sm:$0xff]
  %v60 = vld [vmem:[%s1 + $0xc0] sm:$0xff]
  %v61 = vld [vmem:[%s1 + $0xc8] sm:$0xff]
  %v62 = vld [vmem:[%s1 + $0xd0] sm:$0xff]
  %v63 = vld [vmem:[%s1 + $0xd8] sm:$0xff]
  %v64 = vld [vmem:[%s1 + $0xe0] sm:$0xff]
  %v65 = vld [vmem:[%s1 + $0xe8] sm:$0xff]
  %v66 = vld [vmem:[%s1 + $0xf0] sm:$0xff]
  %v67 = vld [vmem:[%s1 + $0xf8] sm:$0xff]
  %v68 = vld [vmem:[%s1 + $0x100] sm:$0xff]
  %v69 = vld [vmem:[%s1 + $0x108] sm:$0xff]
  %v70 = vld [vmem:[%s1 + $0x110] sm:$0xff]
  %v71 = vld [vmem:[%s1 + $0x118] sm:$0xff]
  %v72 = vld [vmem:[%s1 + $0x120] sm:$0xff]
  %v73 = vld [vmem:[%s1 + $0x128] sm:$0xff]
  %v74 = vld [vmem:[%s1 + $0x130] sm:$0xff]
  %v75 = vld [vmem:[%s1 + $0x138] sm:$0xff]
  %v76 = vld [vmem:[%s1 + $0x140] sm:$0xff]
  %v77 = vld [vmem:[%s1 + $0x148] sm:$0xff]
  %v78 = vld [vmem:[%s1 + $0x150] sm:$0xff]
  %v79 = vld [vmem:[%s1 + $0x158] sm:$0xff]
  %v80 = vld [vmem:[%s1 + $0x160] sm:$0xff]
  %v81 = vld [vmem:[%s1 + $0x168] sm:$0xff]
  %v82 = vld [vmem:[%s1 + $0x170] sm:$0xff]
  %v83 = vld [vmem:[%s1 + $0x178] sm:$0xff]
  %v84 = vld [vmem:[%s1 + $0x180] sm:$0xff]
  %v85 = vld [vmem:[%s1 + $0x188] sm:$0xff]
  %v86 = vld [vmem:[%s1 + $0x190] sm:$0xff]
  %v87 = vld [vmem:[%s1 + $0x198] sm:$0xff]
  %v88 = vld [vmem:[%s1 + $0x1a0] sm:$0xff]
  %v89 = vld [vmem:[%s1 + $0x1a8] sm:$0xff]
  %v90 = vld [vmem:[%s1 + $0x1b0] sm:$0xff]
  %v91 = vld [vmem:[%s1 + $0x1b8] sm:$0xff]
  %v92 = vld [vmem:[%s1 + $0x1c0] sm:$0xff]
  %v93 = vld [vmem:[%s1 + $0x1c8] sm:$0xff]
  %v94 = vld [vmem:[%s1 + $0x1d0] sm:$0xff]
  %v95 = vld [vmem:[%s1 + $0x1d8] sm:$0xff]
  %v96 = vld [vmem:[%s1 + $0x1e0] sm:$0xff]
  %v97 = vld [vmem:[%s1 + $0x1e8] sm:$0xff]
  %v98 = vld [vmem:[%s1 + $0x1f0] sm:$0xff]
  %v99 = vld [vmem:[%s1 + $0x1f8] sm:$0xff]
  %v100 = vld [vmem:[%s1 + $0x200] sm:$0xff]
  %v101 = vld [vmem:[%s1 + $0x208] sm:$0xff]
  %v102 = vld [vmem:[%s1 + $0x210] sm:$0xff]
  %v103 = vld [vmem:[%s1 + $0x218] sm:$0xff]
  %v104 = vld [vmem:[%s1 + $0x220] sm:$0xff]
  %v105 = vld [vmem:[%s1 + $0x228] sm:$0xff]
  %v106 = vld [vmem:[%s1 + $0x230] sm:$0xff]
  %v107 = vld [vmem:[%s1 + $0x238] sm:$0xff]
  %v108 = vld [vmem:[%s1 + $0x240] sm:$0xff]
  %v109 = vld [vmem:[%s1 + $0x248] sm:$0xff]
  %v110 = vld [vmem:[%s1 + $0x250] sm:$0xff]
  %v111 = vld [vmem:[%s1 + $0x258] sm:$0xff]
  %v112 = vld [vmem:[%s1 + $0x260] sm:$0xff]
  %v113 = vld [vmem:[%s1 + $0x268] sm:$0xff]
  %v114 = vld [vmem:[%s1 + $0x270] sm:$0xff]
  %v115 = vld [vmem:[%s1 + $0x278] sm:$0xff]
  %v116 = vld [vmem:[%s1 + $0x280] sm:$0xff]
  %v117 = vld [vmem:[%s1 + $0x288] sm:$0xff]
  %v118 = vld [vmem:[%s1 + $0x290] sm:$0xff]
  %v119 = vld [vmem:[%s1 + $0x298] sm:$0xff]
  %v120 = vld [vmem:[%s1 + $0x2a0] sm:$0xff]
  %v121 = vld [vmem:[%s1 + $0x2a8] sm:$0xff]
  %v122 = vld [vmem:[%s1 + $0x2b0] sm:$0xff]
  %v123 = vld [vmem:[%s1 + $0x2b8] sm:$0xff]
  %v124 = vld [vmem:[%s1 + $0x2c0] sm:$0xff]
  %v125 = vld [vmem:[%s1 + $0x2c8] sm:$0xff]
  %v126 = vld [vmem:[%s1 + $0x2d0] sm:$0xff]
  %v127 = vld [vmem:[%s1 + $0x2d8] sm:$0xff]
  %v128 = vld [vmem:[%s1 + $0x2e0] sm:$0xff]
  %v129 = vld [vmem:[%s1 + $0x2e8] sm:$0xff]
  %v130 = vld [vmem:[%s1 + $0x2f0] sm:$0xff]
  %v131 = vld [vmem:[%s1 + $0x2f8] sm:$0xff]
  %v132 = vld [vmem:[%s1 + $0x300] sm:$0xff]
  %v133 = vld [vmem:[%s1 + $0x308] sm:$0xff]
  %v134 = vld [vmem:[%s1 + $0x310] sm:$0xff]
  %v135 = vld [vmem:[%s1 + $0x318] sm:$0xff]
  %v136 = vld [vmem:[%s1 + $0x320] sm:$0xff]
  %v137 = vld [vmem:[%s1 + $0x328] sm:$0xff]
  %v138 = vld [vmem:[%s1 + $0x330] sm:$0xff]
  %v139 = vld [vmem:[%s1 + $0x338] sm:$0xff]
  %v140 = vld [vmem:[%s1 + $0x340] sm:$0xff]
  %v141 = vld [vmem:[%s1 + $0x348] sm:$0xff]
  %v142 = vld [vmem:[%s1 + $0x350] sm:$0xff]
  %v143 = vld [vmem:[%s1 + $0x358] sm:$0xff]
  %v144 = vld [vmem:[%s1 + $0x360] sm:$0xff]
  %v145 = vld [vmem:[%s1 + $0x368] sm:$0xff]
  %v146 = vld [vmem:[%s1 + $0x370] sm:$0xff]
  %v147 = vld [vmem:[%s1 + $0x378] sm:$0xff]
  %v148 = vld [vmem:[%s1 + $0x380] sm:$0xff]
  %v149 = vld [vmem:[%s1 + $0x388] sm:$0xff]
  %v150 = vld [vmem:[%s1 + $0x390] sm:$0xff]
  %v151 = vld [vmem:[%s1 + $0x398] sm:$0xff]
  %v152 = vld [vmem:[%s1 + $0x3a0] sm:$0xff]
  %v153 = vld [vmem:[%s1 + $0x3a8] sm:$0xff]
  %v154 = vld [vmem:[%s1 + $0x3b0] sm:$0xff]
  %v155 = vld [vmem:[%s1 + $0x3b8] sm:$0xff]
  %v156 = vld [vmem:[%s1 + $0x3c0] sm:$0xff]
  %v157 = vld [vmem:[%s1 + $0x3c8] sm:$0xff]
  %v158 = vld [vmem:[%s1 + $0x3d0] sm:$0xff]
  %v159 = vld [vmem:[%s1 + $0x3d8] sm:$0xff]
  %v160 = vld [vmem:[%s1 + $0x3e0] sm:$0xff]
  %v161 = vld [vmem:[%s1 + $0x3e8] sm:$0xff]
  %v162 = vld [vmem:[%s1 + $0x3f0] sm:$0xff]
  %v163 = vld [vmem:[%s1 + $0x3f8] sm:$0xff]
  %v164 = vld [vmem:[%s1 + $0x400] sm:$0xff]
  %v165 = vld [vmem:[%s1 + $0x408] sm:$0xff]
  %v166 = vld [vmem:[%s1 + $0x410] sm:$0xff]
  %v167 = vld [vmem:[%s1 + $0x418] sm:$0xff]
  %v168 = vld [vmem:[%s1 + $0x420] sm:$0xff]
  %v169 = vld [vmem:[%s1 + $0x428] sm:$0xff]
  %v170 = vld [vmem:[%s1 + $0x430] sm:$0xff]
  %v171 = vld [vmem:[%s1 + $0x438] sm:$0xff]
  %v172 = vld [vmem:[%s1 + $0x440] sm:$0xff]
  %v173 = vld [vmem:[%s1 + $0x448] sm:$0xff]
  %v174 = vld [vmem:[%s1 + $0x450] sm:$0xff]
  %v175 = vld [vmem:[%s1 + $0x458] sm:$0xff]
  %v176 = vld [vmem:[%s1 + $0x460] sm:$0xff]
  %v177 = vld [vmem:[%s1 + $0x468] sm:$0xff]
  %v178 = vld [vmem:[%s1 + $0x470] sm:$0xff]
  %v179 = vld [vmem:[%s1 + $0x478] sm:$0xff]
  %v180 = vld [vmem:[%s1 + $0x480] sm:$0xff]
  %v181 = vld [vmem:[%s1 + $0x488] sm:$0xff]
  %v182 = vld [vmem:[%s1 + $0x490] sm:$0xff]
  %v183 = vld [vmem:[%s1 + $0x498] sm:$0xff]
  %v184 = vld [vmem:[%s1 + $0x4a0] sm:$0xff]
  %v185 = vld [vmem:[%s1 + $0x4a8] sm:$0xff]
  %v186 = vld [vmem:[%s1 + $0x4b0] sm:$0xff]
  %v187 = vld [vmem:[%s1 + $0x4b8] sm:$0xff]
  %v188 = vld [vmem:[%s1 + $0x4c0] sm:$0xff]
  %v189 = vld [vmem:[%s1 + $0x4c8] sm:$0xff]
  %v190 = vld [vmem:[%s1 + $0x4d0] sm:$0xff]
  %v191 = vld [vmem:[%s1 + $0x4d8] sm:$0xff]
  %v192 = vld [vmem:[%s1 + $0x4e0] sm:$0xff]
  %v193 = vld [vmem:[%s1 + $0x4e8] sm:$0xff]
  %v194 = vld [vmem:[%s1 + $0x4f0] sm:$0xff]
  %v195 = vld [vmem:[%s1 + $0x4f8] sm:$0xff]
  %v196 = vld [vmem:[%s1 + $0x500] sm:$0xff]
  %v197 = vld [vmem:[%s1 + $0x508] sm:$0xff]
  %v198 = vld [vmem:[%s1 + $0x510] sm:$0xff]
  %v199 = vld [vmem:[%s1 + $0x518] sm:$0xff]
  %v200 = vld [vmem:[%s1 + $0x520] sm:$0xff]
  %v201 = vld [vmem:[%s1 + $0x528] sm:$0xff]
  %v202 = vld [vmem:[%s1 + $0x530] sm:$0xff]
  %v203 = vld [vmem:[%s1 + $0x538] sm:$0xff]
  %v204 = vld [vmem:[%s1 + $0x540] sm:$0xff]
  %v205 = vld [vmem:[%s1 + $0x548] sm:$0xff]
  %v206 = vld [vmem:[%s1 + $0x550] sm:$0xff]
  %v207 = vld [vmem:[%s1 + $0x558] sm:$0xff]
  %v208 = vld [vmem:[%s1 + $0x560] sm:$0xff]
  %v209 = vld [vmem:[%s1 + $0x568] sm:$0xff]
  %v210 = vld [vmem:[%s1 + $0x570] sm:$0xff]
  %v211 = vld [vmem:[%s1 + $0x578] sm:$0xff]
  %v212 = vld [vmem:[%s1 + $0x580] sm:$0xff]
  %v213 = vld [vmem:[%s1 + $0x588] sm:$0xff]
  %v214 = vld [vmem:[%s1 + $0x590] sm:$0xff]
  %v215 = vld [vmem:[%s1 + $0x598] sm:$0xff]
  %v216 = vld [vmem:[%s1 + $0x5a0] sm:$0xff]
  %v217 = vld [vmem:[%s1 + $0x5a8] sm:$0xff]
  %v218 = vld [vmem:[%s1 + $0x5b0] sm:$0xff]
  %v219 = vld [vmem:[%s1 + $0x5b8] sm:$0xff]
  %v220 = vld [vmem:[%s1 + $0x5c0] sm:$0xff]
  %v221 = vld [vmem:[%s1 + $0x5c8] sm:$0xff]
  %v222 = vld [vmem:[%s1 + $0x5d0] sm:$0xff]
  %v223 = vld [vmem:[%s1 + $0x5d8] sm:$0xff]
  %v224 = vld [vmem:[%s1 + $0x5e0] sm:$0xff]
  %v225 = vld [vmem:[%s1 + $0x5e8] sm:$0xff]
  %v226 = vld [vmem:[%s1 + $0x5f0] sm:$0xff]
  %v227 = vld [vmem:[%s1 + $0x5f8] sm:$0xff]
  %v231 = vunpack.c.l.b16 %v33
  %v232 = vunpack.c.h.b16 %v33
  %v233 = vunpack.c.l.b16 %v34
  %v234 = vunpack.c.h.b16 %v34
  %v235 = vunpack.c.l.b16 %v35
  %v236 = vunpack.c.h.b16 %v35
  %v237 = vpack.c.b16 %v231, %v231
  %v238 = vpack.c.b16 %v232, %v232
  %v239 = vpack.c.b16 %v233, %v233
  %v240 = vpack.c.b16 %v234, %v234
  %v241 = vpack.c.b16 %v235, %v235
  %v242 = vpack.c.b16 %v236, %v236
  %v441 = vunpack.c.l.b16 %v36
  %v442 = vunpack.c.h.b16 %v36
  %v443 = vunpack.c.l.b16 %v37
  %v444 = vunpack.c.h.b16 %v37
  %v445 = vunpack.c.l.b16 %v38
  %v446 = vunpack.c.h.b16 %v38
  %v447 = vunpack.c.l.b16 %v39
  %v448 = vunpack.c.h.b16 %v39
  %v449 = vunpack.c.l.b16 %v40
  %v450 = vunpack.c.h.b16 %v40
  %v451 = vunpack.c.l.b16 %v41
  %v452 = vunpack.c.h.b16 %v41
  %v453 = vunpack.c.l.b16 %v42
  %v454 = vunpack.c.h.b16 %v42
  %v455 = vunpack.c.l.b16 %v43
  %v456 = vunpack.c.h.b16 %v43
  %v457 = vunpack.c.l.b16 %v44
  %v458 = vunpack.c.h.b16 %v44
  %v459 = vunpack.c.l.b16 %v45
  %v460 = vunpack.c.h.b16 %v45
  %v461 = vunpack.c.l.b16 %v46
  %v462 = vunpack.c.h.b16 %v46
  %v463 = vunpack.c.l.b16 %v47
  %v464 = vunpack.c.h.b16 %v47
  %v465 = vunpack.c.l.b16 %v48
  %v466 = vunpack.c.h.b16 %v48
  %v467 = vunpack.c.l.b16 %v49
  %v468 = vunpack.c.h.b16 %v49
  %v469 = vunpack.c.l.b16 %v50
  %v470 = vunpack.c.h.b16 %v50
  %v471 = vunpack.c.l.b16 %v51
  %v472 = vunpack.c.h.b16 %v51
  %v473 = vunpack.c.l.b16 %v52
  %v474 = vunpack.c.h.b16 %v52
  %v475 = vunpack.c.l.b16 %v53
  %v476 = vunpack.c.h.b16 %v53
  %v477 = vunpack.c.l.b16 %v54
  %v478 = vunpack.c.h.b16 %v54
  %v479 = vunpack.c.l.b16 %v55
  %v480 = vunpack.c.h.b16 %v55
  %v481 = vunpack.c.l.b16 %v56
  %v482 = vunpack.c.h.b16 %v56
  %v483 = vunpack.c.l.b16 %v57
  %v484 = vunpack.c.h.b16 %v57
  %v485 = vunpack.c.l.b16 %v58
  %v486 = vunpack.c.h.b16 %v58
  %v487 = vunpack.c.l.b16 %v59
  %v488 = vunpack.c.h.b16 %v59
  %v489 = vunpack.c.l.b16 %v60
  %v490 = vunpack.c.h.b16 %v60
  %v491 = vunpack.c.l.b16 %v61
  %v492 = vunpack.c.h.b16 %v61
  %v493 = vunpack.c.l.b16 %v62
  %v494 = vunpack.c.h.b16 %v62
  %v495 = vunpack.c.l.b16 %v63
  %v496 = vunpack.c.h.b16 %v63
  %v497 = vunpack.c.l.b16 %v64
  %v498 = vunpack.c.h.b16 %v64
  %v499 = vunpack.c.l.b16 %v65
  %v500 = vunpack.c.h.b16 %v65
  %v501 = vunpack.c.l.b16 %v66
  %v502 = vunpack.c.h.b16 %v66
  %v503 = vunpack.c.l.b16 %v67
  %v504 = vunpack.c.h.b16 %v67
  %v505 = vunpack.c.l.b16 %v68
  %v506 = vunpack.c.h.b16 %v68
  %v507 = vunpack.c.l.b16 %v69
  %v508 = vunpack.c.h.b16 %v69
  %v509 = vunpack.c.l.b16 %v70
  %v510 = vunpack.c.h.b16 %v70
  %v511 = vunpack.c.l.b16 %v71
  %v512 = vunpack.c.h.b16 %v71
  %v513 = vunpack.c.l.b16 %v72
  %v514 = vunpack.c.h.b16 %v72
  %v515 = vunpack.c.l.b16 %v73
  %v516 = vunpack.c.h.b16 %v73
  %v517 = vunpack.c.l.b16 %v74
  %v518 = vunpack.c.h.b16 %v74
  %v519 = vunpack.c.l.b16 %v75
  %v520 = vunpack.c.h.b16 %v75
  %v521 = vunpack.c.l.b16 %v76
  %v522 = vunpack.c.h.b16 %v76
  %v523 = vunpack.c.l.b16 %v77
  %v524 = vunpack.c.h.b16 %v77
  %v525 = vunpack.c.l.b16 %v78
  %v526 = vunpack.c.h.b16 %v78
  %v527 = vunpack.c.l.b16 %v79
  %v528 = vunpack.c.h.b16 %v79
  %v529 = vunpack.c.l.b16 %v80
  %v530 = vunpack.c.h.b16 %v80
  %v531 = vunpack.c.l.b16 %v81
  %v532 = vunpack.c.h.b16 %v81
  %v533 = vunpack.c.l.b16 %v82
  %v534 = vunpack.c.h.b16 %v82
  %v535 = vunpack.c.l.b16 %v83
  %v536 = vunpack.c.h.b16 %v83
  %v537 = vunpack.c.l.b16 %v84
  %v538 = vunpack.c.h.b16 %v84
  %v539 = vunpack.c.l.b16 %v85
  %v540 = vunpack.c.h.b16 %v85
  %v541 = vunpack.c.l.b16 %v86
  %v542 = vunpack.c.h.b16 %v86
  %v543 = vunpack.c.l.b16 %v87
  %v544 = vunpack.c.h.b16 %v87
  %v545 = vunpack.c.l.b16 %v88
  %v546 = vunpack.c.h.b16 %v88
  %v547 = vunpack.c.l.b16 %v89
  %v548 = vunpack.c.h.b16 %v89
  %v549 = vunpack.c.l.b16 %v90
  %v550 = vunpack.c.h.b16 %v90
  %v551 = vunpack.c.l.b16 %v91
  %v552 = vunpack.c.h.b16 %v91
  %v553 = vunpack.c.l.b16 %v92
  %v554 = vunpack.c.h.b16 %v92
  %v555 = vunpack.c.l.b16 %v93
  %v556 = vunpack.c.h.b16 %v93
  %v557 = vunpack.c.l.b16 %v94
  %v558 = vunpack.c.h.b16 %v94
  %v559 = vunpack.c.l.b16 %v95
  %v560 = vunpack.c.h.b16 %v95
  %v561 = vunpack.c.l.b16 %v96
  %v562 = vunpack.c.h.b16 %v96
  %v563 = vunpack.c.l.b16 %v97
  %v564 = vunpack.c.h.b16 %v97
  %v565 = vunpack.c.l.b16 %v98
  %v566 = vunpack.c.h.b16 %v98
  %v567 = vunpack.c.l.b16 %v99
  %v568 = vunpack.c.h.b16 %v99
  %v569 = vunpack.c.l.b16 %v100
  %v570 = vunpack.c.h.b16 %v100
  %v571 = vunpack.c.l.b16 %v101
  %v572 = vunpack.c.h.b16 %v101
  %v573 = vunpack.c.l.b16 %v102
  %v574 = vunpack.c.h.b16 %v102
  %v575 = vunpack.c.l.b16 %v103
  %v576 = vunpack.c.h.b16 %v103
  %v577 = vunpack.c.l.b16 %v104
  %v578 = vunpack.c.h.b16 %v104
  %v579 = vunpack.c.l.b16 %v105
  %v580 = vunpack.c.h.b16 %v105
  %v581 = vunpack.c.l.b16 %v106
  %v582 = vunpack.c.h.b16 %v106
  %v583 = vunpack.c.l.b16 %v107
  %v584 = vunpack.c.h.b16 %v107
  %v585 = vunpack.c.l.b16 %v108
  %v586 = vunpack.c.h.b16 %v108
  %v587 = vunpack.c.l.b16 %v109
  %v588 = vunpack.c.h.b16 %v109
  %v589 = vunpack.c.l.b16 %v110
  %v590 = vunpack.c.h.b16 %v110
  %v591 = vunpack.c.l.b16 %v111
  %v592 = vunpack.c.h.b16 %v111
  %v593 = vunpack.c.l.b16 %v112
  %v594 = vunpack.c.h.b16 %v112
  %v595 = vunpack.c.l.b16 %v113
  %v596 = vunpack.c.h.b16 %v113
  %v597 = vunpack.c.l.b16 %v114
  %v598 = vunpack.c.h.b16 %v114
  %v599 = vunpack.c.l.b16 %v115
  %v600 = vunpack.c.h.b16 %v115
  %v601 = vunpack.c.l.b16 %v116
  %v602 = vunpack.c.h.b16 %v116
  %v603 = vunpack.c.l.b16 %v117
  %v604 = vunpack.c.h.b16 %v117
  %v605 = vunpack.c.l.b16 %v118
  %v606 = vunpack.c.h.b16 %v118
  %v607 = vunpack.c.l.b16 %v119
  %v608 = vunpack.c.h.b16 %v119
  %v609 = vunpack.c.l.b16 %v120
  %v610 = vunpack.c.h.b16 %v120
  %v611 = vunpack.c.l.b16 %v121
  %v612 = vunpack.c.h.b16 %v121
  %v613 = vunpack.c.l.b16 %v122
  %v614 = vunpack.c.h.b16 %v122
  %v615 = vunpack.c.l.b16 %v123
  %v616 = vunpack.c.h.b16 %v123
  %v617 = vunpack.c.l.b16 %v124
  %v618 = vunpack.c.h.b16 %v124
  %v619 = vunpack.c.l.b16 %v125
  %v620 = vunpack.c.h.b16 %v125
  %v621 = vunpack.c.l.b16 %v126
  %v622 = vunpack.c.h.b16 %v126
  %v623 = vunpack.c.l.b16 %v127
  %v624 = vunpack.c.h.b16 %v127
  %v625 = vunpack.c.l.b16 %v128
  %v626 = vunpack.c.h.b16 %v128
  %v627 = vunpack.c.l.b16 %v129
  %v628 = vunpack.c.h.b16 %v129
  %v629 = vunpack.c.l.b16 %v130
  %v630 = vunpack.c.h.b16 %v130
  %v631 = vunpack.c.l.b16 %v131
  %v632 = vunpack.c.h.b16 %v131
  %v633 = vunpack.c.l.b16 %v132
  %v634 = vunpack.c.h.b16 %v132
  %v635 = vunpack.c.l.b16 %v133
  %v636 = vunpack.c.h.b16 %v133
  %v637 = vunpack.c.l.b16 %v134
  %v638 = vunpack.c.h.b16 %v134
  %v639 = vunpack.c.l.b16 %v135
  %v640 = vunpack.c.h.b16 %v135
  %v641 = vunpack.c.l.b16 %v136
  %v642 = vunpack.c.h.b16 %v136
  %v643 = vunpack.c.l.b16 %v137
  %v644 = vunpack.c.h.b16 %v137
  %v645 = vunpack.c.l.b16 %v138
  %v646 = vunpack.c.h.b16 %v138
  %v647 = vunpack.c.l.b16 %v139
  %v648 = vunpack.c.h.b16 %v139
  %v649 = vunpack.c.l.b16 %v140
  %v650 = vunpack.c.h.b16 %v140
  %v651 = vunpack.c.l.b16 %v141
  %v652 = vunpack.c.h.b16 %v141
  %v653 = vunpack.c.l.b16 %v142
  %v654 = vunpack.c.h.b16 %v142
  %v655 = vunpack.c.l.b16 %v143
  %v656 = vunpack.c.h.b16 %v143
  %v657 = vunpack.c.l.b16 %v144
  %v658 = vunpack.c.h.b16 %v144
  %v659 = vunpack.c.l.b16 %v145
  %v660 = vunpack.c.h.b16 %v145
  %v661 = vunpack.c.l.b16 %v146
  %v662 = vunpack.c.h.b16 %v146
  %v663 = vunpack.c.l.b16 %v147
  %v664 = vunpack.c.h.b16 %v147
  %v665 = vunpack.c.l.b16 %v148
  %v666 = vunpack.c.h.b16 %v148
  %v667 = vunpack.c.l.b16 %v149
  %v668 = vunpack.c.h.b16 %v149
  %v669 = vunpack.c.l.b16 %v150
  %v670 = vunpack.c.h.b16 %v150
  %v671 = vunpack.c.l.b16 %v151
  %v672 = vunpack.c.h.b16 %v151
  %v673 = vunpack.c.l.b16 %v152
  %v674 = vunpack.c.h.b16 %v152
  %v675 = vunpack.c.l.b16 %v153
  %v676 = vunpack.c.h.b16 %v153
  %v677 = vunpack.c.l.b16 %v154
  %v678 = vunpack.c.h.b16 %v154
  %v679 = vunpack.c.l.b16 %v155
  %v680 = vunpack.c.h.b16 %v155
  %v681 = vunpack.c.l.b16 %v156
  %v682 = vunpack.c.h.b16 %v156
  %v683 = vunpack.c.l.b16 %v157
  %v684 = vunpack.c.h.b16 %v157
  %v685 = vunpack.c.l.b16 %v158
  %v686 = vunpack.c.h.b16 %v158
  %v687 = vunpack.c.l.b16 %v159
  %v688 = vunpack.c.h.b16 %v159
  %v689 = vunpack.c.l.b16 %v160
  %v690 = vunpack.c.h.b16 %v160
  %v691 = vunpack.c.l.b16 %v161
  %v692 = vunpack.c.h.b16 %v161
  %v693 = vunpack.c.l.b16 %v162
  %v694 = vunpack.c.h.b16 %v162
  %v695 = vunpack.c.l.b16 %v163
  %v696 = vunpack.c.h.b16 %v163
  %v697 = vunpack.c.l.b16 %v164
  %v698 = vunpack.c.h.b16 %v164
  %v699 = vunpack.c.l.b16 %v165
  %v700 = vunpack.c.h.b16 %v165
  %v701 = vunpack.c.l.b16 %v166
  %v702 = vunpack.c.h.b16 %v166
  %v703 = vunpack.c.l.b16 %v167
  %v704 = vunpack.c.h.b16 %v167
  %v705 = vunpack.c.l.b16 %v168
  %v706 = vunpack.c.h.b16 %v168
  %v707 = vunpack.c.l.b16 %v169
  %v708 = vunpack.c.h.b16 %v169
  %v709 = vunpack.c.l.b16 %v170
  %v710 = vunpack.c.h.b16 %v170
  %v711 = vunpack.c.l.b16 %v171
  %v712 = vunpack.c.h.b16 %v171
  %v713 = vunpack.c.l.b16 %v172
  %v714 = vunpack.c.h.b16 %v172
  %v715 = vunpack.c.l.b16 %v173
  %v716 = vunpack.c.h.b16 %v173
  %v717 = vunpack.c.l.b16 %v174
  %v718 = vunpack.c.h.b16 %v174
  %v719 = vunpack.c.l.b16 %v175
  %v720 = vunpack.c.h.b16 %v175
  %v721 = vunpack.c.l.b16 %v176
  %v722 = vunpack.c.h.b16 %v176
  %v723 = vunpack.c.l.b16 %v177
  %v724 = vunpack.c.h.b16 %v177
  %v725 = vunpack.c.l.b16 %v178
  %v726 = vunpack.c.h.b16 %v178
  %v727 = vunpack.c.l.b16 %v179
  %v728 = vunpack.c.h.b16 %v179
  %v729 = vunpack.c.l.b16 %v180
  %v730 = vunpack.c.h.b16 %v180
  %v731 = vunpack.c.l.b16 %v181
  %v732 = vunpack.c.h.b16 %v181
  %v733 = vunpack.c.l.b16 %v182
  %v734 = vunpack.c.h.b16 %v182
  %v735 = vunpack.c.l.b16 %v183
  %v736 = vunpack.c.h.b16 %v183
  %v737 = vunpack.c.l.b16 %v184
  %v738 = vunpack.c.h.b16 %v184
  %v739 = vunpack.c.l.b16 %v185
  %v740 = vunpack.c.h.b16 %v185
  %v741 = vunpack.c.l.b16 %v186
  %v742 = vunpack.c.h.b16 %v186
  %v743 = vunpack.c.l.b16 %v187
  %v744 = vunpack.c.h.b16 %v187
  %v745 = vunpack.c.l.b16 %v188
  %v746 = vunpack.c.h.b16 %v188
  %v747 = vunpack.c.l.b16 %v189
  %v748 = vunpack.c.h.b16 %v189
  %v749 = vunpack.c.l.b16 %v190
  %v750 = vunpack.c.h.b16 %v190
  %v751 = vunpack.c.l.b16 %v191
  %v752 = vunpack.c.h.b16 %v191
  %v753 = vunpack.c.l.b16 %v192
  %v754 = vunpack.c.h.b16 %v192
  %v755 = vunpack.c.l.b16 %v193
  %v756 = vunpack.c.h.b16 %v193
  %v757 = vunpack.c.l.b16 %v194
  %v758 = vunpack.c.h.b16 %v194
  %v759 = vunpack.c.l.b16 %v195
  %v760 = vunpack.c.h.b16 %v195
  %v761 = vunpack.c.l.b16 %v196
  %v762 = vunpack.c.h.b16 %v196
  %v763 = vunpack.c.l.b16 %v197
  %v764 = vunpack.c.h.b16 %v197
  %v765 = vunpack.c.l.b16 %v198
  %v766 = vunpack.c.h.b16 %v198
  %v767 = vunpack.c.l.b16 %v199
  %v768 = vunpack.c.h.b16 %v199
  %v769 = vunpack.c.l.b16 %v200
  %v770 = vunpack.c.h.b16 %v200
  %v771 = vunpack.c.l.b16 %v201
  %v772 = vunpack.c.h.b16 %v201
  %v773 = vunpack.c.l.b16 %v202
  %v774 = vunpack.c.h.b16 %v202
  %v775 = vunpack.c.l.b16 %v203
  %v776 = vunpack.c.h.b16 %v203
  %v777 = vunpack.c.l.b16 %v204
  %v778 = vunpack.c.h.b16 %v204
  %v779 = vunpack.c.l.b16 %v205
  %v780 = vunpack.c.h.b16 %v205
  %v781 = vunpack.c.l.b16 %v206
  %v782 = vunpack.c.h.b16 %v206
  %v783 = vunpack.c.l.b16 %v207
  %v784 = vunpack.c.h.b16 %v207
  %v785 = vunpack.c.l.b16 %v208
  %v786 = vunpack.c.h.b16 %v208
  %v787 = vunpack.c.l.b16 %v209
  %v788 = vunpack.c.h.b16 %v209
  %v789 = vunpack.c.l.b16 %v210
  %v790 = vunpack.c.h.b16 %v210
  %v791 = vunpack.c.l.b16 %v211
  %v792 = vunpack.c.h.b16 %v211
  %v793 = vunpack.c.l.b16 %v212
  %v794 = vunpack.c.h.b16 %v212
  %v795 = vunpack.c.l.b16 %v213
  %v796 = vunpack.c.h.b16 %v213
  %v797 = vunpack.c.l.b16 %v214
  %v798 = vunpack.c.h.b16 %v214
  %v799 = vunpack.c.l.b16 %v215
  %v800 = vunpack.c.h.b16 %v215
  %v801 = vunpack.c.l.b16 %v216
  %v802 = vunpack.c.h.b16 %v216
  %v803 = vunpack.c.l.b16 %v217
  %v804 = vunpack.c.h.b16 %v217
  %v805 = vunpack.c.l.b16 %v218
  %v806 = vunpack.c.h.b16 %v218
  %v807 = vunpack.c.l.b16 %v219
  %v808 = vunpack.c.h.b16 %v219
  %v809 = vunpack.c.l.b16 %v220
  %v810 = vunpack.c.h.b16 %v220
  %v811 = vunpack.c.l.b16 %v221
  %v812 = vunpack.c.h.b16 %v221
  %v813 = vunpack.c.l.b16 %v222
  %v814 = vunpack.c.h.b16 %v222
  %v815 = vunpack.c.l.b16 %v223
  %v816 = vunpack.c.h.b16 %v223
  %v817 = vunpack.c.l.b16 %v224
  %v818 = vunpack.c.h.b16 %v224
  %v819 = vunpack.c.l.b16 %v225
  %v820 = vunpack.c.h.b16 %v225
  %v821 = vunpack.c.l.b16 %v226
  %v822 = vunpack.c.h.b16 %v226
  %v823 = vunpack.c.l.b16 %v227
  %v824 = vunpack.c.h.b16 %v227
  %v825 = vpack.c.b16 %v445, %v441
  %v826 = vpack.c.b16 %v446, %v442
  %v827 = vpack.c.b16 %v447, %v443
  %v828 = vpack.c.b16 %v448, %v444
  %v829 = vpack.c.b16 %v453, %v449
  %v830 = vpack.c.b16 %v454, %v450
  %v831 = vpack.c.b16 %v455, %v451
  %v832 = vpack.c.b16 %v456, %v452
  %v833 = vpack.c.b16 %v461, %v457
  %v834 = vpack.c.b16 %v462, %v458
  %v835 = vpack.c.b16 %v463, %v459
  %v836 = vpack.c.b16 %v464, %v460
  %v837 = vpack.c.b16 %v469, %v465
  %v838 = vpack.c.b16 %v470, %v466
  %v839 = vpack.c.b16 %v471, %v467
  %v840 = vpack.c.b16 %v472, %v468
  %v841 = vpack.c.b16 %v477, %v473
  %v842 = vpack.c.b16 %v478, %v474
  %v843 = vpack.c.b16 %v479, %v475
  %v844 = vpack.c.b16 %v480, %v476
  %v845 = vpack.c.b16 %v485, %v481
  %v846 = vpack.c.b16 %v486, %v482
  %v847 = vpack.c.b16 %v487, %v483
  %v848 = vpack.c.b16 %v488, %v484
  %v849 = vpack.c.b16 %v493, %v489
  %v850 = vpack.c.b16 %v494, %v490
  %v851 = vpack.c.b16 %v495, %v491
  %v852 = vpack.c.b16 %v496, %v492
  %v853 = vpack.c.b16 %v501, %v497
  %v854 = vpack.c.b16 %v502, %v498
  %v855 = vpack.c.b16 %v503, %v499
  %v856 = vpack.c.b16 %v504, %v500
  %v857 = vpack.c.b16 %v509, %v505
  %v858 = vpack.c.b16 %v510, %v506
  %v859 = vpack.c.b16 %v511, %v507
  %v860 = vpack.c.b16 %v512, %v508
  %v861 = vpack.c.b16 %v517, %v513
  %v862 = vpack.c.b16 %v518, %v514
  %v863 = vpack.c.b16 %v519, %v515
  %v864 = vpack.c.b16 %v520, %v516
  %v865 = vpack.c.b16 %v525, %v521
  %v866 = vpack.c.b16 %v526, %v522
  %v867 = vpack.c.b16 %v527, %v523
  %v868 = vpack.c.b16 %v528, %v524
  %v869 = vpack.c.b16 %v533, %v529
  %v870 = vpack.c.b16 %v534, %v530
  %v871 = vpack.c.b16 %v535, %v531
  %v872 = vpack.c.b16 %v536, %v532
  %v873 = vpack.c.b16 %v541, %v537
  %v874 = vpack.c.b16 %v542, %v538
  %v875 = vpack.c.b16 %v543, %v539
  %v876 = vpack.c.b16 %v544, %v540
  %v877 = vpack.c.b16 %v549, %v545
  %v878 = vpack.c.b16 %v550, %v546
  %v879 = vpack.c.b16 %v551, %v547
  %v880 = vpack.c.b16 %v552, %v548
  %v881 = vpack.c.b16 %v557, %v553
  %v882 = vpack.c.b16 %v558, %v554
  %v883 = vpack.c.b16 %v559, %v555
  %v884 = vpack.c.b16 %v560, %v556
  %v885 = vpack.c.b16 %v565, %v561
  %v886 = vpack.c.b16 %v566, %v562
  %v887 = vpack.c.b16 %v567, %v563
  %v888 = vpack.c.b16 %v568, %v564
  %v889 = vpack.c.b16 %v573, %v569
  %v890 = vpack.c.b16 %v574, %v570
  %v891 = vpack.c.b16 %v575, %v571
  %v892 = vpack.c.b16 %v576, %v572
  %v893 = vpack.c.b16 %v581, %v577
  %v894 = vpack.c.b16 %v582, %v578
  %v895 = vpack.c.b16 %v583, %v579
  %v896 = vpack.c.b16 %v584, %v580
  %v897 = vpack.c.b16 %v589, %v585
  %v898 = vpack.c.b16 %v590, %v586
  %v899 = vpack.c.b16 %v591, %v587
  %v900 = vpack.c.b16 %v592, %v588
  %v901 = vpack.c.b16 %v597, %v593
  %v902 = vpack.c.b16 %v598, %v594
  %v903 = vpack.c.b16 %v599, %v595
  %v904 = vpack.c.b16 %v600, %v596
  %v905 = vpack.c.b16 %v605, %v601
  %v906 = vpack.c.b16 %v606, %v602
  %v907 = vpack.c.b16 %v607, %v603
  %v908 = vpack.c.b16 %v608, %v604
  %v909 = vpack.c.b16 %v613, %v609
  %v910 = vpack.c.b16 %v614, %v610
  %v911 = vpack.c.b16 %v615, %v611
  %v912 = vpack.c.b16 %v616, %v612
  %v913 = vpack.c.b16 %v621, %v617
  %v914 = vpack.c.b16 %v622, %v618
  %v915 = vpack.c.b16 %v623, %v619
  %v916 = vpack.c.b16 %v624, %v620
  %v917 = vpack.c.b16 %v629, %v625
  %v918 = vpack.c.b16 %v630, %v626
  %v919 = vpack.c.b16 %v631, %v627
  %v920 = vpack.c.b16 %v632, %v628
  %v921 = vpack.c.b16 %v637, %v633
  %v922 = vpack.c.b16 %v638, %v634
  %v923 = vpack.c.b16 %v639, %v635
  %v924 = vpack.c.b16 %v640, %v636
  %v925 = vpack.c.b16 %v645, %v641
  %v926 = vpack.c.b16 %v646, %v642
  %v927 = vpack.c.b16 %v647, %v643
  %v928 = vpack.c.b16 %v648, %v644
  %v929 = vpack.c.b16 %v653, %v649
  %v930 = vpack.c.b16 %v654, %v650
  %v931 = vpack.c.b16 %v655, %v651
  %v932 = vpack.c.b16 %v656, %v652
  %v933 = vpack.c.b16 %v661, %v657
  %v934 = vpack.c.b16 %v662, %v658
  %v935 = vpack.c.b16 %v663, %v659
  %v936 = vpack.c.b16 %v664, %v660
  %v937 = vpack.c.b16 %v669, %v665
  %v938 = vpack.c.b16 %v670, %v666
  %v939 = vpack.c.b16 %v671, %v667
  %v940 = vpack.c.b16 %v672, %v668
  %v941 = vpack.c.b16 %v677, %v673
  %v942 = vpack.c.b16 %v678, %v674
  %v943 = vpack.c.b16 %v679, %v675
  %v944 = vpack.c.b16 %v680, %v676
  %v945 = vpack.c.b16 %v685, %v681
  %v946 = vpack.c.b16 %v686, %v682
  %v947 = vpack.c.b16 %v687, %v683
  %v948 = vpack.c.b16 %v688, %v684
  %v949 = vpack.c.b16 %v693, %v689
  %v950 = vpack.c.b16 %v694, %v690
  %v951 = vpack.c.b16 %v695, %v691
  %v952 = vpack.c.b16 %v696, %v692
  %v953 = vpack.c.b16 %v701, %v697
  %v954 = vpack.c.b16 %v702, %v698
  %v955 = vpack.c.b16 %v703, %v699
  %v956 = vpack.c.b16 %v704, %v700
  %v957 = vpack.c.b16 %v709, %v705
  %v958 = vpack.c.b16 %v710, %v706
  %v959 = vpack.c.b16 %v711, %v707
  %v960 = vpack.c.b16 %v712, %v708
  %v961 = vpack.c.b16 %v717, %v713
  %v962 = vpack.c.b16 %v718, %v714
  %v963 = vpack.c.b16 %v719, %v715
  %v964 = vpack.c.b16 %v720, %v716
  %v965 = vpack.c.b16 %v725, %v721
  %v966 = vpack.c.b16 %v726, %v722
  %v967 = vpack.c.b16 %v727, %v723
  %v968 = vpack.c.b16 %v728, %v724
  %v969 = vpack.c.b16 %v733, %v729
  %v970 = vpack.c.b16 %v734, %v730
  %v971 = vpack.c.b16 %v735, %v731
  %v972 = vpack.c.b16 %v736, %v732
  %v973 = vpack.c.b16 %v741, %v737
  %v974 = vpack.c.b16 %v742, %v738
  %v975 = vpack.c.b16 %v743, %v739
  %v976 = vpack.c.b16 %v744, %v740
  %v977 = vpack.c.b16 %v749, %v745
  %v978 = vpack.c.b16 %v750, %v746
  %v979 = vpack.c.b16 %v751, %v747
  %v980 = vpack.c.b16 %v752, %v748
  %v981 = vpack.c.b16 %v757, %v753
  %v982 = vpack.c.b16 %v758, %v754
  %v983 = vpack.c.b16 %v759, %v755
  %v984 = vpack.c.b16 %v760, %v756
  %v985 = vpack.c.b16 %v765, %v761
  %v986 = vpack.c.b16 %v766, %v762
  %v987 = vpack.c.b16 %v767, %v763
  %v988 = vpack.c.b16 %v768, %v764
  %v989 = vpack.c.b16 %v773, %v769
  %v990 = vpack.c.b16 %v774, %v770
  %v991 = vpack.c.b16 %v775, %v771
  %v992 = vpack.c.b16 %v776, %v772
  %v993 = vpack.c.b16 %v781, %v777
  %v994 = vpack.c.b16 %v782, %v778
  %v995 = vpack.c.b16 %v783, %v779
  %v996 = vpack.c.b16 %v784, %v780
  %v997 = vpack.c.b16 %v789, %v785
  %v998 = vpack.c.b16 %v790, %v786
  %v999 = vpack.c.b16 %v791, %v787
  %v1000 = vpack.c.b16 %v792, %v788
  %v1001 = vpack.c.b16 %v797, %v793
  %v1002 = vpack.c.b16 %v798, %v794
  %v1003 = vpack.c.b16 %v799, %v795
  %v1004 = vpack.c.b16 %v800, %v796
  %v1005 = vpack.c.b16 %v805, %v801
  %v1006 = vpack.c.b16 %v806, %v802
  %v1007 = vpack.c.b16 %v807, %v803
  %v1008 = vpack.c.b16 %v808, %v804
  %v1009 = vpack.c.b16 %v813, %v809
  %v1010 = vpack.c.b16 %v814, %v810
  %v1011 = vpack.c.b16 %v815, %v811
  %v1012 = vpack.c.b16 %v816, %v812
  %v1013 = vpack.c.b16 %v821, %v817
  %v1014 = vpack.c.b16 %v822, %v818
  %v1015 = vpack.c.b16 %v823, %v819
  %v1016 = vpack.c.b16 %v824, %v820
  %1209 = vmatprep.subr.bf16.mxu0 %v854
  %1210 = vmatpush1.bf16.msra.mxu0 %v853
  %1211 = vmatprep.subr.bf16.mxu0 %v850
  %1212 = vmatpush1.bf16.msra.mxu0 %v849
  %1213 = vmatprep.subr.bf16.mxu0 %v846
  %1214 = vmatpush1.bf16.msra.mxu0 %v845
  %1215 = vmatprep.subr.bf16.mxu0 %v842
  %1216 = vmatpush1.bf16.msra.mxu0 %v841
  %1217 = vmatprep.subr.bf16.mxu0 %v838
  %1218 = vmatpush1.bf16.msra.mxu0 %v837
  %1219 = vmatprep.subr.bf16.mxu0 %v834
  %1220 = vmatpush1.bf16.msra.mxu0 %v833
  %1221 = vmatprep.subr.bf16.mxu0 %v830
  %1222 = vmatpush1.bf16.msra.mxu0 %v829
  %1223 = vmatprep.subr.bf16.mxu0 %v826
  %1224 = vmatpush1.bf16.msra.mxu0 %v825
  %1225 = vmatprep.subr.bf16.mxu0 %v886
  %1226 = vmatpush2.bf16.msra.mxu0 %v885
  %1227 = vmatprep.subr.bf16.mxu0 %v882
  %1228 = vmatpush2.bf16.msra.mxu0 %v881
  %1229 = vmatprep.subr.bf16.mxu0 %v878
  %1230 = vmatpush2.bf16.msra.mxu0 %v877
  %1231 = vmatprep.subr.bf16.mxu0 %v874
  %1232 = vmatpush2.bf16.msra.mxu0 %v873
  %1233 = vmatprep.subr.bf16.mxu0 %v870
  %1234 = vmatpush2.bf16.msra.mxu0 %v869
  %1235 = vmatprep.subr.bf16.mxu0 %v866
  %1236 = vmatpush2.bf16.msra.mxu0 %v865
  %1237 = vmatprep.subr.bf16.mxu0 %v862
  %1238 = vmatpush2.bf16.msra.mxu0 %v861
  %1239 = vmatprep.subr.bf16.mxu0 %v858
  %1240 = vmatpush2.bf16.msra.mxu0 %v857
  %1241 = vmatprep.mubr.bf16.mxu0 %v238
  %1242 = vmatmul.mubr.bf16.gmra.mxu0 %v237
  %v1243 = vpop.f32.mrf.mxu0
  %v1244 = vadd.f32 0.0, %v1243
  %v1245 = vpop.f32.mrf.mxu0
  %v1246 = vadd.f32 0.0, %v1245
  %v1247 = vpop.f32.mrf.mxu0
  %v1248 = vpop.f32.mrf.mxu0
  %1249 = vdwg.mxu0
  %1250 = vmatprep.subr.bf16.mxu0 %v918
  %1251 = vmatpush1.bf16.msra.mxu0 %v917
  %1252 = vmatprep.subr.bf16.mxu0 %v914
  %1253 = vmatpush1.bf16.msra.mxu0 %v913
  %1254 = vmatprep.subr.bf16.mxu0 %v910
  %1255 = vmatpush1.bf16.msra.mxu0 %v909
  %1256 = vmatprep.subr.bf16.mxu0 %v906
  %1257 = vmatpush1.bf16.msra.mxu0 %v905
  %1258 = vmatprep.subr.bf16.mxu0 %v902
  %1259 = vmatpush1.bf16.msra.mxu0 %v901
  %1260 = vmatprep.subr.bf16.mxu0 %v898
  %1261 = vmatpush1.bf16.msra.mxu0 %v897
  %1262 = vmatprep.subr.bf16.mxu0 %v894
  %1263 = vmatpush1.bf16.msra.mxu0 %v893
  %1264 = vmatprep.subr.bf16.mxu0 %v890
  %1265 = vmatpush1.bf16.msra.mxu0 %v889
  %1266 = vmatprep.subr.bf16.mxu0 %v950
  %1267 = vmatpush2.bf16.msra.mxu0 %v949
  %1268 = vmatprep.subr.bf16.mxu0 %v946
  %1269 = vmatpush2.bf16.msra.mxu0 %v945
  %1270 = vmatprep.subr.bf16.mxu0 %v942
  %1271 = vmatpush2.bf16.msra.mxu0 %v941
  %1272 = vmatprep.subr.bf16.mxu0 %v938
  %1273 = vmatpush2.bf16.msra.mxu0 %v937
  %1274 = vmatprep.subr.bf16.mxu0 %v934
  %1275 = vmatpush2.bf16.msra.mxu0 %v933
  %1276 = vmatprep.subr.bf16.mxu0 %v930
  %1277 = vmatpush2.bf16.msra.mxu0 %v929
  %1278 = vmatprep.subr.bf16.mxu0 %v926
  %1279 = vmatpush2.bf16.msra.mxu0 %v925
  %1280 = vmatprep.subr.bf16.mxu0 %v922
  %1281 = vmatpush2.bf16.msra.mxu0 %v921
  %1282 = vmatprep.mubr.bf16.mxu0 %v240
  %1283 = vmatmul.mubr.bf16.gmra.mxu0 %v239
  %v1284 = vpop.f32.mrf.mxu0
  %v1285 = vadd.f32 %v1244, %v1284
  %v1286 = vpop.f32.mrf.mxu0
  %v1287 = vadd.f32 %v1246, %v1286
  %v1288 = vpop.f32.mrf.mxu0
  %v1289 = vpop.f32.mrf.mxu0
  %1290 = vdwg.mxu0
  %1291 = vmatprep.subr.bf16.mxu0 %v982
  %1292 = vmatpush1.bf16.msra.mxu0 %v981
  %1293 = vmatprep.subr.bf16.mxu0 %v978
  %1294 = vmatpush1.bf16.msra.mxu0 %v977
  %1295 = vmatprep.subr.bf16.mxu0 %v974
  %1296 = vmatpush1.bf16.msra.mxu0 %v973
  %1297 = vmatprep.subr.bf16.mxu0 %v970
  %1298 = vmatpush1.bf16.msra.mxu0 %v969
  %1299 = vmatprep.subr.bf16.mxu0 %v966
  %1300 = vmatpush1.bf16.msra.mxu0 %v965
  %1301 = vmatprep.subr.bf16.mxu0 %v962
  %1302 = vmatpush1.bf16.msra.mxu0 %v961
  %1303 = vmatprep.subr.bf16.mxu0 %v958
  %1304 = vmatpush1.bf16.msra.mxu0 %v957
  %1305 = vmatprep.subr.bf16.mxu0 %v954
  %1306 = vmatpush1.bf16.msra.mxu0 %v953
  %1307 = vmatprep.subr.bf16.mxu0 %v1014
  %1308 = vmatpush2.bf16.msra.mxu0 %v1013
  %1309 = vmatprep.subr.bf16.mxu0 %v1010
  %1310 = vmatpush2.bf16.msra.mxu0 %v1009
  %1311 = vmatprep.subr.bf16.mxu0 %v1006
  %1312 = vmatpush2.bf16.msra.mxu0 %v1005
  %1313 = vmatprep.subr.bf16.mxu0 %v1002
  %1314 = vmatpush2.bf16.msra.mxu0 %v1001
  %1315 = vmatprep.subr.bf16.mxu0 %v998
  %1316 = vmatpush2.bf16.msra.mxu0 %v997
  %1317 = vmatprep.subr.bf16.mxu0 %v994
  %1318 = vmatpush2.bf16.msra.mxu0 %v993
  %1319 = vmatprep.subr.bf16.mxu0 %v990
  %1320 = vmatpush2.bf16.msra.mxu0 %v989
  %1321 = vmatprep.subr.bf16.mxu0 %v986
  %1322 = vmatpush2.bf16.msra.mxu0 %v985
  %1323 = vmatprep.mubr.bf16.mxu0 %v242
  %1324 = vmatmul.mubr.bf16.gmra.mxu0 %v241
  %v1325 = vpop.f32.mrf.mxu0
  %v1326 = vadd.f32 %v1285, %v1325
  %v1327 = vpop.f32.mrf.mxu0
  %v1328 = vadd.f32 %v1287, %v1327
  %v1329 = vpop.f32.mrf.mxu0
  %v1330 = vpop.f32.mrf.mxu0
  %1331 = vdwg.mxu0
  %1332 = vmatprep.subr.bf16.mxu0 %v856
  %1333 = vmatpush1.bf16.msra.mxu0 %v855
  %1334 = vmatprep.subr.bf16.mxu0 %v852
  %1335 = vmatpush1.bf16.msra.mxu0 %v851
  %1336 = vmatprep.subr.bf16.mxu0 %v848
  %1337 = vmatpush1.bf16.msra.mxu0 %v847
  %1338 = vmatprep.subr.bf16.mxu0 %v844
  %1339 = vmatpush1.bf16.msra.mxu0 %v843
  %1340 = vmatprep.subr.bf16.mxu0 %v840
  %1341 = vmatpush1.bf16.msra.mxu0 %v839
  %1342 = vmatprep.subr.bf16.mxu0 %v836
  %1343 = vmatpush1.bf16.msra.mxu0 %v835
  %1344 = vmatprep.subr.bf16.mxu0 %v832
  %1345 = vmatpush1.bf16.msra.mxu0 %v831
  %1346 = vmatprep.subr.bf16.mxu0 %v828
  %1347 = vmatpush1.bf16.msra.mxu0 %v827
  %1348 = vmatprep.subr.bf16.mxu0 %v888
  %1349 = vmatpush2.bf16.msra.mxu0 %v887
  %1350 = vmatprep.subr.bf16.mxu0 %v884
  %1351 = vmatpush2.bf16.msra.mxu0 %v883
  %1352 = vmatprep.subr.bf16.mxu0 %v880
  %1353 = vmatpush2.bf16.msra.mxu0 %v879
  %1354 = vmatprep.subr.bf16.mxu0 %v876
  %1355 = vmatpush2.bf16.msra.mxu0 %v875
  %1356 = vmatprep.subr.bf16.mxu0 %v872
  %1357 = vmatpush2.bf16.msra.mxu0 %v871
  %1358 = vmatprep.subr.bf16.mxu0 %v868
  %1359 = vmatpush2.bf16.msra.mxu0 %v867
  %1360 = vmatprep.subr.bf16.mxu0 %v864
  %1361 = vmatpush2.bf16.msra.mxu0 %v863
  %1362 = vmatprep.subr.bf16.mxu0 %v860
  %1363 = vmatpush2.bf16.msra.mxu0 %v859
  %1364 = vmatprep.mubr.bf16.mxu0 %v238
  %1365 = vmatmul.mubr.bf16.gmra.mxu0 %v237
  %v1366 = vpop.f32.mrf.mxu0
  %v1367 = vadd.f32 0.0, %v1366
  %v1368 = vpop.f32.mrf.mxu0
  %v1369 = vadd.f32 0.0, %v1368
  %v1370 = vpop.f32.mrf.mxu0
  %v1371 = vpop.f32.mrf.mxu0
  %1372 = vdwg.mxu0
  %1373 = vmatprep.subr.bf16.mxu0 %v920
  %1374 = vmatpush1.bf16.msra.mxu0 %v919
  %1375 = vmatprep.subr.bf16.mxu0 %v916
  %1376 = vmatpush1.bf16.msra.mxu0 %v915
  %1377 = vmatprep.subr.bf16.mxu0 %v912
  %1378 = vmatpush1.bf16.msra.mxu0 %v911
  %1379 = vmatprep.subr.bf16.mxu0 %v908
  %1380 = vmatpush1.bf16.msra.mxu0 %v907
  %1381 = vmatprep.subr.bf16.mxu0 %v904
  %1382 = vmatpush1.bf16.msra.mxu0 %v903
  %1383 = vmatprep.subr.bf16.mxu0 %v900
  %1384 = vmatpush1.bf16.msra.mxu0 %v899
  %1385 = vmatprep.subr.bf16.mxu0 %v896
  %1386 = vmatpush1.bf16.msra.mxu0 %v895
  %1387 = vmatprep.subr.bf16.mxu0 %v892
  %1388 = vmatpush1.bf16.msra.mxu0 %v891
  %1389 = vmatprep.subr.bf16.mxu0 %v952
  %1390 = vmatpush2.bf16.msra.mxu0 %v951
  %1391 = vmatprep.subr.bf16.mxu0 %v948
  %1392 = vmatpush2.bf16.msra.mxu0 %v947
  %1393 = vmatprep.subr.bf16.mxu0 %v944
  %1394 = vmatpush2.bf16.msra.mxu0 %v943
  %1395 = vmatprep.subr.bf16.mxu0 %v940
  %1396 = vmatpush2.bf16.msra.mxu0 %v939
  %1397 = vmatprep.subr.bf16.mxu0 %v936
  %1398 = vmatpush2.bf16.msra.mxu0 %v935
  %1399 = vmatprep.subr.bf16.mxu0 %v932
  %1400 = vmatpush2.bf16.msra.mxu0 %v931
  %1401 = vmatprep.subr.bf16.mxu0 %v928
  %1402 = vmatpush2.bf16.msra.mxu0 %v927
  %1403 = vmatprep.subr.bf16.mxu0 %v924
  %1404 = vmatpush2.bf16.msra.mxu0 %v923
  %1405 = vmatprep.mubr.bf16.mxu0 %v240
  %1406 = vmatmul.mubr.bf16.gmra.mxu0 %v239
  %v1407 = vpop.f32.mrf.mxu0
  %v1408 = vadd.f32 %v1367, %v1407
  %v1409 = vpop.f32.mrf.mxu0
  %v1410 = vadd.f32 %v1369, %v1409
  %v1411 = vpop.f32.mrf.mxu0
  %v1412 = vpop.f32.mrf.mxu0
  %1413 = vdwg.mxu0
  %1414 = vmatprep.subr.bf16.mxu0 %v984
  %1415 = vmatpush1.bf16.msra.mxu0 %v983
  %1416 = vmatprep.subr.bf16.mxu0 %v980
  %1417 = vmatpush1.bf16.msra.mxu0 %v979
  %1418 = vmatprep.subr.bf16.mxu0 %v976
  %1419 = vmatpush1.bf16.msra.mxu0 %v975
  %1420 = vmatprep.subr.bf16.mxu0 %v972
  %1421 = vmatpush1.bf16.msra.mxu0 %v971
  %1422 = vmatprep.subr.bf16.mxu0 %v968
  %1423 = vmatpush1.bf16.msra.mxu0 %v967
  %1424 = vmatprep.subr.bf16.mxu0 %v964
  %1425 = vmatpush1.bf16.msra.mxu0 %v963
  %1426 = vmatprep.subr.bf16.mxu0 %v960
  %1427 = vmatpush1.bf16.msra.mxu0 %v959
  %1428 = vmatprep.subr.bf16.mxu0 %v956
  %1429 = vmatpush1.bf16.msra.mxu0 %v955
  %1430 = vmatprep.subr.bf16.mxu0 %v1016
  %1431 = vmatpush2.bf16.msra.mxu0 %v1015
  %1432 = vmatprep.subr.bf16.mxu0 %v1012
  %1433 = vmatpush2.bf16.msra.mxu0 %v1011
  %1434 = vmatprep.subr.bf16.mxu0 %v1008
  %1435 = vmatpush2.bf16.msra.mxu0 %v1007
  %1436 = vmatprep.subr.bf16.mxu0 %v1004
  %1437 = vmatpush2.bf16.msra.mxu0 %v1003
  %1438 = vmatprep.subr.bf16.mxu0 %v1000
  %1439 = vmatpush2.bf16.msra.mxu0 %v999
  %1440 = vmatprep.subr.bf16.mxu0 %v996
  %1441 = vmatpush2.bf16.msra.mxu0 %v995
  %1442 = vmatprep.subr.bf16.mxu0 %v992
  %1443 = vmatpush2.bf16.msra.mxu0 %v991
  %1444 = vmatprep.subr.bf16.mxu0 %v988
  %1445 = vmatpush2.bf16.msra.mxu0 %v987
  %1446 = vmatprep.mubr.bf16.mxu0 %v242
  %1447 = vmatmul.mubr.bf16.gmra.mxu0 %v241
  %v1448 = vpop.f32.mrf.mxu0
  %v1449 = vadd.f32 %v1408, %v1448
  %v1450 = vpop.f32.mrf.mxu0
  %v1451 = vadd.f32 %v1410, %v1450
  %v1452 = vpop.f32.mrf.mxu0
  %v1453 = vpop.f32.mrf.mxu0
  %1454 = vdwg.mxu0
  %v1455 = vadd.f32 %v29, %v1326
  %v1456 = vadd.f32 %v30, %v1328
  %v1457 = vadd.f32 %v31, %v1449
  %v1458 = vadd.f32 %v32, %v1451
  %1459 = vst [vmem:[#allocation2] sm:$0xff] %v1455
  %1460 = vst [vmem:[#allocation2 + $0x8] sm:$0xff] %v1456
  %1461 = vst [vmem:[#allocation2 + $0x10] sm:$0xff] %v1457
  %1462 = vst [vmem:[#allocation2 + $0x18] sm:$0xff] %v1458
  // Predicated region
  $region26: #{net_forward.7} parent=0 // pred_check
    %p1463 = pneg %p21
  $region27: #{net_forward.7} parent=0 // pred_check_branch
    %1465 = sbr.rel (%p1463) target = $region29
  $region28: #{net_forward.7} parent=0 // pred_region
    %v1466 = vld [vmem:[#allocation2] sm:$0xff]
    %v1467 = vld [vmem:[#allocation2 + $0x8] sm:$0xff]
    %v1468 = vld [vmem:[#allocation2 + $0x10] sm:$0xff]
    %v1469 = vld [vmem:[#allocation2 + $0x18] sm:$0xff]
    %v1470 = vld [vmem:[%s2] sm:$0xf]
    %v1472 = vlaneseq
    %v1473 = vshrl.u32 %v1472, 7
    %v1474 = vsub.s32 0, %v1473
    %v1475 = vrot.slane %v1470, %v1474
    %v1476 = vlaneseq
    %v1477 = vshrl.u32 %v1476, 7
    %v1478 = vsub.s32 1, %v1477
    %v1479 = vrot.slane %v1470, %v1478
    %v1480 = vlaneseq
    %v1481 = vshrl.u32 %v1480, 7
    %v1482 = vsub.s32 2, %v1481
    %v1483 = vrot.slane %v1470, %v1482
    %v1484 = vlaneseq
    %v1485 = vshrl.u32 %v1484, 7
    %v1486 = vsub.s32 3, %v1485
    %v1487 = vrot.slane %v1470, %v1486
    %v1492 = vadd.f32 %v1466, %v1475
    %v1493 = vadd.f32 %v1467, %v1479
    %v1494 = vadd.f32 %v1468, %v1483
    %v1495 = vadd.f32 %v1469, %v1487
    %v1496 = vmax.f32 %v1492, 0.0
    %v1497 = vmax.f32 %v1493, 0.0
    %v1498 = vmax.f32 %v1494, 0.0
    %v1499 = vmax.f32 %v1495, 0.0
    %v1500 = vpack.c.bf16 %v1496, %v1496
    %v1501 = vpack.c.bf16 %v1497, %v1497
    %v1502 = vpack.c.bf16 %v1498, %v1498
    %v1503 = vpack.c.bf16 %v1499, %v1499
    %v1504 = vld [vmem:[%s3] sm:$0xf]
    %v1505 = vld [vmem:[%s3 + $0x4] sm:$0xf]
    %v1506 = vld [vmem:[%s3 + $0x8] sm:$0xf]
    %v1507 = vld [vmem:[%s3 + $0xc] sm:$0xf]
    %v1508 = vld [vmem:[%s3 + $0x10] sm:$0xf]
    %v1509 = vld [vmem:[%s3 + $0x14] sm:$0xf]
    %v1510 = vld [vmem:[%s3 + $0x18] sm:$0xf]
    %v1511 = vld [vmem:[%s3 + $0x1c] sm:$0xf]
    %v1512 = vld [vmem:[%s3 + $0x20] sm:$0xf]
    %v1513 = vld [vmem:[%s3 + $0x24] sm:$0xf]
    %v1514 = vld [vmem:[%s3 + $0x28] sm:$0xf]
    %v1515 = vld [vmem:[%s3 + $0x2c] sm:$0xf]
    %v1516 = vld [vmem:[%s3 + $0x30] sm:$0xf]
    %v1517 = vld [vmem:[%s3 + $0x34] sm:$0xf]
    %v1518 = vld [vmem:[%s3 + $0x38] sm:$0xf]
    %v1519 = vld [vmem:[%s3 + $0x3c] sm:$0xf]
    %v1520 = vld [vmem:[%s3 + $0x40] sm:$0xf]
    %v1521 = vld [vmem:[%s3 + $0x44] sm:$0xf]
    %v1522 = vld [vmem:[%s3 + $0x48] sm:$0xf]
    %v1523 = vld [vmem:[%s3 + $0x4c] sm:$0xf]
    %v1524 = vld [vmem:[%s3 + $0x50] sm:$0xf]
    %v1525 = vld [vmem:[%s3 + $0x54] sm:$0xf]
    %v1526 = vld [vmem:[%s3 + $0x58] sm:$0xf]
    %v1527 = vld [vmem:[%s3 + $0x5c] sm:$0xf]
    %v1528 = vld [vmem:[%s3 + $0x60] sm:$0xf]
    %v1529 = vld [vmem:[%s3 + $0x64] sm:$0xf]
    %v1530 = vld [vmem:[%s3 + $0x68] sm:$0xf]
    %v1531 = vld [vmem:[%s3 + $0x6c] sm:$0xf]
    %v1532 = vld [vmem:[%s3 + $0x70] sm:$0xf]
    %v1533 = vld [vmem:[%s3 + $0x74] sm:$0xf]
    %v1534 = vld [vmem:[%s3 + $0x78] sm:$0xf]
    %v1535 = vld [vmem:[%s3 + $0x7c] sm:$0xf]
    %v1536 = vld [vmem:[%s3 + $0x80] sm:$0xf]
    %v1537 = vld [vmem:[%s3 + $0x84] sm:$0xf]
    %v1538 = vld [vmem:[%s3 + $0x88] sm:$0xf]
    %v1539 = vld [vmem:[%s3 + $0x8c] sm:$0xf]
    %v1540 = vld [vmem:[%s3 + $0x90] sm:$0xf]
    %v1541 = vld [vmem:[%s3 + $0x94] sm:$0xf]
    %v1542 = vld [vmem:[%s3 + $0x98] sm:$0xf]
    %v1543 = vld [vmem:[%s3 + $0x9c] sm:$0xf]
    %v1544 = vld [vmem:[%s3 + $0xa0] sm:$0xf]
    %v1545 = vld [vmem:[%s3 + $0xa4] sm:$0xf]
    %v1546 = vld [vmem:[%s3 + $0xa8] sm:$0xf]
    %v1547 = vld [vmem:[%s3 + $0xac] sm:$0xf]
    %v1548 = vld [vmem:[%s3 + $0xb0] sm:$0xf]
    %v1549 = vld [vmem:[%s3 + $0xb4] sm:$0xf]
    %v1550 = vld [vmem:[%s3 + $0xb8] sm:$0xf]
    %v1551 = vld [vmem:[%s3 + $0xbc] sm:$0xf]
    %v1552 = vld [vmem:[%s3 + $0xc0] sm:$0xf]
    %v1553 = vld [vmem:[%s3 + $0xc4] sm:$0xf]
    %v1554 = vld [vmem:[%s3 + $0xc8] sm:$0xf]
    %v1555 = vld [vmem:[%s3 + $0xcc] sm:$0xf]
    %v1556 = vld [vmem:[%s3 + $0xd0] sm:$0xf]
    %v1557 = vld [vmem:[%s3 + $0xd4] sm:$0xf]
    %v1558 = vld [vmem:[%s3 + $0xd8] sm:$0xf]
    %v1559 = vld [vmem:[%s3 + $0xdc] sm:$0xf]
    %v1560 = vld [vmem:[%s3 + $0xe0] sm:$0xf]
    %v1561 = vld [vmem:[%s3 + $0xe4] sm:$0xf]
    %v1562 = vld [vmem:[%s3 + $0xe8] sm:$0xf]
    %v1563 = vld [vmem:[%s3 + $0xec] sm:$0xf]
    %v1564 = vld [vmem:[%s3 + $0xf0] sm:$0xf]
    %v1565 = vld [vmem:[%s3 + $0xf4] sm:$0xf]
    %v1566 = vld [vmem:[%s3 + $0xf8] sm:$0xf]
    %v1567 = vld [vmem:[%s3 + $0xfc] sm:$0xf]
    %v1568 = vld [vmem:[%s4] sm:$0x1]
    %v1570 = vlaneseq
    %v1571 = vshrl.u32 %v1570, 7
    %v1572 = vsub.s32 0, %v1571
    %v1573 = vrot.slane %v1568, %v1572
    %v1639 = vunpack.c.l.b16 %v1504
    %v1640 = vunpack.c.l.b16 %v1505
    %v1641 = vunpack.c.l.b16 %v1506
    %v1642 = vunpack.c.l.b16 %v1507
    %v1643 = vunpack.c.l.b16 %v1508
    %v1644 = vunpack.c.l.b16 %v1509
    %v1645 = vunpack.c.l.b16 %v1510
    %v1646 = vunpack.c.l.b16 %v1511
    %v1647 = vunpack.c.l.b16 %v1512
    %v1648 = vunpack.c.l.b16 %v1513
    %v1649 = vunpack.c.l.b16 %v1514
    %v1650 = vunpack.c.l.b16 %v1515
    %v1651 = vunpack.c.l.b16 %v1516
    %v1652 = vunpack.c.l.b16 %v1517
    %v1653 = vunpack.c.l.b16 %v1518
    %v1654 = vunpack.c.l.b16 %v1519
    %v1655 = vunpack.c.l.b16 %v1520
    %v1656 = vunpack.c.l.b16 %v1521
    %v1657 = vunpack.c.l.b16 %v1522
    %v1658 = vunpack.c.l.b16 %v1523
    %v1659 = vunpack.c.l.b16 %v1524
    %v1660 = vunpack.c.l.b16 %v1525
    %v1661 = vunpack.c.l.b16 %v1526
    %v1662 = vunpack.c.l.b16 %v1527
    %v1663 = vunpack.c.l.b16 %v1528
    %v1664 = vunpack.c.l.b16 %v1529
    %v1665 = vunpack.c.l.b16 %v1530
    %v1666 = vunpack.c.l.b16 %v1531
    %v1667 = vunpack.c.l.b16 %v1532
    %v1668 = vunpack.c.l.b16 %v1533
    %v1669 = vunpack.c.l.b16 %v1534
    %v1670 = vunpack.c.l.b16 %v1535
    %v1671 = vunpack.c.l.b16 %v1536
    %v1672 = vunpack.c.l.b16 %v1537
    %v1673 = vunpack.c.l.b16 %v1538
    %v1674 = vunpack.c.l.b16 %v1539
    %v1675 = vunpack.c.l.b16 %v1540
    %v1676 = vunpack.c.l.b16 %v1541
    %v1677 = vunpack.c.l.b16 %v1542
    %v1678 = vunpack.c.l.b16 %v1543
    %v1679 = vunpack.c.l.b16 %v1544
    %v1680 = vunpack.c.l.b16 %v1545
    %v1681 = vunpack.c.l.b16 %v1546
    %v1682 = vunpack.c.l.b16 %v1547
    %v1683 = vunpack.c.l.b16 %v1548
    %v1684 = vunpack.c.l.b16 %v1549
    %v1685 = vunpack.c.l.b16 %v1550
    %v1686 = vunpack.c.l.b16 %v1551
    %v1687 = vunpack.c.l.b16 %v1552
    %v1688 = vunpack.c.l.b16 %v1553
    %v1689 = vunpack.c.l.b16 %v1554
    %v1690 = vunpack.c.l.b16 %v1555
    %v1691 = vunpack.c.l.b16 %v1556
    %v1692 = vunpack.c.l.b16 %v1557
    %v1693 = vunpack.c.l.b16 %v1558
    %v1694 = vunpack.c.l.b16 %v1559
    %v1695 = vunpack.c.l.b16 %v1560
    %v1696 = vunpack.c.l.b16 %v1561
    %v1697 = vunpack.c.l.b16 %v1562
    %v1698 = vunpack.c.l.b16 %v1563
    %v1699 = vunpack.c.l.b16 %v1564
    %v1700 = vunpack.c.l.b16 %v1565
    %v1701 = vunpack.c.l.b16 %v1566
    %v1702 = vunpack.c.l.b16 %v1567
    %v1703 = vpack.c.b16 %v1640, %v1639
    %v1704 = vpack.c.b16 %v1642, %v1641
    %v1705 = vpack.c.b16 %v1644, %v1643
    %v1706 = vpack.c.b16 %v1646, %v1645
    %v1707 = vpack.c.b16 %v1648, %v1647
    %v1708 = vpack.c.b16 %v1650, %v1649
    %v1709 = vpack.c.b16 %v1652, %v1651
    %v1710 = vpack.c.b16 %v1654, %v1653
    %v1711 = vpack.c.b16 %v1656, %v1655
    %v1712 = vpack.c.b16 %v1658, %v1657
    %v1713 = vpack.c.b16 %v1660, %v1659
    %v1714 = vpack.c.b16 %v1662, %v1661
    %v1715 = vpack.c.b16 %v1664, %v1663
    %v1716 = vpack.c.b16 %v1666, %v1665
    %v1717 = vpack.c.b16 %v1668, %v1667
    %v1718 = vpack.c.b16 %v1670, %v1669
    %v1719 = vpack.c.b16 %v1672, %v1671
    %v1720 = vpack.c.b16 %v1674, %v1673
    %v1721 = vpack.c.b16 %v1676, %v1675
    %v1722 = vpack.c.b16 %v1678, %v1677
    %v1723 = vpack.c.b16 %v1680, %v1679
    %v1724 = vpack.c.b16 %v1682, %v1681
    %v1725 = vpack.c.b16 %v1684, %v1683
    %v1726 = vpack.c.b16 %v1686, %v1685
    %v1727 = vpack.c.b16 %v1688, %v1687
    %v1728 = vpack.c.b16 %v1690, %v1689
    %v1729 = vpack.c.b16 %v1692, %v1691
    %v1730 = vpack.c.b16 %v1694, %v1693
    %v1731 = vpack.c.b16 %v1696, %v1695
    %v1732 = vpack.c.b16 %v1698, %v1697
    %v1733 = vpack.c.b16 %v1700, %v1699
    %v1734 = vpack.c.b16 %v1702, %v1701
    %1767 = vmatprep.subr.bf16.mxu0 0
    %1768 = vmatpush1.bf16.msra.mxu0 %v1710
    %1769 = vmatprep.subr.bf16.mxu0 0
    %1770 = vmatpush1.bf16.msra.mxu0 %v1709
    %1771 = vmatprep.subr.bf16.mxu0 0
    %1772 = vmatpush1.bf16.msra.mxu0 %v1708
    %1773 = vmatprep.subr.bf16.mxu0 0
    %1774 = vmatpush1.bf16.msra.mxu0 %v1707
    %1775 = vmatprep.subr.bf16.mxu0 0
    %1776 = vmatpush1.bf16.msra.mxu0 %v1706
    %1777 = vmatprep.subr.bf16.mxu0 0
    %1778 = vmatpush1.bf16.msra.mxu0 %v1705
    %1779 = vmatprep.subr.bf16.mxu0 0
    %1780 = vmatpush1.bf16.msra.mxu0 %v1704
    %1781 = vmatprep.subr.bf16.mxu0 0
    %1782 = vmatpush1.bf16.msra.mxu0 %v1703
    %1783 = vmatprep.subr.bf16.mxu0 0
    %1784 = vmatpush2.bf16.msra.mxu0 %v1718
    %1785 = vmatprep.subr.bf16.mxu0 0
    %1786 = vmatpush2.bf16.msra.mxu0 %v1717
    %1787 = vmatprep.subr.bf16.mxu0 0
    %1788 = vmatpush2.bf16.msra.mxu0 %v1716
    %1789 = vmatprep.subr.bf16.mxu0 0
    %1790 = vmatpush2.bf16.msra.mxu0 %v1715
    %1791 = vmatprep.subr.bf16.mxu0 0
    %1792 = vmatpush2.bf16.msra.mxu0 %v1714
    %1793 = vmatprep.subr.bf16.mxu0 0
    %1794 = vmatpush2.bf16.msra.mxu0 %v1713
    %1795 = vmatprep.subr.bf16.mxu0 0
    %1796 = vmatpush2.bf16.msra.mxu0 %v1712
    %1797 = vmatprep.subr.bf16.mxu0 0
    %1798 = vmatpush2.bf16.msra.mxu0 %v1711
    %1799 = vmatprep.mubr.bf16.mxu0 %v1501
    %1800 = vmatmul.mubr.bf16.gmra.mxu0 %v1500
    %v1801 = vpop.f32.mrf.mxu0
    %v1802 = vadd.f32 %v1573, %v1801
    %v1803 = vpop.f32.mrf.mxu0
    %v1804 = vpop.f32.mrf.mxu0
    %v1805 = vpop.f32.mrf.mxu0
    %1806 = vdwg.mxu0
    %1807 = vmatprep.subr.bf16.mxu0 0
    %1808 = vmatpush1.bf16.msra.mxu0 %v1726
    %1809 = vmatprep.subr.bf16.mxu0 0
    %1810 = vmatpush1.bf16.msra.mxu0 %v1725
    %1811 = vmatprep.subr.bf16.mxu0 0
    %1812 = vmatpush1.bf16.msra.mxu0 %v1724
    %1813 = vmatprep.subr.bf16.mxu0 0
    %1814 = vmatpush1.bf16.msra.mxu0 %v1723
    %1815 = vmatprep.subr.bf16.mxu0 0
    %1816 = vmatpush1.bf16.msra.mxu0 %v1722
    %1817 = vmatprep.subr.bf16.mxu0 0
    %1818 = vmatpush1.bf16.msra.mxu0 %v1721
    %1819 = vmatprep.subr.bf16.mxu0 0
    %1820 = vmatpush1.bf16.msra.mxu0 %v1720
    %1821 = vmatprep.subr.bf16.mxu0 0
    %1822 = vmatpush1.bf16.msra.mxu0 %v1719
    %1823 = vmatprep.subr.bf16.mxu0 0
    %1824 = vmatpush2.bf16.msra.mxu0 %v1734
    %1825 = vmatprep.subr.bf16.mxu0 0
    %1826 = vmatpush2.bf16.msra.mxu0 %v1733
    %1827 = vmatprep.subr.bf16.mxu0 0
    %1828 = vmatpush2.bf16.msra.mxu0 %v1732
    %1829 = vmatprep.subr.bf16.mxu0 0
    %1830 = vmatpush2.bf16.msra.mxu0 %v1731
    %1831 = vmatprep.subr.bf16.mxu0 0
    %1832 = vmatpush2.bf16.msra.mxu0 %v1730
    %1833 = vmatprep.subr.bf16.mxu0 0
    %1834 = vmatpush2.bf16.msra.mxu0 %v1729
    %1835 = vmatprep.subr.bf16.mxu0 0
    %1836 = vmatpush2.bf16.msra.mxu0 %v1728
    %1837 = vmatprep.subr.bf16.mxu0 0
    %1838 = vmatpush2.bf16.msra.mxu0 %v1727
    %1839 = vmatprep.mubr.bf16.mxu0 %v1503
    %1840 = vmatmul.mubr.bf16.gmra.mxu0 %v1502
    %v1841 = vpop.f32.mrf.mxu0
    %v1842 = vadd.f32 %v1802, %v1841
    %v1843 = vpop.f32.mrf.mxu0
    %v1844 = vpop.f32.mrf.mxu0
    %v1845 = vpop.f32.mrf.mxu0
    %1846 = vdwg.mxu0
    %1847 = vst [vmem:[%s5] sm:$0xff] %v1842
  $region29: #{net_forward.7} parent=0 // pred_fallthru
    _
  // Predicated region
  $region30: #{net_forward.7} parent=0 // pred_check
    _
  $region31: #{net_forward.7} parent=0 // pred_check_branch
    %1849 = sbr.rel (0) target = $region33
  $region32: #{net_forward.7} parent=0 // pred_region
    _
  $region33: #{net_forward.7} parent=0 // pred_fallthru
    _
  // Predicated region
  $region34: #{net_forward.7} parent=0 // pred_check
    _
  $region35: #{net_forward.7} parent=0 // pred_check_branch
    %1851 = sbr.rel (0) target = $region37
  $region36: #{net_forward.7} parent=0 // pred_region
    _
  $region37: #{net_forward.7} parent=0 // pred_fallthru
    _

</llo_original>
